<compile_context>
chip_gen: v6e
topology: v6e:2x2x1
jax: 0.10.0
libtpu: 0.0.40
codegen_flags: <defaults>
</compile_context>

<pallas_src>
import math
import jax
import jax.numpy as jnp
from jax.experimental import pallas as pl
from jax.experimental.pallas import tpu as pltpu

# ---- small DistilBERT-like config ----
VOCAB = 100
MAX_POS = 16
B, S, H = 2, 8, 32          # batch, seq len, true hidden
NH = 4                      # attention heads
HD = H // NH                # head dim
FFN = 64                    # true feed-forward hidden dim
NLAYERS = 2
EPS = 1e-12

# ---- TPU-friendly padded sizes (lane-dense last dims) ----
HP = 128                    # hidden padded to full 128-lane width
FP = 128                    # FFN padded to full 128-lane width
QKVP = 128                  # packed QKV output columns: 3*H = 96 -> 128
SCALE = 1.0 / math.sqrt(HD)


def _layer_norm(x, gamma, beta):
    # x: (S, HP) with zeros in padded lanes; statistics over the true H columns only.
    # gamma/beta are zero-padded, so padded lanes stay exactly zero.
    s1 = jnp.sum(x, axis=-1, keepdims=True)
    s2 = jnp.sum(x * x, axis=-1, keepdims=True)
    mean = s1 * (1.0 / H)
    var = jnp.maximum(s2 * (1.0 / H) - mean * mean, 0.0)
    return (x - mean) * jax.lax.rsqrt(var + EPS) * gamma + beta


# ------------------- fused Pallas kernel (one batch element per grid step) -------------------

def fused_encoder_kernel(x_ref, eg_ref, eb_ref,
                         wqkv_ref, bqkv_ref, wo_ref, bo_ref,
                         g1_ref, be1_ref, w1_ref, b1_ref,
                         w2_ref, b2_ref, g2_ref, be2_ref,
                         o_ref):
    # x_ref: (1, S, HP) token+position embeddings for this sentence (padded lanes zero).
    # Stacked per-layer params (leading dim NLAYERS), matmul weights in bf16:
    #   wqkv (NL,HP,128)  bqkv (NL,1,128)  wo (NL,HP,HP)  bo (NL,1,HP)
    #   w1 (NL,HP,FP)  b1 (NL,1,FP)  w2 (NL,FP,HP)  b2 (NL,1,HP)  g*/be* (NL,1,HP)
    x = x_ref[0]                                              # (S, HP) f32
    x = _layer_norm(x, eg_ref[...], eb_ref[...])              # embedding LayerNorm

    for li in range(NLAYERS):                                 # static, unrolled layer loop
        # ---- fused QKV projection: one lane-dense (S,HP)x(HP,128) bf16 matmul ----
        qkv = jnp.dot(x.astype(jnp.bfloat16), wqkv_ref[li],
                      preferred_element_type=jnp.float32) + bqkv_ref[li]      # (S, 128)

        # head split = static lane slices + stack (layout only; no extra matmuls)
        def heads(off):
            return jnp.stack([qkv[:, off + h * HD: off + (h + 1) * HD]
                              for h in range(NH)], axis=0)                    # (NH, S, HD)
        q, k, v = heads(0), heads(H), heads(2 * H)

        # scores / softmax / context, batched over the head axis (one MXU push each).
        # 1/sqrt(HD) is already folded into Wq on the host.
        s = jnp.einsum('hqd,hkd->hqk', q.astype(jnp.bfloat16), k.astype(jnp.bfloat16),
                       preferred_element_type=jnp.float32)                    # (NH, S, S)
        s = s - jnp.max(s, axis=-1, keepdims=True)
        p = jnp.exp(s)
        p = p * pl.reciprocal(jnp.sum(p, axis=-1, keepdims=True), approx=True)
        ctx = jnp.einsum('hqk,hkd->hqd', p.astype(jnp.bfloat16), v.astype(jnp.bfloat16),
                         preferred_element_type=jnp.float32)                  # (NH, S, HD)

        # ---- fused attention output projection: lane-concat heads, one 128-wide matmul ----
        ctx_p = jnp.concatenate([ctx[h] for h in range(NH)]
                                + [jnp.zeros((S, HP - H), jnp.float32)], axis=-1)  # (S, HP)
        attn = jnp.dot(ctx_p.astype(jnp.bfloat16), wo_ref[li],
                       preferred_element_type=jnp.float32) + bo_ref[li]
        x = _layer_norm(x + attn, g1_ref[li], be1_ref[li])                    # sa_layer_norm

        # ---- feed-forward ----
        h1 = jnp.dot(x.astype(jnp.bfloat16), w1_ref[li],
                     preferred_element_type=jnp.float32) + b1_ref[li]
        # TODO(synk): DistilBERT uses exact (erf) GELU; tanh approximation used here.
        h1 = jax.nn.gelu(h1, approximate=True)
        f = jnp.dot(h1.astype(jnp.bfloat16), w2_ref[li],
                    preferred_element_type=jnp.float32) + b2_ref[li]
        x = _layer_norm(x + f, g2_ref[li], be2_ref[li])                       # output_layer_norm

    o_ref[0] = x        # full last_hidden_state for this sentence; CLS sliced on host


# ------------------- host-side parameter prep -------------------

def init_params(key):
    def dense(k, din, dout):
        kw, kb = jax.random.split(k)
        w = 0.02 * jax.random.normal(kw, (din, dout), jnp.float32)
        b = 0.02 * jax.random.normal(kb, (1, dout), jnp.float32)
        return w, b

    keys = jax.random.split(key, 3 + NLAYERS)
    word_emb = 0.02 * jax.random.normal(keys[0], (VOCAB, H), jnp.float32)
    pos_emb = 0.02 * jax.random.normal(keys[1], (MAX_POS, H), jnp.float32)
    emb_gamma = jnp.ones((1, H), jnp.float32)
    emb_beta = jnp.zeros((1, H), jnp.float32)

    layers = []
    for li in range(NLAYERS):
        lk = jax.random.split(keys[3 + li], 6)
        wq, bq = dense(lk[0], H, H)
        wk, bk = dense(lk[1], H, H)
        wv, bv = dense(lk[2], H, H)
        wo, bo = dense(lk[3], H, H)
        g1, be1 = jnp.ones((1, H), jnp.float32), jnp.zeros((1, H), jnp.float32)
        w1, b1 = dense(lk[4], H, FFN)
        w2, b2 = dense(lk[5], FFN, H)
        g2, be2 = jnp.ones((1, H), jnp.float32), jnp.zeros((1, H), jnp.float32)
        layers.append(dict(wq=wq, bq=bq, wk=wk, bk=bk, wv=wv, bv=bv, wo=wo, bo=bo,
                           g1=g1, be1=be1, w1=w1, b1=b1, w2=w2, b2=b2, g2=g2, be2=be2))
    return (word_emb, pos_emb, emb_gamma, emb_beta), layers


def _pad2(a, rows, cols):
    return jnp.pad(a, ((0, rows - a.shape[0]), (0, cols - a.shape[1])))


def prepare_params(emb_params, layer_params):
    """Zero-pad to lane-dense widths, repack QKV/Wo into single lane-dense matmuls (bf16)."""
    word_emb, pos_emb, emb_gamma, emb_beta = emb_params
    word_emb_p = _pad2(word_emb, VOCAB, HP)
    pos_emb_p = _pad2(pos_emb, MAX_POS, HP)
    emb_g = _pad2(emb_gamma, 1, HP)          # padded lanes: gamma = 0 -> stay exactly zero
    emb_b = _pad2(emb_beta, 1, HP)

    acc = {name: [] for name in
           ('wqkv', 'bqkv', 'wo', 'bo', 'g1', 'be1', 'w1', 'b1', 'w2', 'b2', 'g2', 'be2')}
    for lp in layer_params:
        # Fused, lane-dense QKV weight: (H, 3H)=(32,96) -> (HP, 128); 1/sqrt(HD) folded into Wq.
        wqkv = jnp.concatenate([lp['wq'] * SCALE, lp['wk'], lp['wv']], axis=1)
        bqkv = jnp.concatenate([lp['bq'] * SCALE, lp['bk'], lp['bv']], axis=1)
        acc['wqkv'].append(_pad2(wqkv, HP, QKVP).astype(jnp.bfloat16))
        acc['bqkv'].append(_pad2(bqkv, 1, QKVP))
        acc['wo'].append(_pad2(lp['wo'], HP, HP).astype(jnp.bfloat16))   # (NH*HD rows) -> 128
        acc['bo'].append(_pad2(lp['bo'], 1, HP))
        acc['g1'].append(_pad2(lp['g1'], 1, HP))
        acc['be1'].append(_pad2(lp['be1'], 1, HP))
        acc['w1'].append(_pad2(lp['w1'], HP, FP).astype(jnp.bfloat16))
        acc['b1'].append(_pad2(lp['b1'], 1, FP))
        acc['w2'].append(_pad2(lp['w2'], FP, HP).astype(jnp.bfloat16))
        acc['b2'].append(_pad2(lp['b2'], 1, HP))
        acc['g2'].append(_pad2(lp['g2'], 1, HP))
        acc['be2'].append(_pad2(lp['be2'], 1, HP))

    order = ('wqkv', 'bqkv', 'wo', 'bo', 'g1', 'be1', 'w1', 'b1', 'w2', 'b2', 'g2', 'be2')
    stacked = tuple(jnp.stack(acc[name], axis=0) for name in order)
    return (word_emb_p, pos_emb_p, emb_g, emb_b), stacked


def _full_block(arr):
    nd = arr.ndim
    return pl.BlockSpec(arr.shape, lambda b, _n=nd: (0,) * _n)


# ------------------- forward -------------------

def sentence_transformer_forward(token_ids, padded_emb, stacked_layers):
    word_emb_p, pos_emb_p, emb_g, emb_b = padded_emb

    # Glue: embedding row-gather + positional add (not the hot path).
    # TODO(synk): at real sizes, move this gather in-kernel via scalar-prefetched token ids.
    x = word_emb_p[token_ids] + pos_emb_p[:S][None, :, :]          # (B, S, HP) f32

    inputs = (x, emb_g, emb_b) + stacked_layers

    flops_per_layer = (2 * S * HP * QKVP            # fused QKV projection
                       + 2 * 2 * NH * S * S * HD    # scores + context
                       + 2 * S * HP * HP            # attention output projection
                       + 2 * 2 * S * HP * FP)       # FFN
    cost = pl.CostEstimate(
        flops=B * NLAYERS * flops_per_layer,
        transcendentals=B * (NLAYERS * (NH * S * S + S * FP + 4 * S) + 2 * S),
        bytes_accessed=sum(int(a.size) * a.dtype.itemsize for a in inputs) + B * S * HP * 4,
    )

    in_specs = [pl.BlockSpec((1, S, HP), lambda b: (b, 0, 0))]      # per-sentence activations
    in_specs += [_full_block(a) for a in inputs[1:]]                # weights: VMEM-resident

    out = pl.pallas_call(
        fused_encoder_kernel,
        out_shape=jax.ShapeDtypeStruct((B, S, HP), jnp.float32),
        grid=(B,),
        in_specs=in_specs,
        out_specs=pl.BlockSpec((1, S, HP), lambda b: (b, 0, 0)),
        compiler_params=pltpu.CompilerParams(
            dimension_semantics=("parallel",),       # batch across TensorCores on v7x
            vmem_limit_bytes=32 * 1024 * 1024),
        cost_estimate=cost,
    )(*inputs)

    # outputs.last_hidden_state[:, 0] -> CLS-token embeddings
    return out[:, 0, :H]                                            # (B, H)


if __name__ == "__main__":
    key = jax.random.PRNGKey(0)
    k_ids, k_params = jax.random.split(key)

    # synthetic "tokenized sentences": (B, S) int token ids (id 0 acts as [CLS])
    token_ids = jax.random.randint(k_ids, (B, S), 0, VOCAB, dtype=jnp.int32)
    token_ids = token_ids.at[:, 0].set(0)

    emb_params, layer_params = init_params(k_params)
    padded_emb, stacked_layers = prepare_params(emb_params, layer_params)

    embeddings = sentence_transformer_forward(token_ids, padded_emb, stacked_layers)
    embeddings = jax.block_until_ready(embeddings)
    assert embeddings.shape == (B, H) and embeddings.dtype == jnp.float32
    print("KERNEL_OK")
</pallas_src>

<mosaic_0001>
module attributes {stable_mosaic.version = 11 : i64} {
  func.func @fused_encoder_kernel(%arg0: i32, %arg1: memref<1x8x128xf32, #tpu.memory_space<vmem>>, %arg2: memref<1x128xf32, #tpu.memory_space<vmem>>, %arg3: memref<1x128xf32, #tpu.memory_space<vmem>>, %arg4: memref<2x128x128xbf16, #tpu.memory_space<vmem>>, %arg5: memref<2x1x128xf32, #tpu.memory_space<vmem>>, %arg6: memref<2x128x128xbf16, #tpu.memory_space<vmem>>, %arg7: memref<2x1x128xf32, #tpu.memory_space<vmem>>, %arg8: memref<2x1x128xf32, #tpu.memory_space<vmem>>, %arg9: memref<2x1x128xf32, #tpu.memory_space<vmem>>, %arg10: memref<2x128x128xbf16, #tpu.memory_space<vmem>>, %arg11: memref<2x1x128xf32, #tpu.memory_space<vmem>>, %arg12: memref<2x128x128xbf16, #tpu.memory_space<vmem>>, %arg13: memref<2x1x128xf32, #tpu.memory_space<vmem>>, %arg14: memref<2x1x128xf32, #tpu.memory_space<vmem>>, %arg15: memref<2x1x128xf32, #tpu.memory_space<vmem>>, %arg16: memref<1x8x128xf32, #tpu.memory_space<vmem>>) attributes {dimension_semantics = [#tpu.dimension_semantics<parallel>], iteration_bounds = array<i64: 2>, scalar_prefetch = 0 : i64, scratch_operands = 0 : i64, tpu.core_type = #tpu.core_type<tc>, window_params = [{transform_indices = @transform_0, window_bounds = array<i64: 1, 8, 128>}, {pipeline_mode = #tpu.pipeline_mode<synchronous>, transform_indices = @transform_1, window_bounds = array<i64: 1, 128>}, {pipeline_mode = #tpu.pipeline_mode<synchronous>, transform_indices = @transform_2, window_bounds = array<i64: 1, 128>}, {pipeline_mode = #tpu.pipeline_mode<synchronous>, transform_indices = @transform_3, window_bounds = array<i64: 2, 128, 128>}, {pipeline_mode = #tpu.pipeline_mode<synchronous>, transform_indices = @transform_4, window_bounds = array<i64: 2, 1, 128>}, {pipeline_mode = #tpu.pipeline_mode<synchronous>, transform_indices = @transform_5, window_bounds = array<i64: 2, 128, 128>}, {pipeline_mode = #tpu.pipeline_mode<synchronous>, transform_indices = @transform_6, window_bounds = array<i64: 2, 1, 128>}, {pipeline_mode = #tpu.pipeline_mode<synchronous>, transform_indices = @transform_7, window_bounds = array<i64: 2, 1, 128>}, {pipeline_mode = #tpu.pipeline_mode<synchronous>, transform_indices = @transform_8, window_bounds = array<i64: 2, 1, 128>}, {pipeline_mode = #tpu.pipeline_mode<synchronous>, transform_indices = @transform_9, window_bounds = array<i64: 2, 128, 128>}, {pipeline_mode = #tpu.pipeline_mode<synchronous>, transform_indices = @transform_10, window_bounds = array<i64: 2, 1, 128>}, {pipeline_mode = #tpu.pipeline_mode<synchronous>, transform_indices = @transform_11, window_bounds = array<i64: 2, 128, 128>}, {pipeline_mode = #tpu.pipeline_mode<synchronous>, transform_indices = @transform_12, window_bounds = array<i64: 2, 1, 128>}, {pipeline_mode = #tpu.pipeline_mode<synchronous>, transform_indices = @transform_13, window_bounds = array<i64: 2, 1, 128>}, {pipeline_mode = #tpu.pipeline_mode<synchronous>, transform_indices = @transform_14, window_bounds = array<i64: 2, 1, 128>}, {transform_indices = @transform_15, window_bounds = array<i64: 1, 8, 128>}]} {
    %c0 = arith.constant 0 : index
    %c0_0 = arith.constant 0 : index
    %c0_1 = arith.constant 0 : index
    %0 = vector.load %arg1[%c0, %c0_0, %c0_1] : memref<1x8x128xf32, #tpu.memory_space<vmem>>, vector<1x8x128xf32>
    %1 = vector.shape_cast %0 : vector<1x8x128xf32> to vector<8x128xf32>
    %c0_2 = arith.constant 0 : index
    %c0_3 = arith.constant 0 : index
    %2 = vector.load %arg2[%c0_2, %c0_3] : memref<1x128xf32, #tpu.memory_space<vmem>>, vector<1x128xf32>
    %c0_4 = arith.constant 0 : index
    %c0_5 = arith.constant 0 : index
    %3 = vector.load %arg3[%c0_4, %c0_5] : memref<1x128xf32, #tpu.memory_space<vmem>>, vector<1x128xf32>
    %cst = arith.constant dense<0.000000e+00> : vector<8xf32>
    %4 = vector.multi_reduction <add>, %1, %cst [1] : vector<8x128xf32> to vector<8xf32>
    %5 = vector.shape_cast %4 : vector<8xf32> to vector<8x1xf32>
    %6 = arith.mulf %1, %1 : vector<8x128xf32>
    %cst_6 = arith.constant dense<0.000000e+00> : vector<8xf32>
    %7 = vector.multi_reduction <add>, %6, %cst_6 [1] : vector<8x128xf32> to vector<8xf32>
    %8 = vector.shape_cast %7 : vector<8xf32> to vector<8x1xf32>
    %cst_7 = arith.constant 3.125000e-02 : f32
    %9 = vector.broadcast %cst_7 : f32 to vector<8x1xf32>
    %10 = arith.mulf %5, %9 : vector<8x1xf32>
    %cst_8 = arith.constant 3.125000e-02 : f32
    %11 = vector.broadcast %cst_8 : f32 to vector<8x1xf32>
    %12 = arith.mulf %8, %11 : vector<8x1xf32>
    %13 = arith.mulf %10, %10 : vector<8x1xf32>
    %14 = arith.subf %12, %13 : vector<8x1xf32>
    %cst_9 = arith.constant 0.000000e+00 : f32
    %15 = vector.broadcast %cst_9 : f32 to vector<8x1xf32>
    %16 = arith.maximumf %14, %15 : vector<8x1xf32>
    %17 = vector.broadcast %10 : vector<8x1xf32> to vector<8x128xf32>
    %18 = arith.subf %1, %17 : vector<8x128xf32>
    %cst_10 = arith.constant 9.99999996E-13 : f32
    %19 = vector.broadcast %cst_10 : f32 to vector<8x1xf32>
    %20 = arith.addf %16, %19 : vector<8x1xf32>
    %21 = math.rsqrt %20 : vector<8x1xf32>
    %22 = vector.broadcast %21 : vector<8x1xf32> to vector<8x128xf32>
    %23 = arith.mulf %18, %22 : vector<8x128xf32>
    %24 = vector.broadcast %2 : vector<1x128xf32> to vector<8x128xf32>
    %25 = arith.mulf %23, %24 : vector<8x128xf32>
    %26 = vector.broadcast %3 : vector<1x128xf32> to vector<8x128xf32>
    %27 = arith.addf %25, %26 : vector<8x128xf32>
    %28 = arith.truncf %27 : vector<8x128xf32> to vector<8x128xbf16>
    %c0_11 = arith.constant 0 : index
    %c0_12 = arith.constant 0 : index
    %c0_13 = arith.constant 0 : index
    %29 = vector.load %arg4[%c0_11, %c0_12, %c0_13] : memref<2x128x128xbf16, #tpu.memory_space<vmem>>, vector<1x128x128xbf16>
    %30 = vector.shape_cast %29 : vector<1x128x128xbf16> to vector<128x128xbf16>
    %cst_14 = arith.constant dense<0.000000e+00> : vector<8x128xf32>
    %31 = tpu.matmul %28, %30, %cst_14 {dimension_numbers = #tpu.dot_dimension_numbers<[1], [0], [0], [1], [0, 0, 1, 1], [], []>} : vector<8x128xbf16>, vector<128x128xbf16>, vector<8x128xf32> -> vector<8x128xf32>
    %c0_15 = arith.constant 0 : index
    %c0_16 = arith.constant 0 : index
    %c0_17 = arith.constant 0 : index
    %32 = vector.load %arg5[%c0_15, %c0_16, %c0_17] : memref<2x1x128xf32, #tpu.memory_space<vmem>>, vector<1x1x128xf32>
    %33 = vector.shape_cast %32 : vector<1x1x128xf32> to vector<1x128xf32>
    %34 = vector.broadcast %33 : vector<1x128xf32> to vector<8x128xf32>
    %35 = arith.addf %31, %34 : vector<8x128xf32>
    %36 = vector.extract_strided_slice %35 {offsets = [0, 0], sizes = [8, 8], strides = [1, 1]} : vector<8x128xf32> to vector<8x8xf32>
    %37 = vector.extract_strided_slice %35 {offsets = [0, 8], sizes = [8, 8], strides = [1, 1]} : vector<8x128xf32> to vector<8x8xf32>
    %38 = vector.extract_strided_slice %35 {offsets = [0, 16], sizes = [8, 8], strides = [1, 1]} : vector<8x128xf32> to vector<8x8xf32>
    %39 = vector.extract_strided_slice %35 {offsets = [0, 24], sizes = [8, 8], strides = [1, 1]} : vector<8x128xf32> to vector<8x8xf32>
    %40 = vector.shape_cast %36 : vector<8x8xf32> to vector<1x8x8xf32>
    %41 = vector.shape_cast %37 : vector<8x8xf32> to vector<1x8x8xf32>
    %42 = vector.shape_cast %38 : vector<8x8xf32> to vector<1x8x8xf32>
    %43 = vector.shape_cast %39 : vector<8x8xf32> to vector<1x8x8xf32>
    %44 = tpu.concatenate %40, %41, %42, %43 in 0 : vector<1x8x8xf32>, vector<1x8x8xf32>, vector<1x8x8xf32>, vector<1x8x8xf32> -> vector<4x8x8xf32>
    %45 = vector.extract_strided_slice %35 {offsets = [0, 32], sizes = [8, 8], strides = [1, 1]} : vector<8x128xf32> to vector<8x8xf32>
    %46 = vector.extract_strided_slice %35 {offsets = [0, 40], sizes = [8, 8], strides = [1, 1]} : vector<8x128xf32> to vector<8x8xf32>
    %47 = vector.extract_strided_slice %35 {offsets = [0, 48], sizes = [8, 8], strides = [1, 1]} : vector<8x128xf32> to vector<8x8xf32>
    %48 = vector.extract_strided_slice %35 {offsets = [0, 56], sizes = [8, 8], strides = [1, 1]} : vector<8x128xf32> to vector<8x8xf32>
    %49 = vector.shape_cast %45 : vector<8x8xf32> to vector<1x8x8xf32>
    %50 = vector.shape_cast %46 : vector<8x8xf32> to vector<1x8x8xf32>
    %51 = vector.shape_cast %47 : vector<8x8xf32> to vector<1x8x8xf32>
    %52 = vector.shape_cast %48 : vector<8x8xf32> to vector<1x8x8xf32>
    %53 = tpu.concatenate %49, %50, %51, %52 in 0 : vector<1x8x8xf32>, vector<1x8x8xf32>, vector<1x8x8xf32>, vector<1x8x8xf32> -> vector<4x8x8xf32>
    %54 = vector.extract_strided_slice %35 {offsets = [0, 64], sizes = [8, 8], strides = [1, 1]} : vector<8x128xf32> to vector<8x8xf32>
    %55 = vector.extract_strided_slice %35 {offsets = [0, 72], sizes = [8, 8], strides = [1, 1]} : vector<8x128xf32> to vector<8x8xf32>
    %56 = vector.extract_strided_slice %35 {offsets = [0, 80], sizes = [8, 8], strides = [1, 1]} : vector<8x128xf32> to vector<8x8xf32>
    %57 = vector.extract_strided_slice %35 {offsets = [0, 88], sizes = [8, 8], strides = [1, 1]} : vector<8x128xf32> to vector<8x8xf32>
    %58 = vector.shape_cast %54 : vector<8x8xf32> to vector<1x8x8xf32>
    %59 = vector.shape_cast %55 : vector<8x8xf32> to vector<1x8x8xf32>
    %60 = vector.shape_cast %56 : vector<8x8xf32> to vector<1x8x8xf32>
    %61 = vector.shape_cast %57 : vector<8x8xf32> to vector<1x8x8xf32>
    %62 = tpu.concatenate %58, %59, %60, %61 in 0 : vector<1x8x8xf32>, vector<1x8x8xf32>, vector<1x8x8xf32>, vector<1x8x8xf32> -> vector<4x8x8xf32>
    %63 = arith.truncf %44 : vector<4x8x8xf32> to vector<4x8x8xbf16>
    %64 = arith.truncf %53 : vector<4x8x8xf32> to vector<4x8x8xbf16>
    "tpu.trace_start"() <{level = 10 : i32, message = "hqd,hkd->hqk"}> : () -> ()
    %cst_18 = arith.constant dense<0.000000e+00> : vector<4x8x8xf32>
    %65 = tpu.matmul %63, %64, %cst_18 {dimension_numbers = #tpu.dot_dimension_numbers<[2], [2], [1], [1], [0, 0, 0, 1, 1, 1], [0], [0]>} : vector<4x8x8xbf16>, vector<4x8x8xbf16>, vector<4x8x8xf32> -> vector<4x8x8xf32>
    "tpu.trace_stop"() : () -> ()
    %cst_19 = arith.constant dense<0xFF800000> : vector<4x8xf32>
    %66 = vector.multi_reduction <maximumf>, %65, %cst_19 [2] : vector<4x8x8xf32> to vector<4x8xf32>
    %67 = vector.shape_cast %66 : vector<4x8xf32> to vector<4x8x1xf32>
    %68 = vector.broadcast %67 : vector<4x8x1xf32> to vector<4x8x8xf32>
    %69 = arith.subf %65, %68 : vector<4x8x8xf32>
    %70 = math.exp %69 : vector<4x8x8xf32>
    %cst_20 = arith.constant dense<0.000000e+00> : vector<4x8xf32>
    %71 = vector.multi_reduction <add>, %70, %cst_20 [2] : vector<4x8x8xf32> to vector<4x8xf32>
    %72 = vector.shape_cast %71 : vector<4x8xf32> to vector<4x8x1xf32>
    %73 = tpu.reciprocal %72 {approx = true} : vector<4x8x1xf32> -> vector<4x8x1xf32>
    %74 = vector.broadcast %73 : vector<4x8x1xf32> to vector<4x8x8xf32>
    %75 = arith.mulf %70, %74 : vector<4x8x8xf32>
    %76 = arith.truncf %75 : vector<4x8x8xf32> to vector<4x8x8xbf16>
    %77 = arith.truncf %62 : vector<4x8x8xf32> to vector<4x8x8xbf16>
    "tpu.trace_start"() <{level = 10 : i32, message = "hqk,hkd->hqd"}> : () -> ()
    %cst_21 = arith.constant dense<0.000000e+00> : vector<4x8x8xf32>
    %78 = tpu.matmul %76, %77, %cst_21 {dimension_numbers = #tpu.dot_dimension_numbers<[2], [1], [1], [2], [0, 0, 0, 1, 1, 2], [0], [0]>} : vector<4x8x8xbf16>, vector<4x8x8xbf16>, vector<4x8x8xf32> -> vector<4x8x8xf32>
    "tpu.trace_stop"() : () -> ()
    %79 = vector.extract_strided_slice %78 {offsets = [0, 0, 0], sizes = [1, 8, 8], strides = [1, 1, 1]} : vector<4x8x8xf32> to vector<1x8x8xf32>
    %80 = vector.shape_cast %79 : vector<1x8x8xf32> to vector<8x8xf32>
    %81 = vector.extract_strided_slice %78 {offsets = [1, 0, 0], sizes = [1, 8, 8], strides = [1, 1, 1]} : vector<4x8x8xf32> to vector<1x8x8xf32>
    %82 = vector.shape_cast %81 : vector<1x8x8xf32> to vector<8x8xf32>
    %83 = vector.extract_strided_slice %78 {offsets = [2, 0, 0], sizes = [1, 8, 8], strides = [1, 1, 1]} : vector<4x8x8xf32> to vector<1x8x8xf32>
    %84 = vector.shape_cast %83 : vector<1x8x8xf32> to vector<8x8xf32>
    %85 = vector.extract_strided_slice %78 {offsets = [3, 0, 0], sizes = [1, 8, 8], strides = [1, 1, 1]} : vector<4x8x8xf32> to vector<1x8x8xf32>
    %86 = vector.shape_cast %85 : vector<1x8x8xf32> to vector<8x8xf32>
    %cst_22 = arith.constant 0.000000e+00 : f32
    %87 = vector.broadcast %cst_22 : f32 to vector<8x96xf32>
    %88 = tpu.concatenate %80, %82, %84, %86, %87 in 1 : vector<8x8xf32>, vector<8x8xf32>, vector<8x8xf32>, vector<8x8xf32>, vector<8x96xf32> -> vector<8x128xf32>
    %89 = arith.truncf %88 : vector<8x128xf32> to vector<8x128xbf16>
    %c0_23 = arith.constant 0 : index
    %c0_24 = arith.constant 0 : index
    %c0_25 = arith.constant 0 : index
    %90 = vector.load %arg6[%c0_23, %c0_24, %c0_25] : memref<2x128x128xbf16, #tpu.memory_space<vmem>>, vector<1x128x128xbf16>
    %91 = vector.shape_cast %90 : vector<1x128x128xbf16> to vector<128x128xbf16>
    %cst_26 = arith.constant dense<0.000000e+00> : vector<8x128xf32>
    %92 = tpu.matmul %89, %91, %cst_26 {dimension_numbers = #tpu.dot_dimension_numbers<[1], [0], [0], [1], [0, 0, 1, 1], [], []>} : vector<8x128xbf16>, vector<128x128xbf16>, vector<8x128xf32> -> vector<8x128xf32>
    %c0_27 = arith.constant 0 : index
    %c0_28 = arith.constant 0 : index
    %c0_29 = arith.constant 0 : index
    %93 = vector.load %arg7[%c0_27, %c0_28, %c0_29] : memref<2x1x128xf32, #tpu.memory_space<vmem>>, vector<1x1x128xf32>
    %94 = vector.shape_cast %93 : vector<1x1x128xf32> to vector<1x128xf32>
    %95 = vector.broadcast %94 : vector<1x128xf32> to vector<8x128xf32>
    %96 = arith.addf %92, %95 : vector<8x128xf32>
    %97 = arith.addf %27, %96 : vector<8x128xf32>
    %c0_30 = arith.constant 0 : index
    %c0_31 = arith.constant 0 : index
    %c0_32 = arith.constant 0 : index
    %98 = vector.load %arg8[%c0_30, %c0_31, %c0_32] : memref<2x1x128xf32, #tpu.memory_space<vmem>>, vector<1x1x128xf32>
    %99 = vector.shape_cast %98 : vector<1x1x128xf32> to vector<1x128xf32>
    %c0_33 = arith.constant 0 : index
    %c0_34 = arith.constant 0 : index
    %c0_35 = arith.constant 0 : index
    %100 = vector.load %arg9[%c0_33, %c0_34, %c0_35] : memref<2x1x128xf32, #tpu.memory_space<vmem>>, vector<1x1x128xf32>
    %101 = vector.shape_cast %100 : vector<1x1x128xf32> to vector<1x128xf32>
    %cst_36 = arith.constant dense<0.000000e+00> : vector<8xf32>
    %102 = vector.multi_reduction <add>, %97, %cst_36 [1] : vector<8x128xf32> to vector<8xf32>
    %103 = vector.shape_cast %102 : vector<8xf32> to vector<8x1xf32>
    %104 = arith.mulf %97, %97 : vector<8x128xf32>
    %cst_37 = arith.constant dense<0.000000e+00> : vector<8xf32>
    %105 = vector.multi_reduction <add>, %104, %cst_37 [1] : vector<8x128xf32> to vector<8xf32>
    %106 = vector.shape_cast %105 : vector<8xf32> to vector<8x1xf32>
    %cst_38 = arith.constant 3.125000e-02 : f32
    %107 = vector.broadcast %cst_38 : f32 to vector<8x1xf32>
    %108 = arith.mulf %103, %107 : vector<8x1xf32>
    %cst_39 = arith.constant 3.125000e-02 : f32
    %109 = vector.broadcast %cst_39 : f32 to vector<8x1xf32>
    %110 = arith.mulf %106, %109 : vector<8x1xf32>
    %111 = arith.mulf %108, %108 : vector<8x1xf32>
    %112 = arith.subf %110, %111 : vector<8x1xf32>
    %cst_40 = arith.constant 0.000000e+00 : f32
    %113 = vector.broadcast %cst_40 : f32 to vector<8x1xf32>
    %114 = arith.maximumf %112, %113 : vector<8x1xf32>
    %115 = vector.broadcast %108 : vector<8x1xf32> to vector<8x128xf32>
    %116 = arith.subf %97, %115 : vector<8x128xf32>
    %cst_41 = arith.constant 9.99999996E-13 : f32
    %117 = vector.broadcast %cst_41 : f32 to vector<8x1xf32>
    %118 = arith.addf %114, %117 : vector<8x1xf32>
    %119 = math.rsqrt %118 : vector<8x1xf32>
    %120 = vector.broadcast %119 : vector<8x1xf32> to vector<8x128xf32>
    %121 = arith.mulf %116, %120 : vector<8x128xf32>
    %122 = vector.broadcast %99 : vector<1x128xf32> to vector<8x128xf32>
    %123 = arith.mulf %121, %122 : vector<8x128xf32>
    %124 = vector.broadcast %101 : vector<1x128xf32> to vector<8x128xf32>
    %125 = arith.addf %123, %124 : vector<8x128xf32>
    %126 = arith.truncf %125 : vector<8x128xf32> to vector<8x128xbf16>
    %c0_42 = arith.constant 0 : index
    %c0_43 = arith.constant 0 : index
    %c0_44 = arith.constant 0 : index
    %127 = vector.load %arg10[%c0_42, %c0_43, %c0_44] : memref<2x128x128xbf16, #tpu.memory_space<vmem>>, vector<1x128x128xbf16>
    %128 = vector.shape_cast %127 : vector<1x128x128xbf16> to vector<128x128xbf16>
    %cst_45 = arith.constant dense<0.000000e+00> : vector<8x128xf32>
    %129 = tpu.matmul %126, %128, %cst_45 {dimension_numbers = #tpu.dot_dimension_numbers<[1], [0], [0], [1], [0, 0, 1, 1], [], []>} : vector<8x128xbf16>, vector<128x128xbf16>, vector<8x128xf32> -> vector<8x128xf32>
    %c0_46 = arith.constant 0 : index
    %c0_47 = arith.constant 0 : index
    %c0_48 = arith.constant 0 : index
    %130 = vector.load %arg11[%c0_46, %c0_47, %c0_48] : memref<2x1x128xf32, #tpu.memory_space<vmem>>, vector<1x1x128xf32>
    %131 = vector.shape_cast %130 : vector<1x1x128xf32> to vector<1x128xf32>
    %132 = vector.broadcast %131 : vector<1x128xf32> to vector<8x128xf32>
    %133 = arith.addf %129, %132 : vector<8x128xf32>
    %134 = arith.mulf %133, %133 : vector<8x128xf32>
    %135 = arith.mulf %133, %134 : vector<8x128xf32>
    %cst_49 = arith.constant 4.471500e-02 : f32
    %136 = vector.broadcast %cst_49 : f32 to vector<8x128xf32>
    %137 = arith.mulf %136, %135 : vector<8x128xf32>
    %138 = arith.addf %133, %137 : vector<8x128xf32>
    %cst_50 = arith.constant 0.797884583 : f32
    %139 = vector.broadcast %cst_50 : f32 to vector<8x128xf32>
    %140 = arith.mulf %139, %138 : vector<8x128xf32>
    %141 = math.tanh %140 : vector<8x128xf32>
    %cst_51 = arith.constant 1.000000e+00 : f32
    %142 = vector.broadcast %cst_51 : f32 to vector<8x128xf32>
    %143 = arith.addf %142, %141 : vector<8x128xf32>
    %cst_52 = arith.constant 5.000000e-01 : f32
    %144 = vector.broadcast %cst_52 : f32 to vector<8x128xf32>
    %145 = arith.mulf %144, %143 : vector<8x128xf32>
    %146 = arith.mulf %133, %145 : vector<8x128xf32>
    %147 = arith.truncf %146 : vector<8x128xf32> to vector<8x128xbf16>
    %c0_53 = arith.constant 0 : index
    %c0_54 = arith.constant 0 : index
    %c0_55 = arith.constant 0 : index
    %148 = vector.load %arg12[%c0_53, %c0_54, %c0_55] : memref<2x128x128xbf16, #tpu.memory_space<vmem>>, vector<1x128x128xbf16>
    %149 = vector.shape_cast %148 : vector<1x128x128xbf16> to vector<128x128xbf16>
    %cst_56 = arith.constant dense<0.000000e+00> : vector<8x128xf32>
    %150 = tpu.matmul %147, %149, %cst_56 {dimension_numbers = #tpu.dot_dimension_numbers<[1], [0], [0], [1], [0, 0, 1, 1], [], []>} : vector<8x128xbf16>, vector<128x128xbf16>, vector<8x128xf32> -> vector<8x128xf32>
    %c0_57 = arith.constant 0 : index
    %c0_58 = arith.constant 0 : index
    %c0_59 = arith.constant 0 : index
    %151 = vector.load %arg13[%c0_57, %c0_58, %c0_59] : memref<2x1x128xf32, #tpu.memory_space<vmem>>, vector<1x1x128xf32>
    %152 = vector.shape_cast %151 : vector<1x1x128xf32> to vector<1x128xf32>
    %153 = vector.broadcast %152 : vector<1x128xf32> to vector<8x128xf32>
    %154 = arith.addf %150, %153 : vector<8x128xf32>
    %155 = arith.addf %125, %154 : vector<8x128xf32>
    %c0_60 = arith.constant 0 : index
    %c0_61 = arith.constant 0 : index
    %c0_62 = arith.constant 0 : index
    %156 = vector.load %arg14[%c0_60, %c0_61, %c0_62] : memref<2x1x128xf32, #tpu.memory_space<vmem>>, vector<1x1x128xf32>
    %157 = vector.shape_cast %156 : vector<1x1x128xf32> to vector<1x128xf32>
    %c0_63 = arith.constant 0 : index
    %c0_64 = arith.constant 0 : index
    %c0_65 = arith.constant 0 : index
    %158 = vector.load %arg15[%c0_63, %c0_64, %c0_65] : memref<2x1x128xf32, #tpu.memory_space<vmem>>, vector<1x1x128xf32>
    %159 = vector.shape_cast %158 : vector<1x1x128xf32> to vector<1x128xf32>
    %cst_66 = arith.constant dense<0.000000e+00> : vector<8xf32>
    %160 = vector.multi_reduction <add>, %155, %cst_66 [1] : vector<8x128xf32> to vector<8xf32>
    %161 = vector.shape_cast %160 : vector<8xf32> to vector<8x1xf32>
    %162 = arith.mulf %155, %155 : vector<8x128xf32>
    %cst_67 = arith.constant dense<0.000000e+00> : vector<8xf32>
    %163 = vector.multi_reduction <add>, %162, %cst_67 [1] : vector<8x128xf32> to vector<8xf32>
    %164 = vector.shape_cast %163 : vector<8xf32> to vector<8x1xf32>
    %cst_68 = arith.constant 3.125000e-02 : f32
    %165 = vector.broadcast %cst_68 : f32 to vector<8x1xf32>
    %166 = arith.mulf %161, %165 : vector<8x1xf32>
    %cst_69 = arith.constant 3.125000e-02 : f32
    %167 = vector.broadcast %cst_69 : f32 to vector<8x1xf32>
    %168 = arith.mulf %164, %167 : vector<8x1xf32>
    %169 = arith.mulf %166, %166 : vector<8x1xf32>
    %170 = arith.subf %168, %169 : vector<8x1xf32>
    %cst_70 = arith.constant 0.000000e+00 : f32
    %171 = vector.broadcast %cst_70 : f32 to vector<8x1xf32>
    %172 = arith.maximumf %170, %171 : vector<8x1xf32>
    %173 = vector.broadcast %166 : vector<8x1xf32> to vector<8x128xf32>
    %174 = arith.subf %155, %173 : vector<8x128xf32>
    %cst_71 = arith.constant 9.99999996E-13 : f32
    %175 = vector.broadcast %cst_71 : f32 to vector<8x1xf32>
    %176 = arith.addf %172, %175 : vector<8x1xf32>
    %177 = math.rsqrt %176 : vector<8x1xf32>
    %178 = vector.broadcast %177 : vector<8x1xf32> to vector<8x128xf32>
    %179 = arith.mulf %174, %178 : vector<8x128xf32>
    %180 = vector.broadcast %157 : vector<1x128xf32> to vector<8x128xf32>
    %181 = arith.mulf %179, %180 : vector<8x128xf32>
    %182 = vector.broadcast %159 : vector<1x128xf32> to vector<8x128xf32>
    %183 = arith.addf %181, %182 : vector<8x128xf32>
    %184 = arith.truncf %183 : vector<8x128xf32> to vector<8x128xbf16>
    %c1 = arith.constant 1 : index
    %c0_72 = arith.constant 0 : index
    %c0_73 = arith.constant 0 : index
    %185 = vector.load %arg4[%c1, %c0_72, %c0_73] : memref<2x128x128xbf16, #tpu.memory_space<vmem>>, vector<1x128x128xbf16>
    %186 = vector.shape_cast %185 : vector<1x128x128xbf16> to vector<128x128xbf16>
    %cst_74 = arith.constant dense<0.000000e+00> : vector<8x128xf32>
    %187 = tpu.matmul %184, %186, %cst_74 {dimension_numbers = #tpu.dot_dimension_numbers<[1], [0], [0], [1], [0, 0, 1, 1], [], []>} : vector<8x128xbf16>, vector<128x128xbf16>, vector<8x128xf32> -> vector<8x128xf32>
    %c1_75 = arith.constant 1 : index
    %c0_76 = arith.constant 0 : index
    %c0_77 = arith.constant 0 : index
    %188 = vector.load %arg5[%c1_75, %c0_76, %c0_77] : memref<2x1x128xf32, #tpu.memory_space<vmem>>, vector<1x1x128xf32>
    %189 = vector.shape_cast %188 : vector<1x1x128xf32> to vector<1x128xf32>
    %190 = vector.broadcast %189 : vector<1x128xf32> to vector<8x128xf32>
    %191 = arith.addf %187, %190 : vector<8x128xf32>
    %192 = vector.extract_strided_slice %191 {offsets = [0, 0], sizes = [8, 8], strides = [1, 1]} : vector<8x128xf32> to vector<8x8xf32>
    %193 = vector.extract_strided_slice %191 {offsets = [0, 8], sizes = [8, 8], strides = [1, 1]} : vector<8x128xf32> to vector<8x8xf32>
    %194 = vector.extract_strided_slice %191 {offsets = [0, 16], sizes = [8, 8], strides = [1, 1]} : vector<8x128xf32> to vector<8x8xf32>
    %195 = vector.extract_strided_slice %191 {offsets = [0, 24], sizes = [8, 8], strides = [1, 1]} : vector<8x128xf32> to vector<8x8xf32>
    %196 = vector.shape_cast %192 : vector<8x8xf32> to vector<1x8x8xf32>
    %197 = vector.shape_cast %193 : vector<8x8xf32> to vector<1x8x8xf32>
    %198 = vector.shape_cast %194 : vector<8x8xf32> to vector<1x8x8xf32>
    %199 = vector.shape_cast %195 : vector<8x8xf32> to vector<1x8x8xf32>
    %200 = tpu.concatenate %196, %197, %198, %199 in 0 : vector<1x8x8xf32>, vector<1x8x8xf32>, vector<1x8x8xf32>, vector<1x8x8xf32> -> vector<4x8x8xf32>
    %201 = vector.extract_strided_slice %191 {offsets = [0, 32], sizes = [8, 8], strides = [1, 1]} : vector<8x128xf32> to vector<8x8xf32>
    %202 = vector.extract_strided_slice %191 {offsets = [0, 40], sizes = [8, 8], strides = [1, 1]} : vector<8x128xf32> to vector<8x8xf32>
    %203 = vector.extract_strided_slice %191 {offsets = [0, 48], sizes = [8, 8], strides = [1, 1]} : vector<8x128xf32> to vector<8x8xf32>
    %204 = vector.extract_strided_slice %191 {offsets = [0, 56], sizes = [8, 8], strides = [1, 1]} : vector<8x128xf32> to vector<8x8xf32>
    %205 = vector.shape_cast %201 : vector<8x8xf32> to vector<1x8x8xf32>
    %206 = vector.shape_cast %202 : vector<8x8xf32> to vector<1x8x8xf32>
    %207 = vector.shape_cast %203 : vector<8x8xf32> to vector<1x8x8xf32>
    %208 = vector.shape_cast %204 : vector<8x8xf32> to vector<1x8x8xf32>
    %209 = tpu.concatenate %205, %206, %207, %208 in 0 : vector<1x8x8xf32>, vector<1x8x8xf32>, vector<1x8x8xf32>, vector<1x8x8xf32> -> vector<4x8x8xf32>
    %210 = vector.extract_strided_slice %191 {offsets = [0, 64], sizes = [8, 8], strides = [1, 1]} : vector<8x128xf32> to vector<8x8xf32>
    %211 = vector.extract_strided_slice %191 {offsets = [0, 72], sizes = [8, 8], strides = [1, 1]} : vector<8x128xf32> to vector<8x8xf32>
    %212 = vector.extract_strided_slice %191 {offsets = [0, 80], sizes = [8, 8], strides = [1, 1]} : vector<8x128xf32> to vector<8x8xf32>
    %213 = vector.extract_strided_slice %191 {offsets = [0, 88], sizes = [8, 8], strides = [1, 1]} : vector<8x128xf32> to vector<8x8xf32>
    %214 = vector.shape_cast %210 : vector<8x8xf32> to vector<1x8x8xf32>
    %215 = vector.shape_cast %211 : vector<8x8xf32> to vector<1x8x8xf32>
    %216 = vector.shape_cast %212 : vector<8x8xf32> to vector<1x8x8xf32>
    %217 = vector.shape_cast %213 : vector<8x8xf32> to vector<1x8x8xf32>
    %218 = tpu.concatenate %214, %215, %216, %217 in 0 : vector<1x8x8xf32>, vector<1x8x8xf32>, vector<1x8x8xf32>, vector<1x8x8xf32> -> vector<4x8x8xf32>
    %219 = arith.truncf %200 : vector<4x8x8xf32> to vector<4x8x8xbf16>
    %220 = arith.truncf %209 : vector<4x8x8xf32> to vector<4x8x8xbf16>
    "tpu.trace_start"() <{level = 10 : i32, message = "hqd,hkd->hqk"}> : () -> ()
    %cst_78 = arith.constant dense<0.000000e+00> : vector<4x8x8xf32>
    %221 = tpu.matmul %219, %220, %cst_78 {dimension_numbers = #tpu.dot_dimension_numbers<[2], [2], [1], [1], [0, 0, 0, 1, 1, 1], [0], [0]>} : vector<4x8x8xbf16>, vector<4x8x8xbf16>, vector<4x8x8xf32> -> vector<4x8x8xf32>
    "tpu.trace_stop"() : () -> ()
    %cst_79 = arith.constant dense<0xFF800000> : vector<4x8xf32>
    %222 = vector.multi_reduction <maximumf>, %221, %cst_79 [2] : vector<4x8x8xf32> to vector<4x8xf32>
    %223 = vector.shape_cast %222 : vector<4x8xf32> to vector<4x8x1xf32>
    %224 = vector.broadcast %223 : vector<4x8x1xf32> to vector<4x8x8xf32>
    %225 = arith.subf %221, %224 : vector<4x8x8xf32>
    %226 = math.exp %225 : vector<4x8x8xf32>
    %cst_80 = arith.constant dense<0.000000e+00> : vector<4x8xf32>
    %227 = vector.multi_reduction <add>, %226, %cst_80 [2] : vector<4x8x8xf32> to vector<4x8xf32>
    %228 = vector.shape_cast %227 : vector<4x8xf32> to vector<4x8x1xf32>
    %229 = tpu.reciprocal %228 {approx = true} : vector<4x8x1xf32> -> vector<4x8x1xf32>
    %230 = vector.broadcast %229 : vector<4x8x1xf32> to vector<4x8x8xf32>
    %231 = arith.mulf %226, %230 : vector<4x8x8xf32>
    %232 = arith.truncf %231 : vector<4x8x8xf32> to vector<4x8x8xbf16>
    %233 = arith.truncf %218 : vector<4x8x8xf32> to vector<4x8x8xbf16>
    "tpu.trace_start"() <{level = 10 : i32, message = "hqk,hkd->hqd"}> : () -> ()
    %cst_81 = arith.constant dense<0.000000e+00> : vector<4x8x8xf32>
    %234 = tpu.matmul %232, %233, %cst_81 {dimension_numbers = #tpu.dot_dimension_numbers<[2], [1], [1], [2], [0, 0, 0, 1, 1, 2], [0], [0]>} : vector<4x8x8xbf16>, vector<4x8x8xbf16>, vector<4x8x8xf32> -> vector<4x8x8xf32>
    "tpu.trace_stop"() : () -> ()
    %235 = vector.extract_strided_slice %234 {offsets = [0, 0, 0], sizes = [1, 8, 8], strides = [1, 1, 1]} : vector<4x8x8xf32> to vector<1x8x8xf32>
    %236 = vector.shape_cast %235 : vector<1x8x8xf32> to vector<8x8xf32>
    %237 = vector.extract_strided_slice %234 {offsets = [1, 0, 0], sizes = [1, 8, 8], strides = [1, 1, 1]} : vector<4x8x8xf32> to vector<1x8x8xf32>
    %238 = vector.shape_cast %237 : vector<1x8x8xf32> to vector<8x8xf32>
    %239 = vector.extract_strided_slice %234 {offsets = [2, 0, 0], sizes = [1, 8, 8], strides = [1, 1, 1]} : vector<4x8x8xf32> to vector<1x8x8xf32>
    %240 = vector.shape_cast %239 : vector<1x8x8xf32> to vector<8x8xf32>
    %241 = vector.extract_strided_slice %234 {offsets = [3, 0, 0], sizes = [1, 8, 8], strides = [1, 1, 1]} : vector<4x8x8xf32> to vector<1x8x8xf32>
    %242 = vector.shape_cast %241 : vector<1x8x8xf32> to vector<8x8xf32>
    %cst_82 = arith.constant 0.000000e+00 : f32
    %243 = vector.broadcast %cst_82 : f32 to vector<8x96xf32>
    %244 = tpu.concatenate %236, %238, %240, %242, %243 in 1 : vector<8x8xf32>, vector<8x8xf32>, vector<8x8xf32>, vector<8x8xf32>, vector<8x96xf32> -> vector<8x128xf32>
    %245 = arith.truncf %244 : vector<8x128xf32> to vector<8x128xbf16>
    %c1_83 = arith.constant 1 : index
    %c0_84 = arith.constant 0 : index
    %c0_85 = arith.constant 0 : index
    %246 = vector.load %arg6[%c1_83, %c0_84, %c0_85] : memref<2x128x128xbf16, #tpu.memory_space<vmem>>, vector<1x128x128xbf16>
    %247 = vector.shape_cast %246 : vector<1x128x128xbf16> to vector<128x128xbf16>
    %cst_86 = arith.constant dense<0.000000e+00> : vector<8x128xf32>
    %248 = tpu.matmul %245, %247, %cst_86 {dimension_numbers = #tpu.dot_dimension_numbers<[1], [0], [0], [1], [0, 0, 1, 1], [], []>} : vector<8x128xbf16>, vector<128x128xbf16>, vector<8x128xf32> -> vector<8x128xf32>
    %c1_87 = arith.constant 1 : index
    %c0_88 = arith.constant 0 : index
    %c0_89 = arith.constant 0 : index
    %249 = vector.load %arg7[%c1_87, %c0_88, %c0_89] : memref<2x1x128xf32, #tpu.memory_space<vmem>>, vector<1x1x128xf32>
    %250 = vector.shape_cast %249 : vector<1x1x128xf32> to vector<1x128xf32>
    %251 = vector.broadcast %250 : vector<1x128xf32> to vector<8x128xf32>
    %252 = arith.addf %248, %251 : vector<8x128xf32>
    %253 = arith.addf %183, %252 : vector<8x128xf32>
    %c1_90 = arith.constant 1 : index
    %c0_91 = arith.constant 0 : index
    %c0_92 = arith.constant 0 : index
    %254 = vector.load %arg8[%c1_90, %c0_91, %c0_92] : memref<2x1x128xf32, #tpu.memory_space<vmem>>, vector<1x1x128xf32>
    %255 = vector.shape_cast %254 : vector<1x1x128xf32> to vector<1x128xf32>
    %c1_93 = arith.constant 1 : index
    %c0_94 = arith.constant 0 : index
    %c0_95 = arith.constant 0 : index
    %256 = vector.load %arg9[%c1_93, %c0_94, %c0_95] : memref<2x1x128xf32, #tpu.memory_space<vmem>>, vector<1x1x128xf32>
    %257 = vector.shape_cast %256 : vector<1x1x128xf32> to vector<1x128xf32>
    %cst_96 = arith.constant dense<0.000000e+00> : vector<8xf32>
    %258 = vector.multi_reduction <add>, %253, %cst_96 [1] : vector<8x128xf32> to vector<8xf32>
    %259 = vector.shape_cast %258 : vector<8xf32> to vector<8x1xf32>
    %260 = arith.mulf %253, %253 : vector<8x128xf32>
    %cst_97 = arith.constant dense<0.000000e+00> : vector<8xf32>
    %261 = vector.multi_reduction <add>, %260, %cst_97 [1] : vector<8x128xf32> to vector<8xf32>
    %262 = vector.shape_cast %261 : vector<8xf32> to vector<8x1xf32>
    %cst_98 = arith.constant 3.125000e-02 : f32
    %263 = vector.broadcast %cst_98 : f32 to vector<8x1xf32>
    %264 = arith.mulf %259, %263 : vector<8x1xf32>
    %cst_99 = arith.constant 3.125000e-02 : f32
    %265 = vector.broadcast %cst_99 : f32 to vector<8x1xf32>
    %266 = arith.mulf %262, %265 : vector<8x1xf32>
    %267 = arith.mulf %264, %264 : vector<8x1xf32>
    %268 = arith.subf %266, %267 : vector<8x1xf32>
    %cst_100 = arith.constant 0.000000e+00 : f32
    %269 = vector.broadcast %cst_100 : f32 to vector<8x1xf32>
    %270 = arith.maximumf %268, %269 : vector<8x1xf32>
    %271 = vector.broadcast %264 : vector<8x1xf32> to vector<8x128xf32>
    %272 = arith.subf %253, %271 : vector<8x128xf32>
    %cst_101 = arith.constant 9.99999996E-13 : f32
    %273 = vector.broadcast %cst_101 : f32 to vector<8x1xf32>
    %274 = arith.addf %270, %273 : vector<8x1xf32>
    %275 = math.rsqrt %274 : vector<8x1xf32>
    %276 = vector.broadcast %275 : vector<8x1xf32> to vector<8x128xf32>
    %277 = arith.mulf %272, %276 : vector<8x128xf32>
    %278 = vector.broadcast %255 : vector<1x128xf32> to vector<8x128xf32>
    %279 = arith.mulf %277, %278 : vector<8x128xf32>
    %280 = vector.broadcast %257 : vector<1x128xf32> to vector<8x128xf32>
    %281 = arith.addf %279, %280 : vector<8x128xf32>
    %282 = arith.truncf %281 : vector<8x128xf32> to vector<8x128xbf16>
    %c1_102 = arith.constant 1 : index
    %c0_103 = arith.constant 0 : index
    %c0_104 = arith.constant 0 : index
    %283 = vector.load %arg10[%c1_102, %c0_103, %c0_104] : memref<2x128x128xbf16, #tpu.memory_space<vmem>>, vector<1x128x128xbf16>
    %284 = vector.shape_cast %283 : vector<1x128x128xbf16> to vector<128x128xbf16>
    %cst_105 = arith.constant dense<0.000000e+00> : vector<8x128xf32>
    %285 = tpu.matmul %282, %284, %cst_105 {dimension_numbers = #tpu.dot_dimension_numbers<[1], [0], [0], [1], [0, 0, 1, 1], [], []>} : vector<8x128xbf16>, vector<128x128xbf16>, vector<8x128xf32> -> vector<8x128xf32>
    %c1_106 = arith.constant 1 : index
    %c0_107 = arith.constant 0 : index
    %c0_108 = arith.constant 0 : index
    %286 = vector.load %arg11[%c1_106, %c0_107, %c0_108] : memref<2x1x128xf32, #tpu.memory_space<vmem>>, vector<1x1x128xf32>
    %287 = vector.shape_cast %286 : vector<1x1x128xf32> to vector<1x128xf32>
    %288 = vector.broadcast %287 : vector<1x128xf32> to vector<8x128xf32>
    %289 = arith.addf %285, %288 : vector<8x128xf32>
    %290 = arith.mulf %289, %289 : vector<8x128xf32>
    %291 = arith.mulf %289, %290 : vector<8x128xf32>
    %cst_109 = arith.constant 4.471500e-02 : f32
    %292 = vector.broadcast %cst_109 : f32 to vector<8x128xf32>
    %293 = arith.mulf %292, %291 : vector<8x128xf32>
    %294 = arith.addf %289, %293 : vector<8x128xf32>
    %cst_110 = arith.constant 0.797884583 : f32
    %295 = vector.broadcast %cst_110 : f32 to vector<8x128xf32>
    %296 = arith.mulf %295, %294 : vector<8x128xf32>
    %297 = math.tanh %296 : vector<8x128xf32>
    %cst_111 = arith.constant 1.000000e+00 : f32
    %298 = vector.broadcast %cst_111 : f32 to vector<8x128xf32>
    %299 = arith.addf %298, %297 : vector<8x128xf32>
    %cst_112 = arith.constant 5.000000e-01 : f32
    %300 = vector.broadcast %cst_112 : f32 to vector<8x128xf32>
    %301 = arith.mulf %300, %299 : vector<8x128xf32>
    %302 = arith.mulf %289, %301 : vector<8x128xf32>
    %303 = arith.truncf %302 : vector<8x128xf32> to vector<8x128xbf16>
    %c1_113 = arith.constant 1 : index
    %c0_114 = arith.constant 0 : index
    %c0_115 = arith.constant 0 : index
    %304 = vector.load %arg12[%c1_113, %c0_114, %c0_115] : memref<2x128x128xbf16, #tpu.memory_space<vmem>>, vector<1x128x128xbf16>
    %305 = vector.shape_cast %304 : vector<1x128x128xbf16> to vector<128x128xbf16>
    %cst_116 = arith.constant dense<0.000000e+00> : vector<8x128xf32>
    %306 = tpu.matmul %303, %305, %cst_116 {dimension_numbers = #tpu.dot_dimension_numbers<[1], [0], [0], [1], [0, 0, 1, 1], [], []>} : vector<8x128xbf16>, vector<128x128xbf16>, vector<8x128xf32> -> vector<8x128xf32>
    %c1_117 = arith.constant 1 : index
    %c0_118 = arith.constant 0 : index
    %c0_119 = arith.constant 0 : index
    %307 = vector.load %arg13[%c1_117, %c0_118, %c0_119] : memref<2x1x128xf32, #tpu.memory_space<vmem>>, vector<1x1x128xf32>
    %308 = vector.shape_cast %307 : vector<1x1x128xf32> to vector<1x128xf32>
    %309 = vector.broadcast %308 : vector<1x128xf32> to vector<8x128xf32>
    %310 = arith.addf %306, %309 : vector<8x128xf32>
    %311 = arith.addf %281, %310 : vector<8x128xf32>
    %c1_120 = arith.constant 1 : index
    %c0_121 = arith.constant 0 : index
    %c0_122 = arith.constant 0 : index
    %312 = vector.load %arg14[%c1_120, %c0_121, %c0_122] : memref<2x1x128xf32, #tpu.memory_space<vmem>>, vector<1x1x128xf32>
    %313 = vector.shape_cast %312 : vector<1x1x128xf32> to vector<1x128xf32>
    %c1_123 = arith.constant 1 : index
    %c0_124 = arith.constant 0 : index
    %c0_125 = arith.constant 0 : index
    %314 = vector.load %arg15[%c1_123, %c0_124, %c0_125] : memref<2x1x128xf32, #tpu.memory_space<vmem>>, vector<1x1x128xf32>
    %315 = vector.shape_cast %314 : vector<1x1x128xf32> to vector<1x128xf32>
    %cst_126 = arith.constant dense<0.000000e+00> : vector<8xf32>
    %316 = vector.multi_reduction <add>, %311, %cst_126 [1] : vector<8x128xf32> to vector<8xf32>
    %317 = vector.shape_cast %316 : vector<8xf32> to vector<8x1xf32>
    %318 = arith.mulf %311, %311 : vector<8x128xf32>
    %cst_127 = arith.constant dense<0.000000e+00> : vector<8xf32>
    %319 = vector.multi_reduction <add>, %318, %cst_127 [1] : vector<8x128xf32> to vector<8xf32>
    %320 = vector.shape_cast %319 : vector<8xf32> to vector<8x1xf32>
    %cst_128 = arith.constant 3.125000e-02 : f32
    %321 = vector.broadcast %cst_128 : f32 to vector<8x1xf32>
    %322 = arith.mulf %317, %321 : vector<8x1xf32>
    %cst_129 = arith.constant 3.125000e-02 : f32
    %323 = vector.broadcast %cst_129 : f32 to vector<8x1xf32>
    %324 = arith.mulf %320, %323 : vector<8x1xf32>
    %325 = arith.mulf %322, %322 : vector<8x1xf32>
    %326 = arith.subf %324, %325 : vector<8x1xf32>
    %cst_130 = arith.constant 0.000000e+00 : f32
    %327 = vector.broadcast %cst_130 : f32 to vector<8x1xf32>
    %328 = arith.maximumf %326, %327 : vector<8x1xf32>
    %329 = vector.broadcast %322 : vector<8x1xf32> to vector<8x128xf32>
    %330 = arith.subf %311, %329 : vector<8x128xf32>
    %cst_131 = arith.constant 9.99999996E-13 : f32
    %331 = vector.broadcast %cst_131 : f32 to vector<8x1xf32>
    %332 = arith.addf %328, %331 : vector<8x1xf32>
    %333 = math.rsqrt %332 : vector<8x1xf32>
    %334 = vector.broadcast %333 : vector<8x1xf32> to vector<8x128xf32>
    %335 = arith.mulf %330, %334 : vector<8x128xf32>
    %336 = vector.broadcast %313 : vector<1x128xf32> to vector<8x128xf32>
    %337 = arith.mulf %335, %336 : vector<8x128xf32>
    %338 = vector.broadcast %315 : vector<1x128xf32> to vector<8x128xf32>
    %339 = arith.addf %337, %338 : vector<8x128xf32>
    %c0_132 = arith.constant 0 : index
    %c0_133 = arith.constant 0 : index
    %c0_134 = arith.constant 0 : index
    %340 = vector.load %arg16[%c0_132, %c0_133, %c0_134] : memref<1x8x128xf32, #tpu.memory_space<vmem>>, vector<1x8x128xf32>
    %341 = vector.shape_cast %340 : vector<1x8x128xf32> to vector<8x128xf32>
    %342 = vector.shape_cast %339 : vector<8x128xf32> to vector<1x8x128xf32>
    tpu.vector_store %arg16[%c0_132, %c0_133, %c0_134], %342 {strides = array<i32>} : memref<1x8x128xf32, #tpu.memory_space<vmem>>, vector<1x8x128xf32>,
    return
  }
  func.func @transform_0(%arg0: i32) -> (i32, i32, i32) {
    %c0_i32 = arith.constant 0 : i32
    %c0_i32_0 = arith.constant 0 : i32
    %c0_i32_1 = arith.constant 0 : i32
    return %arg0, %c0_i32, %c0_i32_0 : i32, i32, i32
  }
  func.func @transform_1(%arg0: i32) -> (i32, i32) {
    %c0_i32 = arith.constant 0 : i32
    %c0_i32_0 = arith.constant 0 : i32
    %c0_i32_1 = arith.constant 0 : i32
    return %c0_i32, %c0_i32_0 : i32, i32
  }
  func.func @transform_2(%arg0: i32) -> (i32, i32) {
    %c0_i32 = arith.constant 0 : i32
    %c0_i32_0 = arith.constant 0 : i32
    %c0_i32_1 = arith.constant 0 : i32
    return %c0_i32, %c0_i32_0 : i32, i32
  }
  func.func @transform_3(%arg0: i32) -> (i32, i32, i32) {
    %c0_i32 = arith.constant 0 : i32
    %c0_i32_0 = arith.constant 0 : i32
    %c0_i32_1 = arith.constant 0 : i32
    %c0_i32_2 = arith.constant 0 : i32
    return %c0_i32, %c0_i32_0, %c0_i32_1 : i32, i32, i32
  }
  func.func @transform_4(%arg0: i32) -> (i32, i32, i32) {
    %c0_i32 = arith.constant 0 : i32
    %c0_i32_0 = arith.constant 0 : i32
    %c0_i32_1 = arith.constant 0 : i32
    %c0_i32_2 = arith.constant 0 : i32
    return %c0_i32, %c0_i32_0, %c0_i32_1 : i32, i32, i32
  }
  func.func @transform_5(%arg0: i32) -> (i32, i32, i32) {
    %c0_i32 = arith.constant 0 : i32
    %c0_i32_0 = arith.constant 0 : i32
    %c0_i32_1 = arith.constant 0 : i32
    %c0_i32_2 = arith.constant 0 : i32
    return %c0_i32, %c0_i32_0, %c0_i32_1 : i32, i32, i32
  }
  func.func @transform_6(%arg0: i32) -> (i32, i32, i32) {
    %c0_i32 = arith.constant 0 : i32
    %c0_i32_0 = arith.constant 0 : i32
    %c0_i32_1 = arith.constant 0 : i32
    %c0_i32_2 = arith.constant 0 : i32
    return %c0_i32, %c0_i32_0, %c0_i32_1 : i32, i32, i32
  }
  func.func @transform_7(%arg0: i32) -> (i32, i32, i32) {
    %c0_i32 = arith.constant 0 : i32
    %c0_i32_0 = arith.constant 0 : i32
    %c0_i32_1 = arith.constant 0 : i32
    %c0_i32_2 = arith.constant 0 : i32
    return %c0_i32, %c0_i32_0, %c0_i32_1 : i32, i32, i32
  }
  func.func @transform_8(%arg0: i32) -> (i32, i32, i32) {
    %c0_i32 = arith.constant 0 : i32
    %c0_i32_0 = arith.constant 0 : i32
    %c0_i32_1 = arith.constant 0 : i32
    %c0_i32_2 = arith.constant 0 : i32
    return %c0_i32, %c0_i32_0, %c0_i32_1 : i32, i32, i32
  }
  func.func @transform_9(%arg0: i32) -> (i32, i32, i32) {
    %c0_i32 = arith.constant 0 : i32
    %c0_i32_0 = arith.constant 0 : i32
    %c0_i32_1 = arith.constant 0 : i32
    %c0_i32_2 = arith.constant 0 : i32
    return %c0_i32, %c0_i32_0, %c0_i32_1 : i32, i32, i32
  }
  func.func @transform_10(%arg0: i32) -> (i32, i32, i32) {
    %c0_i32 = arith.constant 0 : i32
    %c0_i32_0 = arith.constant 0 : i32
    %c0_i32_1 = arith.constant 0 : i32
    %c0_i32_2 = arith.constant 0 : i32
    return %c0_i32, %c0_i32_0, %c0_i32_1 : i32, i32, i32
  }
  func.func @transform_11(%arg0: i32) -> (i32, i32, i32) {
    %c0_i32 = arith.constant 0 : i32
    %c0_i32_0 = arith.constant 0 : i32
    %c0_i32_1 = arith.constant 0 : i32
    %c0_i32_2 = arith.constant 0 : i32
    return %c0_i32, %c0_i32_0, %c0_i32_1 : i32, i32, i32
  }
  func.func @transform_12(%arg0: i32) -> (i32, i32, i32) {
    %c0_i32 = arith.constant 0 : i32
    %c0_i32_0 = arith.constant 0 : i32
    %c0_i32_1 = arith.constant 0 : i32
    %c0_i32_2 = arith.constant 0 : i32
    return %c0_i32, %c0_i32_0, %c0_i32_1 : i32, i32, i32
  }
  func.func @transform_13(%arg0: i32) -> (i32, i32, i32) {
    %c0_i32 = arith.constant 0 : i32
    %c0_i32_0 = arith.constant 0 : i32
    %c0_i32_1 = arith.constant 0 : i32
    %c0_i32_2 = arith.constant 0 : i32
    return %c0_i32, %c0_i32_0, %c0_i32_1 : i32, i32, i32
  }
  func.func @transform_14(%arg0: i32) -> (i32, i32, i32) {
    %c0_i32 = arith.constant 0 : i32
    %c0_i32_0 = arith.constant 0 : i32
    %c0_i32_1 = arith.constant 0 : i32
    %c0_i32_2 = arith.constant 0 : i32
    return %c0_i32, %c0_i32_0, %c0_i32_1 : i32, i32, i32
  }
  func.func @transform_15(%arg0: i32) -> (i32, i32, i32) {
    %c0_i32 = arith.constant 0 : i32
    %c0_i32_0 = arith.constant 0 : i32
    %c0_i32_1 = arith.constant 0 : i32
    return %arg0, %c0_i32, %c0_i32_0 : i32, i32, i32
  }
}

</mosaic_0001>

<llo_original>
// kernel: tpu_custom_call.1
$region0: #{tpu_custom_call.1}
  #allocation0 [shape = 'u32[]', space=smem, size = 0x4, offset = 0x4, fixed_abs, tag = 'smem constant byte address 0x4 - core index']
  #allocation1 [shape = 'u32[144,128]{1,0:T(1,128)}', space=vmem, size = 0x12000, scoped, tag = 'internal scratch']
  %s0 = inlined_call_operand.hbm [shape: f32[2,8,128], index: 0, kind: input, shape index: {}]
  %s1 = inlined_call_operand.hbm [shape: f32[1,128], index: 1, kind: input, shape index: {}]
  %s2 = inlined_call_operand.hbm [shape: f32[1,128], index: 2, kind: input, shape index: {}]
  %s3 = inlined_call_operand.hbm [shape: bf16[2,128,128], index: 3, kind: input, shape index: {}]
  %s4 = inlined_call_operand.vmem [shape: f32[2,1,128], index: 4, kind: input, shape index: {}]
  %s5 = inlined_call_operand.hbm [shape: bf16[2,128,128], index: 5, kind: input, shape index: {}]
  %s6 = inlined_call_operand.vmem [shape: f32[2,1,128], index: 6, kind: input, shape index: {}]
  %s7 = inlined_call_operand.vmem [shape: f32[2,1,128], index: 7, kind: input, shape index: {}]
  %s8 = inlined_call_operand.vmem [shape: f32[2,1,128], index: 8, kind: input, shape index: {}]
  %s9 = inlined_call_operand.hbm [shape: bf16[2,128,128], index: 9, kind: input, shape index: {}]
  %s10 = inlined_call_operand.vmem [shape: f32[2,1,128], index: 10, kind: input, shape index: {}]
  %s11 = inlined_call_operand.hbm [shape: bf16[2,128,128], index: 11, kind: input, shape index: {}]
  %s12 = inlined_call_operand.vmem [shape: f32[2,1,128], index: 12, kind: input, shape index: {}]
  %s13 = inlined_call_operand.vmem [shape: f32[2,1,128], index: 13, kind: input, shape index: {}]
  %s14 = inlined_call_operand.vmem [shape: f32[2,1,128], index: 14, kind: input, shape index: {}]
  %s15 = inlined_call_operand.hbm [shape: f32[2,8,128], index: 15, kind: output, shape index: {}]
  %s16 = sld [smem:[#allocation0]]
  $region121: #{tpu_custom_call.1} parent=0
    _
  %s18 = ssub.s32 1, %s16
  %s19 = scalar_select 0, %s18, %s16
  $region1: #{tpu_custom_call.1} parent=0
    #allocation2 [shape = 'u8[8192]{0}', space=vmem, size = 0x2000, scoped, tag = 'input window, operand 0']
    #allocation3 [shape = 's32[2]{0}', space=sflag, size = 0x8, scoped, tag = 'scoped memory for tpu_custom_call.1']
    #allocation4 [shape = 's32[2]{0}', space=sflag, size = 0x8, scoped, tag = 'scoped memory for tpu_custom_call.1']
    #allocation5 [shape = 'u8[512]{0}', space=vmem, size = 0x400, scoped, tag = 'input window, operand 1, single buffered']
    #allocation6 [shape = 's32[1]{0}', space=sflag, size = 0x4, scoped, tag = 'scoped memory for tpu_custom_call.1']
    #allocation7 [shape = 'u8[512]{0}', space=vmem, size = 0x400, scoped, tag = 'input window, operand 2, single buffered']
    #allocation8 [shape = 'u8[65536]{0}', space=vmem, size = 0x10000, scoped, tag = 'input window, operand 3, single buffered']
    #allocation9 [shape = 's32[1]{0}', space=sflag, size = 0x4, scoped, tag = 'scoped memory for tpu_custom_call.1']
    #allocation10 [shape = 'u8[65536]{0}', space=vmem, size = 0x10000, scoped, tag = 'input window, operand 5, single buffered']
    #allocation11 [shape = 'u8[65536]{0}', space=vmem, size = 0x10000, scoped, tag = 'input window, operand 9, single buffered']
    #allocation12 [shape = 's32[1]{0}', space=sflag, size = 0x4, scoped, tag = 'scoped memory for tpu_custom_call.1']
    #allocation13 [shape = 'u8[65536]{0}', space=vmem, size = 0x10000, scoped, tag = 'input window, operand 11, single buffered']
    #allocation14 [shape = 'u8[8192]{0}', space=vmem, size = 0x2000, scoped, tag = 'output window, operand 0']
    %20 = vsyncpa [#allocation3], 0
    %s21 = scalar_lea.sflag [#allocation3], 1
    %22 = vsyncpa %s21, 0
    %23 = vsyncpa [#allocation6], 0
    %24 = vsyncpa [#allocation9], 0
    %25 = vsyncpa [#allocation12], 0
    %26 = vsyncpa [#allocation4], 0
    %s27 = scalar_lea.sflag [#allocation4], 1
    %28 = vsyncpa %s27, 0
    loop: start=0, step=1, limit=4
    $region2: #{tpu_custom_call.1} parent=1 // loop_pre_header
      _
    $region3: #{tpu_custom_call.1} parent=1 // loop_header
      %s30 = sphi 0, %s34
      %p31 = scmp.ge.s32.totalorder %s30, 4
      %s40 = sphi 0, %s42
      %s43 = sphi 0, %s40
      %s44 = sphi 0, %s43
      %s60 = sphi 0, %s44
      %s64 = sphi 0, %s64
      %s66 = sphi 0, %s64
      %s67 = sphi 0, %s66
      %s81 = sphi 0, %s67
      %s85 = sphi 0, %s85
      %s87 = sphi 0, %s85
      %s88 = sphi 0, %s87
      %s102 = sphi 0, %s88
      %s106 = sphi 0, %s106
      %s108 = sphi 0, %s106
      %s109 = sphi 0, %s108
      %s123 = sphi 0, %s109
      %s127 = sphi 0, %s127
      %s129 = sphi 0, %s127
      %s130 = sphi 0, %s129
      %s144 = sphi 0, %s130
      %s148 = sphi 0, %s148
      %s150 = sphi 0, %s148
      %s151 = sphi 0, %s150
      %s165 = sphi 0, %s151
      %s169 = sphi 0, %s169
      %s171 = sphi 0, %s169
      %s172 = sphi 0, %s171
      %s186 = sphi 0, %s172
      %s190 = sphi 0, %s190
      %s192 = sphi 0, %s190
      %s193 = sphi 0, %s192
      %s207 = sphi 0, %s193
      %s211 = sphi 0, %s211
      %s213 = sphi 0, %s211
      %s214 = sphi 0, %s213
      %s228 = sphi 0, %s214
      %s232 = sphi 0, %s232
      %s234 = sphi 0, %s232
      %s235 = sphi 0, %s234
      %s249 = sphi 0, %s235
      %s253 = sphi 0, %s253
      %s255 = sphi 0, %s253
      %s256 = sphi 0, %s255
      %s270 = sphi 0, %s256
      %s274 = sphi 0, %s274
      %s276 = sphi 0, %s274
      %s277 = sphi 0, %s276
      %s291 = sphi 0, %s277
      %s295 = sphi 0, %s295
      %s297 = sphi 0, %s295
      %s298 = sphi 0, %s297
      %s312 = sphi 0, %s298
      %s316 = sphi 0, %s316
      %s318 = sphi 0, %s316
      %s319 = sphi 0, %s318
      %s333 = sphi 0, %s319
      %s337 = sphi 0, %s337
      %s339 = sphi 0, %s337
      %s340 = sphi 0, %s339
      %s354 = sphi 0, %s340
      %s360 = sphi 0, %s362
      %s363 = sphi 0, %s360
      %s364 = sphi 0, %s363
      %s380 = sphi 0, %s364
    $region4: #{tpu_custom_call.1} parent=1 // loop_header_branch
      %33 = sbr.rel (%p31) target = $region8
    $region5: #{tpu_custom_call.1} parent=1 // loop_body
      %s35 = ssub.s32 %s30, 1
      %s36 = ssub.s32 %s30, 2
      %s37 = sadd.s32 %s30, 1
      %s38 = ssub.s32 %s30, %s37
      %p39 = scmp.eq.s32.totalorder %s38, 0
      %s41 = sadd.s32 %s40, 1
      %s42 = scalar_select %p39, %s40, %s41
      %p45 = pneg %p39
      %p46 = scmp.eq.s32.totalorder %s30, 1
      %p47 = por %p45, %p46
      %p48 = scmp.ne.s32.totalorder %s40, %s43
      %p49 = scmp.eq.s32.totalorder %s30, 0
      %p50 = por %p48, %p49
      %p51 = scmp.ne.s32.totalorder %s40, %s43
      %p52 = scmp.eq.s32.totalorder %s35, 1
      %p53 = por %p51, %p52
      %p54 = scmp.ne.s32.totalorder %s43, %s44
      %p55 = scmp.eq.s32.totalorder %s35, 0
      %p56 = por %p54, %p55
      %p57 = scmp.ne.s32.totalorder %s43, %s44
      %p58 = scmp.eq.s32.totalorder %s36, 1
      %p59 = por %p57, %p58
      %p61 = scmp.ne.s32.totalorder %s44, %s60
      %p62 = scmp.eq.s32.totalorder %s36, 0
      %p63 = por %p61, %p62
      %s65 = sadd.s32 %s64, 1
      %p68 = scmp.eq.s32.totalorder %s30, 1
      %p69 = scmp.ne.s32.totalorder %s64, %s66
      %p70 = scmp.eq.s32.totalorder %s30, 0
      %p71 = por %p69, %p70
      %p72 = scmp.ne.s32.totalorder %s64, %s66
      %p73 = scmp.eq.s32.totalorder %s35, 1
      %p74 = por %p72, %p73
      %p75 = scmp.ne.s32.totalorder %s66, %s67
      %p76 = scmp.eq.s32.totalorder %s35, 0
      %p77 = por %p75, %p76
      %p78 = scmp.ne.s32.totalorder %s66, %s67
      %p79 = scmp.eq.s32.totalorder %s36, 1
      %p80 = por %p78, %p79
      %p82 = scmp.ne.s32.totalorder %s67, %s81
      %p83 = scmp.eq.s32.totalorder %s36, 0
      %p84 = por %p82, %p83
      %s86 = sadd.s32 %s85, 1
      %p89 = scmp.eq.s32.totalorder %s30, 1
      %p90 = scmp.ne.s32.totalorder %s85, %s87
      %p91 = scmp.eq.s32.totalorder %s30, 0
      %p92 = por %p90, %p91
      %p93 = scmp.ne.s32.totalorder %s85, %s87
      %p94 = scmp.eq.s32.totalorder %s35, 1
      %p95 = por %p93, %p94
      %p96 = scmp.ne.s32.totalorder %s87, %s88
      %p97 = scmp.eq.s32.totalorder %s35, 0
      %p98 = por %p96, %p97
      %p99 = scmp.ne.s32.totalorder %s87, %s88
      %p100 = scmp.eq.s32.totalorder %s36, 1
      %p101 = por %p99, %p100
      %p103 = scmp.ne.s32.totalorder %s88, %s102
      %p104 = scmp.eq.s32.totalorder %s36, 0
      %p105 = por %p103, %p104
      %s107 = sadd.s32 %s106, 1
      %p110 = scmp.eq.s32.totalorder %s30, 1
      %p111 = scmp.ne.s32.totalorder %s106, %s108
      %p112 = scmp.eq.s32.totalorder %s30, 0
      %p113 = por %p111, %p112
      %p114 = scmp.ne.s32.totalorder %s106, %s108
      %p115 = scmp.eq.s32.totalorder %s35, 1
      %p116 = por %p114, %p115
      %p117 = scmp.ne.s32.totalorder %s108, %s109
      %p118 = scmp.eq.s32.totalorder %s35, 0
      %p119 = por %p117, %p118
      %p120 = scmp.ne.s32.totalorder %s108, %s109
      %p121 = scmp.eq.s32.totalorder %s36, 1
      %p122 = por %p120, %p121
      %p124 = scmp.ne.s32.totalorder %s109, %s123
      %p125 = scmp.eq.s32.totalorder %s36, 0
      %p126 = por %p124, %p125
      %s128 = sadd.s32 %s127, 1
      %p131 = scmp.eq.s32.totalorder %s30, 1
      %p132 = scmp.ne.s32.totalorder %s127, %s129
      %p133 = scmp.eq.s32.totalorder %s30, 0
      %p134 = por %p132, %p133
      %p135 = scmp.ne.s32.totalorder %s127, %s129
      %p136 = scmp.eq.s32.totalorder %s35, 1
      %p137 = por %p135, %p136
      %p138 = scmp.ne.s32.totalorder %s129, %s130
      %p139 = scmp.eq.s32.totalorder %s35, 0
      %p140 = por %p138, %p139
      %p141 = scmp.ne.s32.totalorder %s129, %s130
      %p142 = scmp.eq.s32.totalorder %s36, 1
      %p143 = por %p141, %p142
      %p145 = scmp.ne.s32.totalorder %s130, %s144
      %p146 = scmp.eq.s32.totalorder %s36, 0
      %p147 = por %p145, %p146
      %s149 = sadd.s32 %s148, 1
      %p152 = scmp.eq.s32.totalorder %s30, 1
      %p153 = scmp.ne.s32.totalorder %s148, %s150
      %p154 = scmp.eq.s32.totalorder %s30, 0
      %p155 = por %p153, %p154
      %p156 = scmp.ne.s32.totalorder %s148, %s150
      %p157 = scmp.eq.s32.totalorder %s35, 1
      %p158 = por %p156, %p157
      %p159 = scmp.ne.s32.totalorder %s150, %s151
      %p160 = scmp.eq.s32.totalorder %s35, 0
      %p161 = por %p159, %p160
      %p162 = scmp.ne.s32.totalorder %s150, %s151
      %p163 = scmp.eq.s32.totalorder %s36, 1
      %p164 = por %p162, %p163
      %p166 = scmp.ne.s32.totalorder %s151, %s165
      %p167 = scmp.eq.s32.totalorder %s36, 0
      %p168 = por %p166, %p167
      %s170 = sadd.s32 %s169, 1
      %p173 = scmp.eq.s32.totalorder %s30, 1
      %p174 = scmp.ne.s32.totalorder %s169, %s171
      %p175 = scmp.eq.s32.totalorder %s30, 0
      %p176 = por %p174, %p175
      %p177 = scmp.ne.s32.totalorder %s169, %s171
      %p178 = scmp.eq.s32.totalorder %s35, 1
      %p179 = por %p177, %p178
      %p180 = scmp.ne.s32.totalorder %s171, %s172
      %p181 = scmp.eq.s32.totalorder %s35, 0
      %p182 = por %p180, %p181
      %p183 = scmp.ne.s32.totalorder %s171, %s172
      %p184 = scmp.eq.s32.totalorder %s36, 1
      %p185 = por %p183, %p184
      %p187 = scmp.ne.s32.totalorder %s172, %s186
      %p188 = scmp.eq.s32.totalorder %s36, 0
      %p189 = por %p187, %p188
      %s191 = sadd.s32 %s190, 1
      %p194 = scmp.eq.s32.totalorder %s30, 1
      %p195 = scmp.ne.s32.totalorder %s190, %s192
      %p196 = scmp.eq.s32.totalorder %s30, 0
      %p197 = por %p195, %p196
      %p198 = scmp.ne.s32.totalorder %s190, %s192
      %p199 = scmp.eq.s32.totalorder %s35, 1
      %p200 = por %p198, %p199
      %p201 = scmp.ne.s32.totalorder %s192, %s193
      %p202 = scmp.eq.s32.totalorder %s35, 0
      %p203 = por %p201, %p202
      %p204 = scmp.ne.s32.totalorder %s192, %s193
      %p205 = scmp.eq.s32.totalorder %s36, 1
      %p206 = por %p204, %p205
      %p208 = scmp.ne.s32.totalorder %s193, %s207
      %p209 = scmp.eq.s32.totalorder %s36, 0
      %p210 = por %p208, %p209
      %s212 = sadd.s32 %s211, 1
      %p215 = scmp.eq.s32.totalorder %s30, 1
      %p216 = scmp.ne.s32.totalorder %s211, %s213
      %p217 = scmp.eq.s32.totalorder %s30, 0
      %p218 = por %p216, %p217
      %p219 = scmp.ne.s32.totalorder %s211, %s213
      %p220 = scmp.eq.s32.totalorder %s35, 1
      %p221 = por %p219, %p220
      %p222 = scmp.ne.s32.totalorder %s213, %s214
      %p223 = scmp.eq.s32.totalorder %s35, 0
      %p224 = por %p222, %p223
      %p225 = scmp.ne.s32.totalorder %s213, %s214
      %p226 = scmp.eq.s32.totalorder %s36, 1
      %p227 = por %p225, %p226
      %p229 = scmp.ne.s32.totalorder %s214, %s228
      %p230 = scmp.eq.s32.totalorder %s36, 0
      %p231 = por %p229, %p230
      %s233 = sadd.s32 %s232, 1
      %p236 = scmp.eq.s32.totalorder %s30, 1
      %p237 = scmp.ne.s32.totalorder %s232, %s234
      %p238 = scmp.eq.s32.totalorder %s30, 0
      %p239 = por %p237, %p238
      %p240 = scmp.ne.s32.totalorder %s232, %s234
      %p241 = scmp.eq.s32.totalorder %s35, 1
      %p242 = por %p240, %p241
      %p243 = scmp.ne.s32.totalorder %s234, %s235
      %p244 = scmp.eq.s32.totalorder %s35, 0
      %p245 = por %p243, %p244
      %p246 = scmp.ne.s32.totalorder %s234, %s235
      %p247 = scmp.eq.s32.totalorder %s36, 1
      %p248 = por %p246, %p247
      %p250 = scmp.ne.s32.totalorder %s235, %s249
      %p251 = scmp.eq.s32.totalorder %s36, 0
      %p252 = por %p250, %p251
      %s254 = sadd.s32 %s253, 1
      %p257 = scmp.eq.s32.totalorder %s30, 1
      %p258 = scmp.ne.s32.totalorder %s253, %s255
      %p259 = scmp.eq.s32.totalorder %s30, 0
      %p260 = por %p258, %p259
      %p261 = scmp.ne.s32.totalorder %s253, %s255
      %p262 = scmp.eq.s32.totalorder %s35, 1
      %p263 = por %p261, %p262
      %p264 = scmp.ne.s32.totalorder %s255, %s256
      %p265 = scmp.eq.s32.totalorder %s35, 0
      %p266 = por %p264, %p265
      %p267 = scmp.ne.s32.totalorder %s255, %s256
      %p268 = scmp.eq.s32.totalorder %s36, 1
      %p269 = por %p267, %p268
      %p271 = scmp.ne.s32.totalorder %s256, %s270
      %p272 = scmp.eq.s32.totalorder %s36, 0
      %p273 = por %p271, %p272
      %s275 = sadd.s32 %s274, 1
      %p278 = scmp.eq.s32.totalorder %s30, 1
      %p279 = scmp.ne.s32.totalorder %s274, %s276
      %p280 = scmp.eq.s32.totalorder %s30, 0
      %p281 = por %p279, %p280
      %p282 = scmp.ne.s32.totalorder %s274, %s276
      %p283 = scmp.eq.s32.totalorder %s35, 1
      %p284 = por %p282, %p283
      %p285 = scmp.ne.s32.totalorder %s276, %s277
      %p286 = scmp.eq.s32.totalorder %s35, 0
      %p287 = por %p285, %p286
      %p288 = scmp.ne.s32.totalorder %s276, %s277
      %p289 = scmp.eq.s32.totalorder %s36, 1
      %p290 = por %p288, %p289
      %p292 = scmp.ne.s32.totalorder %s277, %s291
      %p293 = scmp.eq.s32.totalorder %s36, 0
      %p294 = por %p292, %p293
      %s296 = sadd.s32 %s295, 1
      %p299 = scmp.eq.s32.totalorder %s30, 1
      %p300 = scmp.ne.s32.totalorder %s295, %s297
      %p301 = scmp.eq.s32.totalorder %s30, 0
      %p302 = por %p300, %p301
      %p303 = scmp.ne.s32.totalorder %s295, %s297
      %p304 = scmp.eq.s32.totalorder %s35, 1
      %p305 = por %p303, %p304
      %p306 = scmp.ne.s32.totalorder %s297, %s298
      %p307 = scmp.eq.s32.totalorder %s35, 0
      %p308 = por %p306, %p307
      %p309 = scmp.ne.s32.totalorder %s297, %s298
      %p310 = scmp.eq.s32.totalorder %s36, 1
      %p311 = por %p309, %p310
      %p313 = scmp.ne.s32.totalorder %s298, %s312
      %p314 = scmp.eq.s32.totalorder %s36, 0
      %p315 = por %p313, %p314
      %s317 = sadd.s32 %s316, 1
      %p320 = scmp.eq.s32.totalorder %s30, 1
      %p321 = scmp.ne.s32.totalorder %s316, %s318
      %p322 = scmp.eq.s32.totalorder %s30, 0
      %p323 = por %p321, %p322
      %p324 = scmp.ne.s32.totalorder %s316, %s318
      %p325 = scmp.eq.s32.totalorder %s35, 1
      %p326 = por %p324, %p325
      %p327 = scmp.ne.s32.totalorder %s318, %s319
      %p328 = scmp.eq.s32.totalorder %s35, 0
      %p329 = por %p327, %p328
      %p330 = scmp.ne.s32.totalorder %s318, %s319
      %p331 = scmp.eq.s32.totalorder %s36, 1
      %p332 = por %p330, %p331
      %p334 = scmp.ne.s32.totalorder %s319, %s333
      %p335 = scmp.eq.s32.totalorder %s36, 0
      %p336 = por %p334, %p335
      %s338 = sadd.s32 %s337, 1
      %p341 = scmp.eq.s32.totalorder %s30, 1
      %p342 = scmp.ne.s32.totalorder %s337, %s339
      %p343 = scmp.eq.s32.totalorder %s30, 0
      %p344 = por %p342, %p343
      %p345 = scmp.ne.s32.totalorder %s337, %s339
      %p346 = scmp.eq.s32.totalorder %s35, 1
      %p347 = por %p345, %p346
      %p348 = scmp.ne.s32.totalorder %s339, %s340
      %p349 = scmp.eq.s32.totalorder %s35, 0
      %p350 = por %p348, %p349
      %p351 = scmp.ne.s32.totalorder %s339, %s340
      %p352 = scmp.eq.s32.totalorder %s36, 1
      %p353 = por %p351, %p352
      %p355 = scmp.ne.s32.totalorder %s340, %s354
      %p356 = scmp.eq.s32.totalorder %s36, 0
      %p357 = por %p355, %p356
      %s358 = ssub.s32 %s30, %s37
      %p359 = scmp.eq.s32.totalorder %s358, 0
      %s361 = sadd.s32 %s360, 1
      %s362 = scalar_select %p359, %s360, %s361
      %p365 = pneg %p359
      %p366 = scmp.eq.s32.totalorder %s30, 1
      %p367 = por %p365, %p366
      %p368 = scmp.ne.s32.totalorder %s360, %s363
      %p369 = scmp.eq.s32.totalorder %s30, 0
      %p370 = por %p368, %p369
      %p371 = scmp.ne.s32.totalorder %s360, %s363
      %p372 = scmp.eq.s32.totalorder %s35, 1
      %p373 = por %p371, %p372
      %p374 = scmp.ne.s32.totalorder %s363, %s364
      %p375 = scmp.eq.s32.totalorder %s35, 0
      %p376 = por %p374, %p375
      %p377 = scmp.ne.s32.totalorder %s363, %s364
      %p378 = scmp.eq.s32.totalorder %s36, 1
      %p379 = por %p377, %p378
      %p381 = scmp.ne.s32.totalorder %s364, %s380
      %p382 = scmp.eq.s32.totalorder %s36, 0
      %p383 = por %p381, %p382
      %p384 = scmp.le.s32.totalorder 1, %s30
      %p385 = scmp.lt.s32.totalorder %s30, 3
      %p386 = pnand %p384, %p385
      %p387 = pneg %p386
      // Predicated region
      $region9: #{tpu_custom_call.1} parent=5 // pred_check
        _
      $region10: #{tpu_custom_call.1} parent=5 // pred_check_branch
        %389 = sbr.rel (%p386) target = $region12
      $region11: #{tpu_custom_call.1} parent=5 // pred_region
        %s390 = ssub.s32 %s30, 1
        // Predicated region
        $region13: #{tpu_custom_call.1} parent=11 // pred_check
          %p391 = pneg %p77
        $region14: #{tpu_custom_call.1} parent=11 // pred_check_branch
          %393 = sbr.rel (%p391) target = $region16
        $region15: #{tpu_custom_call.1} parent=11 // pred_region
          %s395 = ssub.s32 16, 16
          %396 = vsyncadd [#allocation6], %s395
          %s398 = sshll.u32 [#allocation5], 4
          %s399 = int_to_ptr.vmem [resolvable:$true] %s398
          %401 = dma.hbm_to_vmem [thread:$0]  %s1, 16, %s399, [#allocation6]
        $region16: #{tpu_custom_call.1} parent=11 // pred_fallthru
          _
        // Predicated region
        $region17: #{tpu_custom_call.1} parent=11 // pred_check
          %p402 = pneg %p98
        $region18: #{tpu_custom_call.1} parent=11 // pred_check_branch
          %404 = sbr.rel (%p402) target = $region20
        $region19: #{tpu_custom_call.1} parent=11 // pred_region
          %s406 = ssub.s32 16, 16
          %407 = vsyncadd [#allocation6], %s406
          %s409 = sshll.u32 [#allocation7], 4
          %s410 = int_to_ptr.vmem [resolvable:$true] %s409
          %412 = dma.hbm_to_vmem [thread:$0]  %s2, 16, %s410, [#allocation6]
        $region20: #{tpu_custom_call.1} parent=11 // pred_fallthru
          _
        // Predicated region
        $region21: #{tpu_custom_call.1} parent=11 // pred_check
          %p413 = pneg %p119
        $region22: #{tpu_custom_call.1} parent=11 // pred_check_branch
          %415 = sbr.rel (%p413) target = $region24
        $region23: #{tpu_custom_call.1} parent=11 // pred_region
          %s417 = ssub.s32 2048, 2048
          %418 = vsyncadd [#allocation9], %s417
          %s419 = sshll.u32 [#allocation8], 4
          %s420 = int_to_ptr.vmem [resolvable:$true] %s419
          %425 = dma.hbm_to_vmem [thread:$0]  %s3, 2048, %s420, [#allocation9], 64, 64, 4
        $region24: #{tpu_custom_call.1} parent=11 // pred_fallthru
          _
        // Predicated region
        $region25: #{tpu_custom_call.1} parent=11 // pred_check
          %p426 = pneg %p140
        $region26: #{tpu_custom_call.1} parent=11 // pred_check_branch
          %428 = sbr.rel (%p426) target = $region28
        $region27: #{tpu_custom_call.1} parent=11 // pred_region
          _
        $region28: #{tpu_custom_call.1} parent=11 // pred_fallthru
          _
        // Predicated region
        $region29: #{tpu_custom_call.1} parent=11 // pred_check
          %p429 = pneg %p161
        $region30: #{tpu_custom_call.1} parent=11 // pred_check_branch
          %431 = sbr.rel (%p429) target = $region32
        $region31: #{tpu_custom_call.1} parent=11 // pred_region
          %s433 = ssub.s32 2048, 2048
          %434 = vsyncadd [#allocation9], %s433
          %s435 = sshll.u32 [#allocation10], 4
          %s436 = int_to_ptr.vmem [resolvable:$true] %s435
          %441 = dma.hbm_to_vmem [thread:$0]  %s5, 2048, %s436, [#allocation9], 64, 64, 4
        $region32: #{tpu_custom_call.1} parent=11 // pred_fallthru
          _
        // Predicated region
        $region33: #{tpu_custom_call.1} parent=11 // pred_check
          %p442 = pneg %p182
        $region34: #{tpu_custom_call.1} parent=11 // pred_check_branch
          %444 = sbr.rel (%p442) target = $region36
        $region35: #{tpu_custom_call.1} parent=11 // pred_region
          _
        $region36: #{tpu_custom_call.1} parent=11 // pred_fallthru
          _
        // Predicated region
        $region37: #{tpu_custom_call.1} parent=11 // pred_check
          %p445 = pneg %p203
        $region38: #{tpu_custom_call.1} parent=11 // pred_check_branch
          %447 = sbr.rel (%p445) target = $region40
        $region39: #{tpu_custom_call.1} parent=11 // pred_region
          _
        $region40: #{tpu_custom_call.1} parent=11 // pred_fallthru
          _
        // Predicated region
        $region41: #{tpu_custom_call.1} parent=11 // pred_check
          %p448 = pneg %p224
        $region42: #{tpu_custom_call.1} parent=11 // pred_check_branch
          %450 = sbr.rel (%p448) target = $region44
        $region43: #{tpu_custom_call.1} parent=11 // pred_region
          _
        $region44: #{tpu_custom_call.1} parent=11 // pred_fallthru
          _
        // Predicated region
        $region45: #{tpu_custom_call.1} parent=11 // pred_check
          %p451 = pneg %p245
        $region46: #{tpu_custom_call.1} parent=11 // pred_check_branch
          %453 = sbr.rel (%p451) target = $region48
        $region47: #{tpu_custom_call.1} parent=11 // pred_region
          %s455 = ssub.s32 2048, 2048
          %456 = vsyncadd [#allocation12], %s455
          %s457 = sshll.u32 [#allocation11], 4
          %s458 = int_to_ptr.vmem [resolvable:$true] %s457
          %463 = dma.hbm_to_vmem [thread:$0]  %s9, 2048, %s458, [#allocation12], 64, 64, 4
        $region48: #{tpu_custom_call.1} parent=11 // pred_fallthru
          _
        // Predicated region
        $region49: #{tpu_custom_call.1} parent=11 // pred_check
          %p464 = pneg %p266
        $region50: #{tpu_custom_call.1} parent=11 // pred_check_branch
          %466 = sbr.rel (%p464) target = $region52
        $region51: #{tpu_custom_call.1} parent=11 // pred_region
          _
        $region52: #{tpu_custom_call.1} parent=11 // pred_fallthru
          _
        // Predicated region
        $region53: #{tpu_custom_call.1} parent=11 // pred_check
          %p467 = pneg %p287
        $region54: #{tpu_custom_call.1} parent=11 // pred_check_branch
          %469 = sbr.rel (%p467) target = $region56
        $region55: #{tpu_custom_call.1} parent=11 // pred_region
          %s471 = ssub.s32 2048, 2048
          %472 = vsyncadd [#allocation12], %s471
          %s473 = sshll.u32 [#allocation13], 4
          %s474 = int_to_ptr.vmem [resolvable:$true] %s473
          %479 = dma.hbm_to_vmem [thread:$0]  %s11, 2048, %s474, [#allocation12], 64, 64, 4
        $region56: #{tpu_custom_call.1} parent=11 // pred_fallthru
          _
        // Predicated region
        $region57: #{tpu_custom_call.1} parent=11 // pred_check
          %p480 = pneg %p308
        $region58: #{tpu_custom_call.1} parent=11 // pred_check_branch
          %482 = sbr.rel (%p480) target = $region60
        $region59: #{tpu_custom_call.1} parent=11 // pred_region
          _
        $region60: #{tpu_custom_call.1} parent=11 // pred_fallthru
          _
        // Predicated region
        $region61: #{tpu_custom_call.1} parent=11 // pred_check
          %p483 = pneg %p329
        $region62: #{tpu_custom_call.1} parent=11 // pred_check_branch
          %485 = sbr.rel (%p483) target = $region64
        $region63: #{tpu_custom_call.1} parent=11 // pred_region
          _
        $region64: #{tpu_custom_call.1} parent=11 // pred_fallthru
          _
        // Predicated region
        $region65: #{tpu_custom_call.1} parent=11 // pred_check
          %p486 = pneg %p350
        $region66: #{tpu_custom_call.1} parent=11 // pred_check_branch
          %488 = sbr.rel (%p486) target = $region68
        $region67: #{tpu_custom_call.1} parent=11 // pred_region
          _
        $region68: #{tpu_custom_call.1} parent=11 // pred_fallthru
          _
      $region12: #{tpu_custom_call.1} parent=5 // pred_fallthru
        _
      %p489 = scmp.lt.s32.totalorder %s30, 2
      // Predicated region
      $region69: #{tpu_custom_call.1} parent=5 // pred_check
        %p490 = pneg %p489
      $region70: #{tpu_custom_call.1} parent=5 // pred_check_branch
        %492 = sbr.rel (%p490) target = $region72
      $region71: #{tpu_custom_call.1} parent=5 // pred_region
        // Predicated region
        $region73: #{tpu_custom_call.1} parent=71 // pred_check
          %p493 = pneg %p50
        $region74: #{tpu_custom_call.1} parent=71 // pred_check_branch
          %495 = sbr.rel (%p493) target = $region76
        $region75: #{tpu_custom_call.1} parent=71 // pred_region
          %s496 = sand.u32 %s40, 1
          %s497 = scalar_lea.sflag [#allocation3], %s496
          %s498 = sand.u32 %s40, 1
          %s499 = smul.addr %s498, 8
          %s500 = scalar_lea.vmem [#allocation2], %s499
          %s502 = ssub.s32 128, 128
          %503 = vsyncadd %s497, %s502
          %s504 = smul.addr %s30, 128
          %s505 = scalar_lea.hbm %s0, %s504
          %s507 = sshll.u32 %s500, 4
          %s508 = int_to_ptr.vmem [resolvable:$true] %s507
          %510 = dma.hbm_to_vmem [thread:$0]  %s505, 128, %s508, %s497
        $region76: #{tpu_custom_call.1} parent=71 // pred_fallthru
          _
      $region72: #{tpu_custom_call.1} parent=5 // pred_fallthru
        _
      %p511 = scmp.le.s32.totalorder 1, %s30
      %p512 = scmp.lt.s32.totalorder %s30, 3
      %p513 = pnand %p511, %p512
      %p514 = pneg %p513
      // Predicated region
      $region77: #{tpu_custom_call.1} parent=5 // pred_check
        _
      $region78: #{tpu_custom_call.1} parent=5 // pred_check_branch
        %516 = sbr.rel (%p513) target = $region80
      $region79: #{tpu_custom_call.1} parent=5 // pred_region
        %s517 = ssub.s32 %s30, 1
        %s518 = sand.u32 %s43, 1
        %s519 = scalar_lea.sflag [#allocation3], %s518
        %s520 = sand.u32 %s43, 1
        %s521 = smul.addr %s520, 8
        %s522 = scalar_lea.vmem [#allocation2], %s521
        // Predicated region
        $region81: #{tpu_custom_call.1} parent=79 // pred_check
          %p523 = pneg %p56
        $region82: #{tpu_custom_call.1} parent=79 // pred_check_branch
          %525 = sbr.rel (%p523) target = $region84
        $region83: #{tpu_custom_call.1} parent=79 // pred_region
          %526 = dma.done %s519, 128
        $region84: #{tpu_custom_call.1} parent=79 // pred_fallthru
          _
        // Predicated region
        $region85: #{tpu_custom_call.1} parent=79 // pred_check
          %p527 = pneg %p77
        $region86: #{tpu_custom_call.1} parent=79 // pred_check_branch
          %529 = sbr.rel (%p527) target = $region88
        $region87: #{tpu_custom_call.1} parent=79 // pred_region
          %530 = dma.done [#allocation6], 16
        $region88: #{tpu_custom_call.1} parent=79 // pred_fallthru
          _
        // Predicated region
        $region89: #{tpu_custom_call.1} parent=79 // pred_check
          %p531 = pneg %p98
        $region90: #{tpu_custom_call.1} parent=79 // pred_check_branch
          %533 = sbr.rel (%p531) target = $region92
        $region91: #{tpu_custom_call.1} parent=79 // pred_region
          %534 = dma.done [#allocation6], 16
        $region92: #{tpu_custom_call.1} parent=79 // pred_fallthru
          _
        // Predicated region
        $region93: #{tpu_custom_call.1} parent=79 // pred_check
          %p535 = pneg %p119
        $region94: #{tpu_custom_call.1} parent=79 // pred_check_branch
          %537 = sbr.rel (%p535) target = $region96
        $region95: #{tpu_custom_call.1} parent=79 // pred_region
          %538 = dma.done [#allocation9], 2048
        $region96: #{tpu_custom_call.1} parent=79 // pred_fallthru
          _
        // Predicated region
        $region97: #{tpu_custom_call.1} parent=79 // pred_check
          %p539 = pneg %p161
        $region98: #{tpu_custom_call.1} parent=79 // pred_check_branch
          %541 = sbr.rel (%p539) target = $region100
        $region99: #{tpu_custom_call.1} parent=79 // pred_region
          %542 = dma.done [#allocation9], 2048
        $region100: #{tpu_custom_call.1} parent=79 // pred_fallthru
          _
        // Predicated region
        $region101: #{tpu_custom_call.1} parent=79 // pred_check
          %p543 = pneg %p245
        $region102: #{tpu_custom_call.1} parent=79 // pred_check_branch
          %545 = sbr.rel (%p543) target = $region104
        $region103: #{tpu_custom_call.1} parent=79 // pred_region
          %546 = dma.done [#allocation12], 2048
        $region104: #{tpu_custom_call.1} parent=79 // pred_fallthru
          _
        // Predicated region
        $region105: #{tpu_custom_call.1} parent=79 // pred_check
          %p547 = pneg %p287
        $region106: #{tpu_custom_call.1} parent=79 // pred_check_branch
          %549 = sbr.rel (%p547) target = $region108
        $region107: #{tpu_custom_call.1} parent=79 // pred_region
          %550 = dma.done [#allocation12], 2048
        $region108: #{tpu_custom_call.1} parent=79 // pred_fallthru
          _
        %s551 = sand.u32 %s43, 1
        %s552 = scalar_lea.sflag [#allocation3], %s551
        %s553 = sand.u32 %s43, 1
        %s554 = smul.addr %s553, 8
        %s555 = scalar_lea.vmem [#allocation2], %s554
        %p556 = pneg %p56
        %p557 = pneg %p53
        %p558 = pneg %p77
        %p559 = pneg %p74
        %p560 = pneg %p98
        %p561 = pneg %p95
        %p562 = pneg %p119
        %p563 = pneg %p116
        %p564 = pneg %p140
        %p565 = pneg %p137
        %p566 = pneg %p161
        %p567 = pneg %p158
        %p568 = pneg %p182
        %p569 = pneg %p179
        %p570 = pneg %p203
        %p571 = pneg %p200
        %p572 = pneg %p224
        %p573 = pneg %p221
        %p574 = pneg %p245
        %p575 = pneg %p242
        %p576 = pneg %p266
        %p577 = pneg %p263
        %p578 = pneg %p287
        %p579 = pneg %p284
        %p580 = pneg %p308
        %p581 = pneg %p305
        %p582 = pneg %p329
        %p583 = pneg %p326
        %p584 = pneg %p350
        %p585 = pneg %p347
        %p586 = pneg %p376
        %p587 = pneg %p373
        %s588 = sand.u32 %s363, 1
        %s589 = scalar_lea.sflag [#allocation4], %s588
        %s590 = sand.u32 %s363, 1
        %s591 = smul.addr %s590, 8
        %s592 = scalar_lea.vmem [#allocation14], %s591
        %v594 = vld [vmem:[%s522] sm:$0xff]
        %v595 = vld [vmem:[#allocation5] sm:$0x1]
        %v596 = vld [vmem:[#allocation7] sm:$0x1]
        %597 = vadd.xlane.f32.xlu0 %v594
        %v598 = vpop.xlane.xlu0 %597
        %v599 = vmul.f32 %v594, %v594
        %600 = vadd.xlane.f32.xlu0 %v599
        %v601 = vpop.xlane.xlu0 %600
        %v602 = vmul.f32 %v598, 0.03125
        %v603 = vmul.f32 %v601, 0.03125
        %v604 = vmul.f32 %v602, %v602
        %v605 = vsub.f32 %v603, %v604
        %v606 = vmax.f32 %v605, 0.0
        %v607 = vsub.f32 %v594, %v602
        %v608 = vadd.f32 %v606, 1e-12
        %v609 = vrsqrt.pop %v608
        %v610 = vmul.f32 %v607, %v609
        %v612 = vlaneseq
        %v613 = vshrl.u32 %v612, 7
        %v614 = vsub.s32 0, %v613
        %v615 = vrot.slane %v595, %v614
        %v617 = vmul.f32 %v610, %v615
        %v619 = vlaneseq
        %v620 = vshrl.u32 %v619, 7
        %v621 = vsub.s32 0, %v620
        %v622 = vrot.slane %v596, %v621
        %v624 = vadd.f32 %v617, %v622
        %v625 = vpack.c.bf16 %v624, %v624
        %v626 = vld [vmem:[#allocation8] sm:$0xf]
        %v627 = vld [vmem:[#allocation8 + $0x4] sm:$0xf]
        %v628 = vld [vmem:[#allocation8 + $0x8] sm:$0xf]
        %v629 = vld [vmem:[#allocation8 + $0xc] sm:$0xf]
        %v630 = vld [vmem:[#allocation8 + $0x10] sm:$0xf]
        %v631 = vld [vmem:[#allocation8 + $0x14] sm:$0xf]
        %v632 = vld [vmem:[#allocation8 + $0x18] sm:$0xf]
        %v633 = vld [vmem:[#allocation8 + $0x1c] sm:$0xf]
        %v634 = vld [vmem:[#allocation8 + $0x20] sm:$0xf]
        %v635 = vld [vmem:[#allocation8 + $0x24] sm:$0xf]
        %v636 = vld [vmem:[#allocation8 + $0x28] sm:$0xf]
        %v637 = vld [vmem:[#allocation8 + $0x2c] sm:$0xf]
        %v638 = vld [vmem:[#allocation8 + $0x30] sm:$0xf]
        %v639 = vld [vmem:[#allocation8 + $0x34] sm:$0xf]
        %v640 = vld [vmem:[#allocation8 + $0x38] sm:$0xf]
        %v641 = vld [vmem:[#allocation8 + $0x3c] sm:$0xf]
        %v642 = vld [vmem:[%s4] sm:$0x1]
        %v644 = vlaneseq
        %v645 = vshrl.u32 %v644, 7
        %v646 = vsub.s32 0, %v645
        %v647 = vrot.slane %v642, %v646
        %v665 = vunpack.c.l.b16 %v626
        %v666 = vunpack.c.l.b16 %v627
        %v667 = vunpack.c.l.b16 %v628
        %v668 = vunpack.c.l.b16 %v629
        %v669 = vunpack.c.l.b16 %v630
        %v670 = vunpack.c.l.b16 %v631
        %v671 = vunpack.c.l.b16 %v632
        %v672 = vunpack.c.l.b16 %v633
        %v673 = vunpack.c.l.b16 %v634
        %v674 = vunpack.c.l.b16 %v635
        %v675 = vunpack.c.l.b16 %v636
        %v676 = vunpack.c.l.b16 %v637
        %v677 = vunpack.c.l.b16 %v638
        %v678 = vunpack.c.l.b16 %v639
        %v679 = vunpack.c.l.b16 %v640
        %v680 = vunpack.c.l.b16 %v641
        %v681 = vpack.c.b16 %v666, %v665
        %v682 = vpack.c.b16 %v668, %v667
        %v683 = vpack.c.b16 %v670, %v669
        %v684 = vpack.c.b16 %v672, %v671
        %v685 = vpack.c.b16 %v674, %v673
        %v686 = vpack.c.b16 %v676, %v675
        %v687 = vpack.c.b16 %v678, %v677
        %v688 = vpack.c.b16 %v680, %v679
        %697 = vmatprep.subr.bf16.mxu0 0
        %698 = vmatpush1.bf16.msra.mxu0 %v688
        %699 = vmatprep.subr.bf16.mxu0 0
        %700 = vmatpush1.bf16.msra.mxu0 %v687
        %701 = vmatprep.subr.bf16.mxu0 0
        %702 = vmatpush1.bf16.msra.mxu0 %v686
        %703 = vmatprep.subr.bf16.mxu0 0
        %704 = vmatpush1.bf16.msra.mxu0 %v685
        %705 = vmatprep.subr.bf16.mxu0 0
        %706 = vmatpush1.bf16.msra.mxu0 %v684
        %707 = vmatprep.subr.bf16.mxu0 0
        %708 = vmatpush1.bf16.msra.mxu0 %v683
        %709 = vmatprep.subr.bf16.mxu0 0
        %710 = vmatpush1.bf16.msra.mxu0 %v682
        %711 = vmatprep.subr.bf16.mxu0 0
        %712 = vmatpush1.bf16.msra.mxu0 %v681
        %713 = vmatprep.subr.bf16.mxu0 0
        %714 = vmatpush2.bf16.msra.mxu0 0
        %715 = vmatprep.subr.bf16.mxu0 0
        %716 = vmatpush2.bf16.msra.mxu0 0
        %717 = vmatprep.subr.bf16.mxu0 0
        %718 = vmatpush2.bf16.msra.mxu0 0
        %719 = vmatprep.subr.bf16.mxu0 0
        %720 = vmatpush2.bf16.msra.mxu0 0
        %721 = vmatprep.subr.bf16.mxu0 0
        %722 = vmatpush2.bf16.msra.mxu0 0
        %723 = vmatprep.subr.bf16.mxu0 0
        %724 = vmatpush2.bf16.msra.mxu0 0
        %725 = vmatprep.subr.bf16.mxu0 0
        %726 = vmatpush2.bf16.msra.mxu0 0
        %727 = vmatprep.subr.bf16.mxu0 0
        %728 = vmatpush2.bf16.msra.mxu0 0
        %729 = vmatprep.mubr.bf16.mxu0 0
        %730 = vmatmul.mubr.bf16.gmra.mxu0 %v625
        %v731 = vpop.f32.mrf.mxu0
        %v732 = vadd.f32 %v647, %v731
        %v733 = vpop.f32.mrf.mxu0
        %v734 = vpop.f32.mrf.mxu0
        %v735 = vpop.f32.mrf.mxu0
        %736 = vdwg.mxu0
        %738 = vrot.lane.b32.xlu0 %v732, 120
        %v739 = vpop.permute.xlu0 %738
        %741 = vrot.lane.b32.xlu0 %v732, 112
        %v742 = vpop.permute.xlu0 %741
        %744 = vrot.lane.b32.xlu0 %v732, 104
        %v745 = vpop.permute.xlu0 %744
        %v747 = vpack.c.bf16 %v732, %v732
        %v748 = vpack.c.bf16 %v739, %v739
        %v749 = vpack.c.bf16 %v742, %v742
        %v750 = vpack.c.bf16 %v745, %v745
        %752 = vrot.lane.b32.xlu0 %v747, 96
        %v753 = vpop.permute.xlu0 %752
        %vm754 = vcmask 64512
        %v756 = vsel %vm754, %v747, 0
        %v759 = vsel %vm754, %v753, 0
        %761 = vmatprep.subr.bf16.mxu0 0
        %762 = vmatpush1.bf16.xpose.msra.mxu0 0
        %763 = vmatprep.subr.bf16.mxu0 0
        %764 = vmatpush1.bf16.xpose.msra.mxu0 0
        %765 = vmatprep.subr.bf16.mxu0 0
        %766 = vmatpush1.bf16.xpose.msra.mxu0 0
        %767 = vmatprep.subr.bf16.mxu0 0
        %768 = vmatpush1.bf16.xpose.msra.mxu0 0
        %769 = vmatprep.subr.bf16.mxu0 0
        %770 = vmatpush1.bf16.xpose.msra.mxu0 0
        %771 = vmatprep.subr.bf16.mxu0 0
        %772 = vmatpush1.bf16.xpose.msra.mxu0 0
        %773 = vmatprep.subr.bf16.mxu0 0
        %774 = vmatpush1.bf16.xpose.msra.mxu0 0
        %775 = vmatprep.subr.bf16.mxu0 0
        %776 = vmatpush1.bf16.xpose.msra.mxu0 %v759
        %777 = vmatprep.subr.bf16.mxu0 0
        %778 = vmatpush2.bf16.xpose.msra.mxu0 0
        %779 = vmatprep.subr.bf16.mxu0 0
        %780 = vmatpush2.bf16.xpose.msra.mxu0 0
        %781 = vmatprep.subr.bf16.mxu0 0
        %782 = vmatpush2.bf16.xpose.msra.mxu0 0
        %783 = vmatprep.subr.bf16.mxu0 0
        %784 = vmatpush2.bf16.xpose.msra.mxu0 0
        %785 = vmatprep.subr.bf16.mxu0 0
        %786 = vmatpush2.bf16.xpose.msra.mxu0 0
        %787 = vmatprep.subr.bf16.mxu0 0
        %788 = vmatpush2.bf16.xpose.msra.mxu0 0
        %789 = vmatprep.subr.bf16.mxu0 0
        %790 = vmatpush2.bf16.xpose.msra.mxu0 0
        %791 = vmatprep.subr.bf16.mxu0 0
        %792 = vmatpush2.bf16.xpose.msra.mxu0 0
        %793 = vmatprep.mubr.bf16.mxu0 0
        %794 = vmatmul.mubr.bf16.gmra.mxu0 %v756
        %v795 = vpop.f32.mrf.mxu0
        %v796 = vadd.f32 0.0, %v795
        %v797 = vpop.f32.mrf.mxu0
        %v798 = vpop.f32.mrf.mxu0
        %v799 = vpop.f32.mrf.mxu0
        %800 = vdwg.mxu0
        %802 = vrot.lane.b32.xlu0 %v748, 96
        %v803 = vpop.permute.xlu0 %802
        %v805 = vsel %vm754, %v748, 0
        %v808 = vsel %vm754, %v803, 0
        %810 = vmatprep.subr.bf16.mxu0 0
        %811 = vmatpush1.bf16.xpose.msra.mxu0 0
        %812 = vmatprep.subr.bf16.mxu0 0
        %813 = vmatpush1.bf16.xpose.msra.mxu0 0
        %814 = vmatprep.subr.bf16.mxu0 0
        %815 = vmatpush1.bf16.xpose.msra.mxu0 0
        %816 = vmatprep.subr.bf16.mxu0 0
        %817 = vmatpush1.bf16.xpose.msra.mxu0 0
        %818 = vmatprep.subr.bf16.mxu0 0
        %819 = vmatpush1.bf16.xpose.msra.mxu0 0
        %820 = vmatprep.subr.bf16.mxu0 0
        %821 = vmatpush1.bf16.xpose.msra.mxu0 0
        %822 = vmatprep.subr.bf16.mxu0 0
        %823 = vmatpush1.bf16.xpose.msra.mxu0 0
        %824 = vmatprep.subr.bf16.mxu0 0
        %825 = vmatpush1.bf16.xpose.msra.mxu0 %v808
        %826 = vmatprep.subr.bf16.mxu0 0
        %827 = vmatpush2.bf16.xpose.msra.mxu0 0
        %828 = vmatprep.subr.bf16.mxu0 0
        %829 = vmatpush2.bf16.xpose.msra.mxu0 0
        %830 = vmatprep.subr.bf16.mxu0 0
        %831 = vmatpush2.bf16.xpose.msra.mxu0 0
        %832 = vmatprep.subr.bf16.mxu0 0
        %833 = vmatpush2.bf16.xpose.msra.mxu0 0
        %834 = vmatprep.subr.bf16.mxu0 0
        %835 = vmatpush2.bf16.xpose.msra.mxu0 0
        %836 = vmatprep.subr.bf16.mxu0 0
        %837 = vmatpush2.bf16.xpose.msra.mxu0 0
        %838 = vmatprep.subr.bf16.mxu0 0
        %839 = vmatpush2.bf16.xpose.msra.mxu0 0
        %840 = vmatprep.subr.bf16.mxu0 0
        %841 = vmatpush2.bf16.xpose.msra.mxu0 0
        %842 = vmatprep.mubr.bf16.mxu0 0
        %843 = vmatmul.mubr.bf16.gmra.mxu0 %v805
        %v844 = vpop.f32.mrf.mxu0
        %v845 = vadd.f32 0.0, %v844
        %v846 = vpop.f32.mrf.mxu0
        %v847 = vpop.f32.mrf.mxu0
        %v848 = vpop.f32.mrf.mxu0
        %849 = vdwg.mxu0
        %851 = vrot.lane.b32.xlu0 %v749, 96
        %v852 = vpop.permute.xlu0 %851
        %v854 = vsel %vm754, %v749, 0
        %v857 = vsel %vm754, %v852, 0
        %859 = vmatprep.subr.bf16.mxu0 0
        %860 = vmatpush1.bf16.xpose.msra.mxu0 0
        %861 = vmatprep.subr.bf16.mxu0 0
        %862 = vmatpush1.bf16.xpose.msra.mxu0 0
        %863 = vmatprep.subr.bf16.mxu0 0
        %864 = vmatpush1.bf16.xpose.msra.mxu0 0
        %865 = vmatprep.subr.bf16.mxu0 0
        %866 = vmatpush1.bf16.xpose.msra.mxu0 0
        %867 = vmatprep.subr.bf16.mxu0 0
        %868 = vmatpush1.bf16.xpose.msra.mxu0 0
        %869 = vmatprep.subr.bf16.mxu0 0
        %870 = vmatpush1.bf16.xpose.msra.mxu0 0
        %871 = vmatprep.subr.bf16.mxu0 0
        %872 = vmatpush1.bf16.xpose.msra.mxu0 0
        %873 = vmatprep.subr.bf16.mxu0 0
        %874 = vmatpush1.bf16.xpose.msra.mxu0 %v857
        %875 = vmatprep.subr.bf16.mxu0 0
        %876 = vmatpush2.bf16.xpose.msra.mxu0 0
        %877 = vmatprep.subr.bf16.mxu0 0
        %878 = vmatpush2.bf16.xpose.msra.mxu0 0
        %879 = vmatprep.subr.bf16.mxu0 0
        %880 = vmatpush2.bf16.xpose.msra.mxu0 0
        %881 = vmatprep.subr.bf16.mxu0 0
        %882 = vmatpush2.bf16.xpose.msra.mxu0 0
        %883 = vmatprep.subr.bf16.mxu0 0
        %884 = vmatpush2.bf16.xpose.msra.mxu0 0
        %885 = vmatprep.subr.bf16.mxu0 0
        %886 = vmatpush2.bf16.xpose.msra.mxu0 0
        %887 = vmatprep.subr.bf16.mxu0 0
        %888 = vmatpush2.bf16.xpose.msra.mxu0 0
        %889 = vmatprep.subr.bf16.mxu0 0
        %890 = vmatpush2.bf16.xpose.msra.mxu0 0
        %891 = vmatprep.mubr.bf16.mxu0 0
        %892 = vmatmul.mubr.bf16.gmra.mxu0 %v854
        %v893 = vpop.f32.mrf.mxu0
        %v894 = vadd.f32 0.0, %v893
        %v895 = vpop.f32.mrf.mxu0
        %v896 = vpop.f32.mrf.mxu0
        %v897 = vpop.f32.mrf.mxu0
        %898 = vdwg.mxu0
        %900 = vrot.lane.b32.xlu0 %v750, 96
        %v901 = vpop.permute.xlu0 %900
        %v903 = vsel %vm754, %v750, 0
        %v906 = vsel %vm754, %v901, 0
        %908 = vmatprep.subr.bf16.mxu0 0
        %909 = vmatpush1.bf16.xpose.msra.mxu0 0
        %910 = vmatprep.subr.bf16.mxu0 0
        %911 = vmatpush1.bf16.xpose.msra.mxu0 0
        %912 = vmatprep.subr.bf16.mxu0 0
        %913 = vmatpush1.bf16.xpose.msra.mxu0 0
        %914 = vmatprep.subr.bf16.mxu0 0
        %915 = vmatpush1.bf16.xpose.msra.mxu0 0
        %916 = vmatprep.subr.bf16.mxu0 0
        %917 = vmatpush1.bf16.xpose.msra.mxu0 0
        %918 = vmatprep.subr.bf16.mxu0 0
        %919 = vmatpush1.bf16.xpose.msra.mxu0 0
        %920 = vmatprep.subr.bf16.mxu0 0
        %921 = vmatpush1.bf16.xpose.msra.mxu0 0
        %922 = vmatprep.subr.bf16.mxu0 0
        %923 = vmatpush1.bf16.xpose.msra.mxu0 %v906
        %924 = vmatprep.subr.bf16.mxu0 0
        %925 = vmatpush2.bf16.xpose.msra.mxu0 0
        %926 = vmatprep.subr.bf16.mxu0 0
        %927 = vmatpush2.bf16.xpose.msra.mxu0 0
        %928 = vmatprep.subr.bf16.mxu0 0
        %929 = vmatpush2.bf16.xpose.msra.mxu0 0
        %930 = vmatprep.subr.bf16.mxu0 0
        %931 = vmatpush2.bf16.xpose.msra.mxu0 0
        %932 = vmatprep.subr.bf16.mxu0 0
        %933 = vmatpush2.bf16.xpose.msra.mxu0 0
        %934 = vmatprep.subr.bf16.mxu0 0
        %935 = vmatpush2.bf16.xpose.msra.mxu0 0
        %936 = vmatprep.subr.bf16.mxu0 0
        %937 = vmatpush2.bf16.xpose.msra.mxu0 0
        %938 = vmatprep.subr.bf16.mxu0 0
        %939 = vmatpush2.bf16.xpose.msra.mxu0 0
        %940 = vmatprep.mubr.bf16.mxu0 0
        %941 = vmatmul.mubr.bf16.gmra.mxu0 %v903
        %v942 = vpop.f32.mrf.mxu0
        %v943 = vadd.f32 0.0, %v942
        %v944 = vpop.f32.mrf.mxu0
        %v945 = vpop.f32.mrf.mxu0
        %v946 = vpop.f32.mrf.mxu0
        %947 = vdwg.mxu0
        %v948 = vsel %vm754, %v796, -inf
        %949 = vmax.xlane.f32.xlu0 %v948
        %v950 = vpop.xlane.xlu0 %949
        %v951 = vsel %vm754, %v845, -inf
        %952 = vmax.xlane.f32.xlu0 %v951
        %v953 = vpop.xlane.xlu0 %952
        %v954 = vsel %vm754, %v894, -inf
        %955 = vmax.xlane.f32.xlu0 %v954
        %v956 = vpop.xlane.xlu0 %955
        %v957 = vsel %vm754, %v943, -inf
        %958 = vmax.xlane.f32.xlu0 %v957
        %v959 = vpop.xlane.xlu0 %958
        %v960 = vsub.f32 %v796, %v950
        %v961 = vsub.f32 %v845, %v953
        %v962 = vsub.f32 %v894, %v956
        %v963 = vsub.f32 %v943, %v959
        %v964 = vmul.f32 %v960, 1.442695
        %v965 = vpow.pop %v964
        %v966 = vmul.f32 %v961, 1.442695
        %v967 = vpow.pop %v966
        %v968 = vmul.f32 %v962, 1.442695
        %v969 = vpow.pop %v968
        %v970 = vmul.f32 %v963, 1.442695
        %v971 = vpow.pop %v970
        %v972 = vsel %vm754, %v965, 0.0
        %973 = vadd.xlane.f32.xlu0 %v972
        %v974 = vpop.xlane.xlu0 %973
        %v975 = vsel %vm754, %v967, 0.0
        %976 = vadd.xlane.f32.xlu0 %v975
        %v977 = vpop.xlane.xlu0 %976
        %v978 = vsel %vm754, %v969, 0.0
        %979 = vadd.xlane.f32.xlu0 %v978
        %v980 = vpop.xlane.xlu0 %979
        %v981 = vsel %vm754, %v971, 0.0
        %982 = vadd.xlane.f32.xlu0 %v981
        %v983 = vpop.xlane.xlu0 %982
        %v984 = vrcp.pop %v974
        %v985 = vrcp.pop %v977
        %v986 = vrcp.pop %v980
        %v987 = vrcp.pop %v983
        %v988 = vmul.f32 %v965, %v984
        %v989 = vmul.f32 %v967, %v985
        %v990 = vmul.f32 %v969, %v986
        %v991 = vmul.f32 %v971, %v987
        %v992 = vpack.c.bf16 %v988, %v988
        %v993 = vpack.c.bf16 %v989, %v989
        %v994 = vpack.c.bf16 %v990, %v990
        %v995 = vpack.c.bf16 %v991, %v991
        %996 = vrot.lane.b32.xlu0 %v747, 64
        %v997 = vpop.permute.xlu0 %996
        %v999 = vsel %vm754, %v992, 0
        %vm1001 = vcmask 1043456
        %v1003 = vsel %vm1001, %v997, 0
        %1005 = vmatprep.subr.bf16.mxu0 0
        %1006 = vmatpush1.bf16.msra.mxu0 0
        %1007 = vmatprep.subr.bf16.mxu0 0
        %1008 = vmatpush1.bf16.msra.mxu0 0
        %1009 = vmatprep.subr.bf16.mxu0 0
        %1010 = vmatpush1.bf16.msra.mxu0 0
        %1011 = vmatprep.subr.bf16.mxu0 0
        %1012 = vmatpush1.bf16.msra.mxu0 0
        %1013 = vmatprep.subr.bf16.mxu0 0
        %1014 = vmatpush1.bf16.msra.mxu0 0
        %1015 = vmatprep.subr.bf16.mxu0 0
        %1016 = vmatpush1.bf16.msra.mxu0 0
        %1017 = vmatprep.subr.bf16.mxu0 0
        %1018 = vmatpush1.bf16.msra.mxu0 0
        %1019 = vmatprep.subr.bf16.mxu0 0
        %1020 = vmatpush1.bf16.msra.mxu0 %v1003
        %1021 = vmatprep.subr.bf16.mxu0 0
        %1022 = vmatpush2.bf16.msra.mxu0 0
        %1023 = vmatprep.subr.bf16.mxu0 0
        %1024 = vmatpush2.bf16.msra.mxu0 0
        %1025 = vmatprep.subr.bf16.mxu0 0
        %1026 = vmatpush2.bf16.msra.mxu0 0
        %1027 = vmatprep.subr.bf16.mxu0 0
        %1028 = vmatpush2.bf16.msra.mxu0 0
        %1029 = vmatprep.subr.bf16.mxu0 0
        %1030 = vmatpush2.bf16.msra.mxu0 0
        %1031 = vmatprep.subr.bf16.mxu0 0
        %1032 = vmatpush2.bf16.msra.mxu0 0
        %1033 = vmatprep.subr.bf16.mxu0 0
        %1034 = vmatpush2.bf16.msra.mxu0 0
        %1035 = vmatprep.subr.bf16.mxu0 0
        %1036 = vmatpush2.bf16.msra.mxu0 0
        %1037 = vmatprep.mubr.bf16.mxu0 0
        %1038 = vmatmul.mubr.bf16.gmra.mxu0 %v999
        %v1039 = vpop.f32.mrf.mxu0
        %v1040 = vadd.f32 0.0, %v1039
        %v1041 = vpop.f32.mrf.mxu0
        %v1042 = vpop.f32.mrf.mxu0
        %v1043 = vpop.f32.mrf.mxu0
        %1044 = vdwg.mxu0
        %1045 = vrot.lane.b32.xlu0 %v748, 64
        %v1046 = vpop.permute.xlu0 %1045
        %v1048 = vsel %vm754, %v993, 0
        %v1051 = vsel %vm1001, %v1046, 0
        %1053 = vmatprep.subr.bf16.mxu0 0
        %1054 = vmatpush1.bf16.msra.mxu0 0
        %1055 = vmatprep.subr.bf16.mxu0 0
        %1056 = vmatpush1.bf16.msra.mxu0 0
        %1057 = vmatprep.subr.bf16.mxu0 0
        %1058 = vmatpush1.bf16.msra.mxu0 0
        %1059 = vmatprep.subr.bf16.mxu0 0
        %1060 = vmatpush1.bf16.msra.mxu0 0
        %1061 = vmatprep.subr.bf16.mxu0 0
        %1062 = vmatpush1.bf16.msra.mxu0 0
        %1063 = vmatprep.subr.bf16.mxu0 0
        %1064 = vmatpush1.bf16.msra.mxu0 0
        %1065 = vmatprep.subr.bf16.mxu0 0
        %1066 = vmatpush1.bf16.msra.mxu0 0
        %1067 = vmatprep.subr.bf16.mxu0 0
        %1068 = vmatpush1.bf16.msra.mxu0 %v1051
        %1069 = vmatprep.subr.bf16.mxu0 0
        %1070 = vmatpush2.bf16.msra.mxu0 0
        %1071 = vmatprep.subr.bf16.mxu0 0
        %1072 = vmatpush2.bf16.msra.mxu0 0
        %1073 = vmatprep.subr.bf16.mxu0 0
        %1074 = vmatpush2.bf16.msra.mxu0 0
        %1075 = vmatprep.subr.bf16.mxu0 0
        %1076 = vmatpush2.bf16.msra.mxu0 0
        %1077 = vmatprep.subr.bf16.mxu0 0
        %1078 = vmatpush2.bf16.msra.mxu0 0
        %1079 = vmatprep.subr.bf16.mxu0 0
        %1080 = vmatpush2.bf16.msra.mxu0 0
        %1081 = vmatprep.subr.bf16.mxu0 0
        %1082 = vmatpush2.bf16.msra.mxu0 0
        %1083 = vmatprep.subr.bf16.mxu0 0
        %1084 = vmatpush2.bf16.msra.mxu0 0
        %1085 = vmatprep.mubr.bf16.mxu0 0
        %1086 = vmatmul.mubr.bf16.gmra.mxu0 %v1048
        %v1087 = vpop.f32.mrf.mxu0
        %v1088 = vadd.f32 0.0, %v1087
        %v1089 = vpop.f32.mrf.mxu0
        %v1090 = vpop.f32.mrf.mxu0
        %v1091 = vpop.f32.mrf.mxu0
        %1092 = vdwg.mxu0
        %1093 = vrot.lane.b32.xlu0 %v749, 64
        %v1094 = vpop.permute.xlu0 %1093
        %v1096 = vsel %vm754, %v994, 0
        %v1099 = vsel %vm1001, %v1094, 0
        %1101 = vmatprep.subr.bf16.mxu0 0
        %1102 = vmatpush1.bf16.msra.mxu0 0
        %1103 = vmatprep.subr.bf16.mxu0 0
        %1104 = vmatpush1.bf16.msra.mxu0 0
        %1105 = vmatprep.subr.bf16.mxu0 0
        %1106 = vmatpush1.bf16.msra.mxu0 0
        %1107 = vmatprep.subr.bf16.mxu0 0
        %1108 = vmatpush1.bf16.msra.mxu0 0
        %1109 = vmatprep.subr.bf16.mxu0 0
        %1110 = vmatpush1.bf16.msra.mxu0 0
        %1111 = vmatprep.subr.bf16.mxu0 0
        %1112 = vmatpush1.bf16.msra.mxu0 0
        %1113 = vmatprep.subr.bf16.mxu0 0
        %1114 = vmatpush1.bf16.msra.mxu0 0
        %1115 = vmatprep.subr.bf16.mxu0 0
        %1116 = vmatpush1.bf16.msra.mxu0 %v1099
        %1117 = vmatprep.subr.bf16.mxu0 0
        %1118 = vmatpush2.bf16.msra.mxu0 0
        %1119 = vmatprep.subr.bf16.mxu0 0
        %1120 = vmatpush2.bf16.msra.mxu0 0
        %1121 = vmatprep.subr.bf16.mxu0 0
        %1122 = vmatpush2.bf16.msra.mxu0 0
        %1123 = vmatprep.subr.bf16.mxu0 0
        %1124 = vmatpush2.bf16.msra.mxu0 0
        %1125 = vmatprep.subr.bf16.mxu0 0
        %1126 = vmatpush2.bf16.msra.mxu0 0
        %1127 = vmatprep.subr.bf16.mxu0 0
        %1128 = vmatpush2.bf16.msra.mxu0 0
        %1129 = vmatprep.subr.bf16.mxu0 0
        %1130 = vmatpush2.bf16.msra.mxu0 0
        %1131 = vmatprep.subr.bf16.mxu0 0
        %1132 = vmatpush2.bf16.msra.mxu0 0
        %1133 = vmatprep.mubr.bf16.mxu0 0
        %1134 = vmatmul.mubr.bf16.gmra.mxu0 %v1096
        %v1135 = vpop.f32.mrf.mxu0
        %v1136 = vadd.f32 0.0, %v1135
        %v1137 = vpop.f32.mrf.mxu0
        %v1138 = vpop.f32.mrf.mxu0
        %v1139 = vpop.f32.mrf.mxu0
        %1140 = vdwg.mxu0
        %1141 = vrot.lane.b32.xlu0 %v750, 64
        %v1142 = vpop.permute.xlu0 %1141
        %v1144 = vsel %vm754, %v995, 0
        %v1147 = vsel %vm1001, %v1142, 0
        %1149 = vmatprep.subr.bf16.mxu0 0
        %1150 = vmatpush1.bf16.msra.mxu0 0
        %1151 = vmatprep.subr.bf16.mxu0 0
        %1152 = vmatpush1.bf16.msra.mxu0 0
        %1153 = vmatprep.subr.bf16.mxu0 0
        %1154 = vmatpush1.bf16.msra.mxu0 0
        %1155 = vmatprep.subr.bf16.mxu0 0
        %1156 = vmatpush1.bf16.msra.mxu0 0
        %1157 = vmatprep.subr.bf16.mxu0 0
        %1158 = vmatpush1.bf16.msra.mxu0 0
        %1159 = vmatprep.subr.bf16.mxu0 0
        %1160 = vmatpush1.bf16.msra.mxu0 0
        %1161 = vmatprep.subr.bf16.mxu0 0
        %1162 = vmatpush1.bf16.msra.mxu0 0
        %1163 = vmatprep.subr.bf16.mxu0 0
        %1164 = vmatpush1.bf16.msra.mxu0 %v1147
        %1165 = vmatprep.subr.bf16.mxu0 0
        %1166 = vmatpush2.bf16.msra.mxu0 0
        %1167 = vmatprep.subr.bf16.mxu0 0
        %1168 = vmatpush2.bf16.msra.mxu0 0
        %1169 = vmatprep.subr.bf16.mxu0 0
        %1170 = vmatpush2.bf16.msra.mxu0 0
        %1171 = vmatprep.subr.bf16.mxu0 0
        %1172 = vmatpush2.bf16.msra.mxu0 0
        %1173 = vmatprep.subr.bf16.mxu0 0
        %1174 = vmatpush2.bf16.msra.mxu0 0
        %1175 = vmatprep.subr.bf16.mxu0 0
        %1176 = vmatpush2.bf16.msra.mxu0 0
        %1177 = vmatprep.subr.bf16.mxu0 0
        %1178 = vmatpush2.bf16.msra.mxu0 0
        %1179 = vmatprep.subr.bf16.mxu0 0
        %1180 = vmatpush2.bf16.msra.mxu0 0
        %1181 = vmatprep.mubr.bf16.mxu0 0
        %1182 = vmatmul.mubr.bf16.gmra.mxu0 %v1144
        %v1183 = vpop.f32.mrf.mxu0
        %v1184 = vadd.f32 0.0, %v1183
        %v1185 = vpop.f32.mrf.mxu0
        %v1186 = vpop.f32.mrf.mxu0
        %v1187 = vpop.f32.mrf.mxu0
        %1188 = vdwg.mxu0
        %1190 = vrot.lane.b32.xlu0 %v1088, 8
        %v1191 = vpop.permute.xlu0 %1190
        %1194 = vrot.lane.b32.xlu0 %v1136, 16
        %v1195 = vpop.permute.xlu0 %1194
        %1198 = vrot.lane.b32.xlu0 %v1184, 24
        %v1199 = vpop.permute.xlu0 %1198
        %v1201 = vsel %vm754, %v1040, %v1191
        %vm1202 = vcmask 130048
        %v1203 = vsel %vm1202, %v1201, %v1195
        %vm1204 = vcmask 195584
        %v1205 = vsel %vm1204, %v1203, %v1199
        %vm1206 = vcmask 261120
        %v1207 = vsel %vm1206, %v1205, 0.0
        %v1208 = vpack.c.bf16 %v1207, %v1207
        %v1209 = vld [vmem:[#allocation10] sm:$0xf]
        %v1210 = vld [vmem:[#allocation10 + $0x4] sm:$0xf]
        %v1211 = vld [vmem:[#allocation10 + $0x8] sm:$0xf]
        %v1212 = vld [vmem:[#allocation10 + $0xc] sm:$0xf]
        %v1213 = vld [vmem:[#allocation10 + $0x10] sm:$0xf]
        %v1214 = vld [vmem:[#allocation10 + $0x14] sm:$0xf]
        %v1215 = vld [vmem:[#allocation10 + $0x18] sm:$0xf]
        %v1216 = vld [vmem:[#allocation10 + $0x1c] sm:$0xf]
        %v1217 = vld [vmem:[#allocation10 + $0x20] sm:$0xf]
        %v1218 = vld [vmem:[#allocation10 + $0x24] sm:$0xf]
        %v1219 = vld [vmem:[#allocation10 + $0x28] sm:$0xf]
        %v1220 = vld [vmem:[#allocation10 + $0x2c] sm:$0xf]
        %v1221 = vld [vmem:[#allocation10 + $0x30] sm:$0xf]
        %v1222 = vld [vmem:[#allocation10 + $0x34] sm:$0xf]
        %v1223 = vld [vmem:[#allocation10 + $0x38] sm:$0xf]
        %v1224 = vld [vmem:[#allocation10 + $0x3c] sm:$0xf]
        %v1225 = vld [vmem:[%s6] sm:$0x1]
        %v1227 = vlaneseq
        %v1228 = vshrl.u32 %v1227, 7
        %v1229 = vsub.s32 0, %v1228
        %v1230 = vrot.slane %v1225, %v1229
        %v1248 = vunpack.c.l.b16 %v1209
        %v1249 = vunpack.c.l.b16 %v1210
        %v1250 = vunpack.c.l.b16 %v1211
        %v1251 = vunpack.c.l.b16 %v1212
        %v1252 = vunpack.c.l.b16 %v1213
        %v1253 = vunpack.c.l.b16 %v1214
        %v1254 = vunpack.c.l.b16 %v1215
        %v1255 = vunpack.c.l.b16 %v1216
        %v1256 = vunpack.c.l.b16 %v1217
        %v1257 = vunpack.c.l.b16 %v1218
        %v1258 = vunpack.c.l.b16 %v1219
        %v1259 = vunpack.c.l.b16 %v1220
        %v1260 = vunpack.c.l.b16 %v1221
        %v1261 = vunpack.c.l.b16 %v1222
        %v1262 = vunpack.c.l.b16 %v1223
        %v1263 = vunpack.c.l.b16 %v1224
        %v1264 = vpack.c.b16 %v1249, %v1248
        %v1265 = vpack.c.b16 %v1251, %v1250
        %v1266 = vpack.c.b16 %v1253, %v1252
        %v1267 = vpack.c.b16 %v1255, %v1254
        %v1268 = vpack.c.b16 %v1257, %v1256
        %v1269 = vpack.c.b16 %v1259, %v1258
        %v1270 = vpack.c.b16 %v1261, %v1260
        %v1271 = vpack.c.b16 %v1263, %v1262
        %1280 = vmatprep.subr.bf16.mxu0 0
        %1281 = vmatpush1.bf16.msra.mxu0 %v1271
        %1282 = vmatprep.subr.bf16.mxu0 0
        %1283 = vmatpush1.bf16.msra.mxu0 %v1270
        %1284 = vmatprep.subr.bf16.mxu0 0
        %1285 = vmatpush1.bf16.msra.mxu0 %v1269
        %1286 = vmatprep.subr.bf16.mxu0 0
        %1287 = vmatpush1.bf16.msra.mxu0 %v1268
        %1288 = vmatprep.subr.bf16.mxu0 0
        %1289 = vmatpush1.bf16.msra.mxu0 %v1267
        %1290 = vmatprep.subr.bf16.mxu0 0
        %1291 = vmatpush1.bf16.msra.mxu0 %v1266
        %1292 = vmatprep.subr.bf16.mxu0 0
        %1293 = vmatpush1.bf16.msra.mxu0 %v1265
        %1294 = vmatprep.subr.bf16.mxu0 0
        %1295 = vmatpush1.bf16.msra.mxu0 %v1264
        %1296 = vmatprep.subr.bf16.mxu0 0
        %1297 = vmatpush2.bf16.msra.mxu0 0
        %1298 = vmatprep.subr.bf16.mxu0 0
        %1299 = vmatpush2.bf16.msra.mxu0 0
        %1300 = vmatprep.subr.bf16.mxu0 0
        %1301 = vmatpush2.bf16.msra.mxu0 0
        %1302 = vmatprep.subr.bf16.mxu0 0
        %1303 = vmatpush2.bf16.msra.mxu0 0
        %1304 = vmatprep.subr.bf16.mxu0 0
        %1305 = vmatpush2.bf16.msra.mxu0 0
        %1306 = vmatprep.subr.bf16.mxu0 0
        %1307 = vmatpush2.bf16.msra.mxu0 0
        %1308 = vmatprep.subr.bf16.mxu0 0
        %1309 = vmatpush2.bf16.msra.mxu0 0
        %1310 = vmatprep.subr.bf16.mxu0 0
        %1311 = vmatpush2.bf16.msra.mxu0 0
        %1312 = vmatprep.mubr.bf16.mxu0 0
        %1313 = vmatmul.mubr.bf16.gmra.mxu0 %v1208
        %v1314 = vpop.f32.mrf.mxu0
        %v1315 = vadd.f32 %v1230, %v1314
        %v1316 = vpop.f32.mrf.mxu0
        %v1317 = vpop.f32.mrf.mxu0
        %v1318 = vpop.f32.mrf.mxu0
        %1319 = vdwg.mxu0
        %v1320 = vadd.f32 %v624, %v1315
        %v1321 = vld [vmem:[%s7] sm:$0x1]
        %v1322 = vld [vmem:[%s8] sm:$0x1]
        %1323 = vadd.xlane.f32.xlu0 %v1320
        %v1324 = vpop.xlane.xlu0 %1323
        %v1325 = vmul.f32 %v1320, %v1320
        %1326 = vadd.xlane.f32.xlu0 %v1325
        %v1327 = vpop.xlane.xlu0 %1326
        %v1328 = vmul.f32 %v1324, 0.03125
        %v1329 = vmul.f32 %v1327, 0.03125
        %v1330 = vmul.f32 %v1328, %v1328
        %v1331 = vsub.f32 %v1329, %v1330
        %v1332 = vmax.f32 %v1331, 0.0
        %v1333 = vsub.f32 %v1320, %v1328
        %v1334 = vadd.f32 %v1332, 1e-12
        %v1335 = vrsqrt.pop %v1334
        %v1336 = vmul.f32 %v1333, %v1335
        %v1338 = vlaneseq
        %v1339 = vshrl.u32 %v1338, 7
        %v1340 = vsub.s32 0, %v1339
        %v1341 = vrot.slane %v1321, %v1340
        %v1343 = vmul.f32 %v1336, %v1341
        %v1345 = vlaneseq
        %v1346 = vshrl.u32 %v1345, 7
        %v1347 = vsub.s32 0, %v1346
        %v1348 = vrot.slane %v1322, %v1347
        %v1350 = vadd.f32 %v1343, %v1348
        %v1351 = vpack.c.bf16 %v1350, %v1350
        %v1352 = vld [vmem:[#allocation11] sm:$0xf]
        %v1353 = vld [vmem:[#allocation11 + $0x4] sm:$0xf]
        %v1354 = vld [vmem:[#allocation11 + $0x8] sm:$0xf]
        %v1355 = vld [vmem:[#allocation11 + $0xc] sm:$0xf]
        %v1356 = vld [vmem:[#allocation11 + $0x10] sm:$0xf]
        %v1357 = vld [vmem:[#allocation11 + $0x14] sm:$0xf]
        %v1358 = vld [vmem:[#allocation11 + $0x18] sm:$0xf]
        %v1359 = vld [vmem:[#allocation11 + $0x1c] sm:$0xf]
        %v1360 = vld [vmem:[#allocation11 + $0x20] sm:$0xf]
        %v1361 = vld [vmem:[#allocation11 + $0x24] sm:$0xf]
        %v1362 = vld [vmem:[#allocation11 + $0x28] sm:$0xf]
        %v1363 = vld [vmem:[#allocation11 + $0x2c] sm:$0xf]
        %v1364 = vld [vmem:[#allocation11 + $0x30] sm:$0xf]
        %v1365 = vld [vmem:[#allocation11 + $0x34] sm:$0xf]
        %v1366 = vld [vmem:[#allocation11 + $0x38] sm:$0xf]
        %v1367 = vld [vmem:[#allocation11 + $0x3c] sm:$0xf]
        %v1368 = vld [vmem:[%s10] sm:$0x1]
        %v1370 = vlaneseq
        %v1371 = vshrl.u32 %v1370, 7
        %v1372 = vsub.s32 0, %v1371
        %v1373 = vrot.slane %v1368, %v1372
        %v1391 = vunpack.c.l.b16 %v1352
        %v1392 = vunpack.c.l.b16 %v1353
        %v1393 = vunpack.c.l.b16 %v1354
        %v1394 = vunpack.c.l.b16 %v1355
        %v1395 = vunpack.c.l.b16 %v1356
        %v1396 = vunpack.c.l.b16 %v1357
        %v1397 = vunpack.c.l.b16 %v1358
        %v1398 = vunpack.c.l.b16 %v1359
        %v1399 = vunpack.c.l.b16 %v1360
        %v1400 = vunpack.c.l.b16 %v1361
        %v1401 = vunpack.c.l.b16 %v1362
        %v1402 = vunpack.c.l.b16 %v1363
        %v1403 = vunpack.c.l.b16 %v1364
        %v1404 = vunpack.c.l.b16 %v1365
        %v1405 = vunpack.c.l.b16 %v1366
        %v1406 = vunpack.c.l.b16 %v1367
        %v1407 = vpack.c.b16 %v1392, %v1391
        %v1408 = vpack.c.b16 %v1394, %v1393
        %v1409 = vpack.c.b16 %v1396, %v1395
        %v1410 = vpack.c.b16 %v1398, %v1397
        %v1411 = vpack.c.b16 %v1400, %v1399
        %v1412 = vpack.c.b16 %v1402, %v1401
        %v1413 = vpack.c.b16 %v1404, %v1403
        %v1414 = vpack.c.b16 %v1406, %v1405
        %1423 = vmatprep.subr.bf16.mxu0 0
        %1424 = vmatpush1.bf16.msra.mxu0 %v1414
        %1425 = vmatprep.subr.bf16.mxu0 0
        %1426 = vmatpush1.bf16.msra.mxu0 %v1413
        %1427 = vmatprep.subr.bf16.mxu0 0
        %1428 = vmatpush1.bf16.msra.mxu0 %v1412
        %1429 = vmatprep.subr.bf16.mxu0 0
        %1430 = vmatpush1.bf16.msra.mxu0 %v1411
        %1431 = vmatprep.subr.bf16.mxu0 0
        %1432 = vmatpush1.bf16.msra.mxu0 %v1410
        %1433 = vmatprep.subr.bf16.mxu0 0
        %1434 = vmatpush1.bf16.msra.mxu0 %v1409
        %1435 = vmatprep.subr.bf16.mxu0 0
        %1436 = vmatpush1.bf16.msra.mxu0 %v1408
        %1437 = vmatprep.subr.bf16.mxu0 0
        %1438 = vmatpush1.bf16.msra.mxu0 %v1407
        %1439 = vmatprep.subr.bf16.mxu0 0
        %1440 = vmatpush2.bf16.msra.mxu0 0
        %1441 = vmatprep.subr.bf16.mxu0 0
        %1442 = vmatpush2.bf16.msra.mxu0 0
        %1443 = vmatprep.subr.bf16.mxu0 0
        %1444 = vmatpush2.bf16.msra.mxu0 0
        %1445 = vmatprep.subr.bf16.mxu0 0
        %1446 = vmatpush2.bf16.msra.mxu0 0
        %1447 = vmatprep.subr.bf16.mxu0 0
        %1448 = vmatpush2.bf16.msra.mxu0 0
        %1449 = vmatprep.subr.bf16.mxu0 0
        %1450 = vmatpush2.bf16.msra.mxu0 0
        %1451 = vmatprep.subr.bf16.mxu0 0
        %1452 = vmatpush2.bf16.msra.mxu0 0
        %1453 = vmatprep.subr.bf16.mxu0 0
        %1454 = vmatpush2.bf16.msra.mxu0 0
        %1455 = vmatprep.mubr.bf16.mxu0 0
        %1456 = vmatmul.mubr.bf16.gmra.mxu0 %v1351
        %v1457 = vpop.f32.mrf.mxu0
        %v1458 = vadd.f32 %v1373, %v1457
        %v1459 = vpop.f32.mrf.mxu0
        %v1460 = vpop.f32.mrf.mxu0
        %v1461 = vpop.f32.mrf.mxu0
        %1462 = vdwg.mxu0
        %v1463 = vmul.f32 %v1458, %v1458
        %v1464 = vmul.f32 %v1458, %v1463
        %v1465 = vmul.f32 %v1464, 0.044715
        %v1466 = vadd.f32 %v1458, %v1465
        %v1467 = vmul.f32 %v1466, 0.7978846
        %v1468 = vtanh.pop %v1467
        %v1469 = vadd.f32 %v1468, 1.0
        %v1470 = vmul.f32 %v1469, 0.5
        %v1471 = vmul.f32 %v1458, %v1470
        %v1472 = vpack.c.bf16 %v1471, %v1471
        %v1473 = vld [vmem:[#allocation13] sm:$0xf]
        %v1474 = vld [vmem:[#allocation13 + $0x4] sm:$0xf]
        %v1475 = vld [vmem:[#allocation13 + $0x8] sm:$0xf]
        %v1476 = vld [vmem:[#allocation13 + $0xc] sm:$0xf]
        %v1477 = vld [vmem:[#allocation13 + $0x10] sm:$0xf]
        %v1478 = vld [vmem:[#allocation13 + $0x14] sm:$0xf]
        %v1479 = vld [vmem:[#allocation13 + $0x18] sm:$0xf]
        %v1480 = vld [vmem:[#allocation13 + $0x1c] sm:$0xf]
        %v1481 = vld [vmem:[#allocation13 + $0x20] sm:$0xf]
        %v1482 = vld [vmem:[#allocation13 + $0x24] sm:$0xf]
        %v1483 = vld [vmem:[#allocation13 + $0x28] sm:$0xf]
        %v1484 = vld [vmem:[#allocation13 + $0x2c] sm:$0xf]
        %v1485 = vld [vmem:[#allocation13 + $0x30] sm:$0xf]
        %v1486 = vld [vmem:[#allocation13 + $0x34] sm:$0xf]
        %v1487 = vld [vmem:[#allocation13 + $0x38] sm:$0xf]
        %v1488 = vld [vmem:[#allocation13 + $0x3c] sm:$0xf]
        %v1489 = vld [vmem:[%s12] sm:$0x1]
        %v1491 = vlaneseq
        %v1492 = vshrl.u32 %v1491, 7
        %v1493 = vsub.s32 0, %v1492
        %v1494 = vrot.slane %v1489, %v1493
        %v1512 = vunpack.c.l.b16 %v1473
        %v1513 = vunpack.c.l.b16 %v1474
        %v1514 = vunpack.c.l.b16 %v1475
        %v1515 = vunpack.c.l.b16 %v1476
        %v1516 = vunpack.c.l.b16 %v1477
        %v1517 = vunpack.c.l.b16 %v1478
        %v1518 = vunpack.c.l.b16 %v1479
        %v1519 = vunpack.c.l.b16 %v1480
        %v1520 = vunpack.c.l.b16 %v1481
        %v1521 = vunpack.c.l.b16 %v1482
        %v1522 = vunpack.c.l.b16 %v1483
        %v1523 = vunpack.c.l.b16 %v1484
        %v1524 = vunpack.c.l.b16 %v1485
        %v1525 = vunpack.c.l.b16 %v1486
        %v1526 = vunpack.c.l.b16 %v1487
        %v1527 = vunpack.c.l.b16 %v1488
        %v1528 = vpack.c.b16 %v1513, %v1512
        %v1529 = vpack.c.b16 %v1515, %v1514
        %v1530 = vpack.c.b16 %v1517, %v1516
        %v1531 = vpack.c.b16 %v1519, %v1518
        %v1532 = vpack.c.b16 %v1521, %v1520
        %v1533 = vpack.c.b16 %v1523, %v1522
        %v1534 = vpack.c.b16 %v1525, %v1524
        %v1535 = vpack.c.b16 %v1527, %v1526
        %1544 = vmatprep.subr.bf16.mxu0 0
        %1545 = vmatpush1.bf16.msra.mxu0 %v1535
        %1546 = vmatprep.subr.bf16.mxu0 0
        %1547 = vmatpush1.bf16.msra.mxu0 %v1534
        %1548 = vmatprep.subr.bf16.mxu0 0
        %1549 = vmatpush1.bf16.msra.mxu0 %v1533
        %1550 = vmatprep.subr.bf16.mxu0 0
        %1551 = vmatpush1.bf16.msra.mxu0 %v1532
        %1552 = vmatprep.subr.bf16.mxu0 0
        %1553 = vmatpush1.bf16.msra.mxu0 %v1531
        %1554 = vmatprep.subr.bf16.mxu0 0
        %1555 = vmatpush1.bf16.msra.mxu0 %v1530
        %1556 = vmatprep.subr.bf16.mxu0 0
        %1557 = vmatpush1.bf16.msra.mxu0 %v1529
        %1558 = vmatprep.subr.bf16.mxu0 0
        %1559 = vmatpush1.bf16.msra.mxu0 %v1528
        %1560 = vmatprep.subr.bf16.mxu0 0
        %1561 = vmatpush2.bf16.msra.mxu0 0
        %1562 = vmatprep.subr.bf16.mxu0 0
        %1563 = vmatpush2.bf16.msra.mxu0 0
        %1564 = vmatprep.subr.bf16.mxu0 0
        %1565 = vmatpush2.bf16.msra.mxu0 0
        %1566 = vmatprep.subr.bf16.mxu0 0
        %1567 = vmatpush2.bf16.msra.mxu0 0
        %1568 = vmatprep.subr.bf16.mxu0 0
        %1569 = vmatpush2.bf16.msra.mxu0 0
        %1570 = vmatprep.subr.bf16.mxu0 0
        %1571 = vmatpush2.bf16.msra.mxu0 0
        %1572 = vmatprep.subr.bf16.mxu0 0
        %1573 = vmatpush2.bf16.msra.mxu0 0
        %1574 = vmatprep.subr.bf16.mxu0 0
        %1575 = vmatpush2.bf16.msra.mxu0 0
        %1576 = vmatprep.mubr.bf16.mxu0 0
        %1577 = vmatmul.mubr.bf16.gmra.mxu0 %v1472
        %v1578 = vpop.f32.mrf.mxu0
        %v1579 = vadd.f32 %v1494, %v1578
        %v1580 = vpop.f32.mrf.mxu0
        %v1581 = vpop.f32.mrf.mxu0
        %v1582 = vpop.f32.mrf.mxu0
        %1583 = vdwg.mxu0
        %v1584 = vadd.f32 %v1350, %v1579
        %v1585 = vld [vmem:[%s13] sm:$0x1]
        %v1586 = vld [vmem:[%s14] sm:$0x1]
        %1587 = vadd.xlane.f32.xlu0 %v1584
        %v1588 = vpop.xlane.xlu0 %1587
        %v1589 = vmul.f32 %v1584, %v1584
        %1590 = vadd.xlane.f32.xlu0 %v1589
        %v1591 = vpop.xlane.xlu0 %1590
        %v1592 = vmul.f32 %v1588, 0.03125
        %v1593 = vmul.f32 %v1591, 0.03125
        %v1594 = vmul.f32 %v1592, %v1592
        %v1595 = vsub.f32 %v1593, %v1594
        %v1596 = vmax.f32 %v1595, 0.0
        %v1597 = vsub.f32 %v1584, %v1592
        %v1598 = vadd.f32 %v1596, 1e-12
        %v1599 = vrsqrt.pop %v1598
        %v1600 = vmul.f32 %v1597, %v1599
        %v1602 = vlaneseq
        %v1603 = vshrl.u32 %v1602, 7
        %v1604 = vsub.s32 0, %v1603
        %v1605 = vrot.slane %v1585, %v1604
        %v1607 = vmul.f32 %v1600, %v1605
        %v1609 = vlaneseq
        %v1610 = vshrl.u32 %v1609, 7
        %v1611 = vsub.s32 0, %v1610
        %v1612 = vrot.slane %v1586, %v1611
        %v1614 = vadd.f32 %v1607, %v1612
        %v1615 = vpack.c.bf16 %v1614, %v1614
        %s1616 = scalar_lea.vmem [#allocation8], 64
        %v1617 = vld [vmem:[%s1616] sm:$0xf]
        %v1618 = vld [vmem:[%s1616 + $0x4] sm:$0xf]
        %v1619 = vld [vmem:[%s1616 + $0x8] sm:$0xf]
        %v1620 = vld [vmem:[%s1616 + $0xc] sm:$0xf]
        %v1621 = vld [vmem:[%s1616 + $0x10] sm:$0xf]
        %v1622 = vld [vmem:[%s1616 + $0x14] sm:$0xf]
        %v1623 = vld [vmem:[%s1616 + $0x18] sm:$0xf]
        %v1624 = vld [vmem:[%s1616 + $0x1c] sm:$0xf]
        %v1625 = vld [vmem:[%s1616 + $0x20] sm:$0xf]
        %v1626 = vld [vmem:[%s1616 + $0x24] sm:$0xf]
        %v1627 = vld [vmem:[%s1616 + $0x28] sm:$0xf]
        %v1628 = vld [vmem:[%s1616 + $0x2c] sm:$0xf]
        %v1629 = vld [vmem:[%s1616 + $0x30] sm:$0xf]
        %v1630 = vld [vmem:[%s1616 + $0x34] sm:$0xf]
        %v1631 = vld [vmem:[%s1616 + $0x38] sm:$0xf]
        %v1632 = vld [vmem:[%s1616 + $0x3c] sm:$0xf]
        %s1633 = scalar_lea.vmem %s4, 1
        %v1634 = vld [vmem:[%s1633] sm:$0x1]
        %v1636 = vlaneseq
        %v1637 = vshrl.u32 %v1636, 7
        %v1638 = vsub.s32 0, %v1637
        %v1639 = vrot.slane %v1634, %v1638
        %v1657 = vunpack.c.l.b16 %v1617
        %v1658 = vunpack.c.l.b16 %v1618
        %v1659 = vunpack.c.l.b16 %v1619
        %v1660 = vunpack.c.l.b16 %v1620
        %v1661 = vunpack.c.l.b16 %v1621
        %v1662 = vunpack.c.l.b16 %v1622
        %v1663 = vunpack.c.l.b16 %v1623
        %v1664 = vunpack.c.l.b16 %v1624
        %v1665 = vunpack.c.l.b16 %v1625
        %v1666 = vunpack.c.l.b16 %v1626
        %v1667 = vunpack.c.l.b16 %v1627
        %v1668 = vunpack.c.l.b16 %v1628
        %v1669 = vunpack.c.l.b16 %v1629
        %v1670 = vunpack.c.l.b16 %v1630
        %v1671 = vunpack.c.l.b16 %v1631
        %v1672 = vunpack.c.l.b16 %v1632
        %v1673 = vpack.c.b16 %v1658, %v1657
        %v1674 = vpack.c.b16 %v1660, %v1659
        %v1675 = vpack.c.b16 %v1662, %v1661
        %v1676 = vpack.c.b16 %v1664, %v1663
        %v1677 = vpack.c.b16 %v1666, %v1665
        %v1678 = vpack.c.b16 %v1668, %v1667
        %v1679 = vpack.c.b16 %v1670, %v1669
        %v1680 = vpack.c.b16 %v1672, %v1671
        %1689 = vmatprep.subr.bf16.mxu0 0
        %1690 = vmatpush1.bf16.msra.mxu0 %v1680
        %1691 = vmatprep.subr.bf16.mxu0 0
        %1692 = vmatpush1.bf16.msra.mxu0 %v1679
        %1693 = vmatprep.subr.bf16.mxu0 0
        %1694 = vmatpush1.bf16.msra.mxu0 %v1678
        %1695 = vmatprep.subr.bf16.mxu0 0
        %1696 = vmatpush1.bf16.msra.mxu0 %v1677
        %1697 = vmatprep.subr.bf16.mxu0 0
        %1698 = vmatpush1.bf16.msra.mxu0 %v1676
        %1699 = vmatprep.subr.bf16.mxu0 0
        %1700 = vmatpush1.bf16.msra.mxu0 %v1675
        %1701 = vmatprep.subr.bf16.mxu0 0
        %1702 = vmatpush1.bf16.msra.mxu0 %v1674
        %1703 = vmatprep.subr.bf16.mxu0 0
        %1704 = vmatpush1.bf16.msra.mxu0 %v1673
        %1705 = vmatprep.subr.bf16.mxu0 0
        %1706 = vmatpush2.bf16.msra.mxu0 0
        %1707 = vmatprep.subr.bf16.mxu0 0
        %1708 = vmatpush2.bf16.msra.mxu0 0
        %1709 = vmatprep.subr.bf16.mxu0 0
        %1710 = vmatpush2.bf16.msra.mxu0 0
        %1711 = vmatprep.subr.bf16.mxu0 0
        %1712 = vmatpush2.bf16.msra.mxu0 0
        %1713 = vmatprep.subr.bf16.mxu0 0
        %1714 = vmatpush2.bf16.msra.mxu0 0
        %1715 = vmatprep.subr.bf16.mxu0 0
        %1716 = vmatpush2.bf16.msra.mxu0 0
        %1717 = vmatprep.subr.bf16.mxu0 0
        %1718 = vmatpush2.bf16.msra.mxu0 0
        %1719 = vmatprep.subr.bf16.mxu0 0
        %1720 = vmatpush2.bf16.msra.mxu0 0
        %1721 = vmatprep.mubr.bf16.mxu0 0
        %1722 = vmatmul.mubr.bf16.gmra.mxu0 %v1615
        %v1723 = vpop.f32.mrf.mxu0
        %v1724 = vadd.f32 %v1639, %v1723
        %v1725 = vpop.f32.mrf.mxu0
        %v1726 = vpop.f32.mrf.mxu0
        %v1727 = vpop.f32.mrf.mxu0
        %1728 = vdwg.mxu0
        %1730 = vrot.lane.b32.xlu0 %v1724, 120
        %v1731 = vpop.permute.xlu0 %1730
        %1733 = vrot.lane.b32.xlu0 %v1724, 112
        %v1734 = vpop.permute.xlu0 %1733
        %1736 = vrot.lane.b32.xlu0 %v1724, 104
        %v1737 = vpop.permute.xlu0 %1736
        %v1739 = vpack.c.bf16 %v1724, %v1724
        %v1740 = vpack.c.bf16 %v1731, %v1731
        %v1741 = vpack.c.bf16 %v1734, %v1734
        %v1742 = vpack.c.bf16 %v1737, %v1737
        %1744 = vrot.lane.b32.xlu0 %v1739, 96
        %v1745 = vpop.permute.xlu0 %1744
        %v1747 = vsel %vm754, %v1739, 0
        %v1750 = vsel %vm754, %v1745, 0
        %1752 = vmatprep.subr.bf16.mxu0 0
        %1753 = vmatpush1.bf16.xpose.msra.mxu0 0
        %1754 = vmatprep.subr.bf16.mxu0 0
        %1755 = vmatpush1.bf16.xpose.msra.mxu0 0
        %1756 = vmatprep.subr.bf16.mxu0 0
        %1757 = vmatpush1.bf16.xpose.msra.mxu0 0
        %1758 = vmatprep.subr.bf16.mxu0 0
        %1759 = vmatpush1.bf16.xpose.msra.mxu0 0
        %1760 = vmatprep.subr.bf16.mxu0 0
        %1761 = vmatpush1.bf16.xpose.msra.mxu0 0
        %1762 = vmatprep.subr.bf16.mxu0 0
        %1763 = vmatpush1.bf16.xpose.msra.mxu0 0
        %1764 = vmatprep.subr.bf16.mxu0 0
        %1765 = vmatpush1.bf16.xpose.msra.mxu0 0
        %1766 = vmatprep.subr.bf16.mxu0 0
        %1767 = vmatpush1.bf16.xpose.msra.mxu0 %v1750
        %1768 = vmatprep.subr.bf16.mxu0 0
        %1769 = vmatpush2.bf16.xpose.msra.mxu0 0
        %1770 = vmatprep.subr.bf16.mxu0 0
        %1771 = vmatpush2.bf16.xpose.msra.mxu0 0
        %1772 = vmatprep.subr.bf16.mxu0 0
        %1773 = vmatpush2.bf16.xpose.msra.mxu0 0
        %1774 = vmatprep.subr.bf16.mxu0 0
        %1775 = vmatpush2.bf16.xpose.msra.mxu0 0
        %1776 = vmatprep.subr.bf16.mxu0 0
        %1777 = vmatpush2.bf16.xpose.msra.mxu0 0
        %1778 = vmatprep.subr.bf16.mxu0 0
        %1779 = vmatpush2.bf16.xpose.msra.mxu0 0
        %1780 = vmatprep.subr.bf16.mxu0 0
        %1781 = vmatpush2.bf16.xpose.msra.mxu0 0
        %1782 = vmatprep.subr.bf16.mxu0 0
        %1783 = vmatpush2.bf16.xpose.msra.mxu0 0
        %1784 = vmatprep.mubr.bf16.mxu0 0
        %1785 = vmatmul.mubr.bf16.gmra.mxu0 %v1747
        %v1786 = vpop.f32.mrf.mxu0
        %v1787 = vadd.f32 0.0, %v1786
        %v1788 = vpop.f32.mrf.mxu0
        %v1789 = vpop.f32.mrf.mxu0
        %v1790 = vpop.f32.mrf.mxu0
        %1791 = vdwg.mxu0
        %1793 = vrot.lane.b32.xlu0 %v1740, 96
        %v1794 = vpop.permute.xlu0 %1793
        %v1796 = vsel %vm754, %v1740, 0
        %v1799 = vsel %vm754, %v1794, 0
        %1801 = vmatprep.subr.bf16.mxu0 0
        %1802 = vmatpush1.bf16.xpose.msra.mxu0 0
        %1803 = vmatprep.subr.bf16.mxu0 0
        %1804 = vmatpush1.bf16.xpose.msra.mxu0 0
        %1805 = vmatprep.subr.bf16.mxu0 0
        %1806 = vmatpush1.bf16.xpose.msra.mxu0 0
        %1807 = vmatprep.subr.bf16.mxu0 0
        %1808 = vmatpush1.bf16.xpose.msra.mxu0 0
        %1809 = vmatprep.subr.bf16.mxu0 0
        %1810 = vmatpush1.bf16.xpose.msra.mxu0 0
        %1811 = vmatprep.subr.bf16.mxu0 0
        %1812 = vmatpush1.bf16.xpose.msra.mxu0 0
        %1813 = vmatprep.subr.bf16.mxu0 0
        %1814 = vmatpush1.bf16.xpose.msra.mxu0 0
        %1815 = vmatprep.subr.bf16.mxu0 0
        %1816 = vmatpush1.bf16.xpose.msra.mxu0 %v1799
        %1817 = vmatprep.subr.bf16.mxu0 0
        %1818 = vmatpush2.bf16.xpose.msra.mxu0 0
        %1819 = vmatprep.subr.bf16.mxu0 0
        %1820 = vmatpush2.bf16.xpose.msra.mxu0 0
        %1821 = vmatprep.subr.bf16.mxu0 0
        %1822 = vmatpush2.bf16.xpose.msra.mxu0 0
        %1823 = vmatprep.subr.bf16.mxu0 0
        %1824 = vmatpush2.bf16.xpose.msra.mxu0 0
        %1825 = vmatprep.subr.bf16.mxu0 0
        %1826 = vmatpush2.bf16.xpose.msra.mxu0 0
        %1827 = vmatprep.subr.bf16.mxu0 0
        %1828 = vmatpush2.bf16.xpose.msra.mxu0 0
        %1829 = vmatprep.subr.bf16.mxu0 0
        %1830 = vmatpush2.bf16.xpose.msra.mxu0 0
        %1831 = vmatprep.subr.bf16.mxu0 0
        %1832 = vmatpush2.bf16.xpose.msra.mxu0 0
        %1833 = vmatprep.mubr.bf16.mxu0 0
        %1834 = vmatmul.mubr.bf16.gmra.mxu0 %v1796
        %v1835 = vpop.f32.mrf.mxu0
        %v1836 = vadd.f32 0.0, %v1835
        %v1837 = vpop.f32.mrf.mxu0
        %v1838 = vpop.f32.mrf.mxu0
        %v1839 = vpop.f32.mrf.mxu0
        %1840 = vdwg.mxu0
        %1842 = vrot.lane.b32.xlu0 %v1741, 96
        %v1843 = vpop.permute.xlu0 %1842
        %v1845 = vsel %vm754, %v1741, 0
        %v1848 = vsel %vm754, %v1843, 0
        %1850 = vmatprep.subr.bf16.mxu0 0
        %1851 = vmatpush1.bf16.xpose.msra.mxu0 0
        %1852 = vmatprep.subr.bf16.mxu0 0
        %1853 = vmatpush1.bf16.xpose.msra.mxu0 0
        %1854 = vmatprep.subr.bf16.mxu0 0
        %1855 = vmatpush1.bf16.xpose.msra.mxu0 0
        %1856 = vmatprep.subr.bf16.mxu0 0
        %1857 = vmatpush1.bf16.xpose.msra.mxu0 0
        %1858 = vmatprep.subr.bf16.mxu0 0
        %1859 = vmatpush1.bf16.xpose.msra.mxu0 0
        %1860 = vmatprep.subr.bf16.mxu0 0
        %1861 = vmatpush1.bf16.xpose.msra.mxu0 0
        %1862 = vmatprep.subr.bf16.mxu0 0
        %1863 = vmatpush1.bf16.xpose.msra.mxu0 0
        %1864 = vmatprep.subr.bf16.mxu0 0
        %1865 = vmatpush1.bf16.xpose.msra.mxu0 %v1848
        %1866 = vmatprep.subr.bf16.mxu0 0
        %1867 = vmatpush2.bf16.xpose.msra.mxu0 0
        %1868 = vmatprep.subr.bf16.mxu0 0
        %1869 = vmatpush2.bf16.xpose.msra.mxu0 0
        %1870 = vmatprep.subr.bf16.mxu0 0
        %1871 = vmatpush2.bf16.xpose.msra.mxu0 0
        %1872 = vmatprep.subr.bf16.mxu0 0
        %1873 = vmatpush2.bf16.xpose.msra.mxu0 0
        %1874 = vmatprep.subr.bf16.mxu0 0
        %1875 = vmatpush2.bf16.xpose.msra.mxu0 0
        %1876 = vmatprep.subr.bf16.mxu0 0
        %1877 = vmatpush2.bf16.xpose.msra.mxu0 0
        %1878 = vmatprep.subr.bf16.mxu0 0
        %1879 = vmatpush2.bf16.xpose.msra.mxu0 0
        %1880 = vmatprep.subr.bf16.mxu0 0
        %1881 = vmatpush2.bf16.xpose.msra.mxu0 0
        %1882 = vmatprep.mubr.bf16.mxu0 0
        %1883 = vmatmul.mubr.bf16.gmra.mxu0 %v1845
        %v1884 = vpop.f32.mrf.mxu0
        %v1885 = vadd.f32 0.0, %v1884
        %v1886 = vpop.f32.mrf.mxu0
        %v1887 = vpop.f32.mrf.mxu0
        %v1888 = vpop.f32.mrf.mxu0
        %1889 = vdwg.mxu0
        %1891 = vrot.lane.b32.xlu0 %v1742, 96
        %v1892 = vpop.permute.xlu0 %1891
        %v1894 = vsel %vm754, %v1742, 0
        %v1897 = vsel %vm754, %v1892, 0
        %1899 = vmatprep.subr.bf16.mxu0 0
        %1900 = vmatpush1.bf16.xpose.msra.mxu0 0
        %1901 = vmatprep.subr.bf16.mxu0 0
        %1902 = vmatpush1.bf16.xpose.msra.mxu0 0
        %1903 = vmatprep.subr.bf16.mxu0 0
        %1904 = vmatpush1.bf16.xpose.msra.mxu0 0
        %1905 = vmatprep.subr.bf16.mxu0 0
        %1906 = vmatpush1.bf16.xpose.msra.mxu0 0
        %1907 = vmatprep.subr.bf16.mxu0 0
        %1908 = vmatpush1.bf16.xpose.msra.mxu0 0
        %1909 = vmatprep.subr.bf16.mxu0 0
        %1910 = vmatpush1.bf16.xpose.msra.mxu0 0
        %1911 = vmatprep.subr.bf16.mxu0 0
        %1912 = vmatpush1.bf16.xpose.msra.mxu0 0
        %1913 = vmatprep.subr.bf16.mxu0 0
        %1914 = vmatpush1.bf16.xpose.msra.mxu0 %v1897
        %1915 = vmatprep.subr.bf16.mxu0 0
        %1916 = vmatpush2.bf16.xpose.msra.mxu0 0
        %1917 = vmatprep.subr.bf16.mxu0 0
        %1918 = vmatpush2.bf16.xpose.msra.mxu0 0
        %1919 = vmatprep.subr.bf16.mxu0 0
        %1920 = vmatpush2.bf16.xpose.msra.mxu0 0
        %1921 = vmatprep.subr.bf16.mxu0 0
        %1922 = vmatpush2.bf16.xpose.msra.mxu0 0
        %1923 = vmatprep.subr.bf16.mxu0 0
        %1924 = vmatpush2.bf16.xpose.msra.mxu0 0
        %1925 = vmatprep.subr.bf16.mxu0 0
        %1926 = vmatpush2.bf16.xpose.msra.mxu0 0
        %1927 = vmatprep.subr.bf16.mxu0 0
        %1928 = vmatpush2.bf16.xpose.msra.mxu0 0
        %1929 = vmatprep.subr.bf16.mxu0 0
        %1930 = vmatpush2.bf16.xpose.msra.mxu0 0
        %1931 = vmatprep.mubr.bf16.mxu0 0
        %1932 = vmatmul.mubr.bf16.gmra.mxu0 %v1894
        %v1933 = vpop.f32.mrf.mxu0
        %v1934 = vadd.f32 0.0, %v1933
        %v1935 = vpop.f32.mrf.mxu0
        %v1936 = vpop.f32.mrf.mxu0
        %v1937 = vpop.f32.mrf.mxu0
        %1938 = vdwg.mxu0
        %v1939 = vsel %vm754, %v1787, -inf
        %1940 = vmax.xlane.f32.xlu0 %v1939
        %v1941 = vpop.xlane.xlu0 %1940
        %v1942 = vsel %vm754, %v1836, -inf
        %1943 = vmax.xlane.f32.xlu0 %v1942
        %v1944 = vpop.xlane.xlu0 %1943
        %v1945 = vsel %vm754, %v1885, -inf
        %1946 = vmax.xlane.f32.xlu0 %v1945
        %v1947 = vpop.xlane.xlu0 %1946
        %v1948 = vsel %vm754, %v1934, -inf
        %1949 = vmax.xlane.f32.xlu0 %v1948
        %v1950 = vpop.xlane.xlu0 %1949
        %v1951 = vsub.f32 %v1787, %v1941
        %v1952 = vsub.f32 %v1836, %v1944
        %v1953 = vsub.f32 %v1885, %v1947
        %v1954 = vsub.f32 %v1934, %v1950
        %v1955 = vmul.f32 %v1951, 1.442695
        %v1956 = vpow.pop %v1955
        %v1957 = vmul.f32 %v1952, 1.442695
        %v1958 = vpow.pop %v1957
        %v1959 = vmul.f32 %v1953, 1.442695
        %v1960 = vpow.pop %v1959
        %v1961 = vmul.f32 %v1954, 1.442695
        %v1962 = vpow.pop %v1961
        %v1963 = vsel %vm754, %v1956, 0.0
        %1964 = vadd.xlane.f32.xlu0 %v1963
        %v1965 = vpop.xlane.xlu0 %1964
        %v1966 = vsel %vm754, %v1958, 0.0
        %1967 = vadd.xlane.f32.xlu0 %v1966
        %v1968 = vpop.xlane.xlu0 %1967
        %v1969 = vsel %vm754, %v1960, 0.0
        %1970 = vadd.xlane.f32.xlu0 %v1969
        %v1971 = vpop.xlane.xlu0 %1970
        %v1972 = vsel %vm754, %v1962, 0.0
        %1973 = vadd.xlane.f32.xlu0 %v1972
        %v1974 = vpop.xlane.xlu0 %1973
        %v1975 = vrcp.pop %v1965
        %v1976 = vrcp.pop %v1968
        %v1977 = vrcp.pop %v1971
        %v1978 = vrcp.pop %v1974
        %v1979 = vmul.f32 %v1956, %v1975
        %v1980 = vmul.f32 %v1958, %v1976
        %v1981 = vmul.f32 %v1960, %v1977
        %v1982 = vmul.f32 %v1962, %v1978
        %v1983 = vpack.c.bf16 %v1979, %v1979
        %v1984 = vpack.c.bf16 %v1980, %v1980
        %v1985 = vpack.c.bf16 %v1981, %v1981
        %v1986 = vpack.c.bf16 %v1982, %v1982
        %1987 = vrot.lane.b32.xlu0 %v1739, 64
        %v1988 = vpop.permute.xlu0 %1987
        %v1990 = vsel %vm754, %v1983, 0
        %v1993 = vsel %vm1001, %v1988, 0
        %1995 = vmatprep.subr.bf16.mxu0 0
        %1996 = vmatpush1.bf16.msra.mxu0 0
        %1997 = vmatprep.subr.bf16.mxu0 0
        %1998 = vmatpush1.bf16.msra.mxu0 0
        %1999 = vmatprep.subr.bf16.mxu0 0
        %2000 = vmatpush1.bf16.msra.mxu0 0
        %2001 = vmatprep.subr.bf16.mxu0 0
        %2002 = vmatpush1.bf16.msra.mxu0 0
        %2003 = vmatprep.subr.bf16.mxu0 0
        %2004 = vmatpush1.bf16.msra.mxu0 0
        %2005 = vmatprep.subr.bf16.mxu0 0
        %2006 = vmatpush1.bf16.msra.mxu0 0
        %2007 = vmatprep.subr.bf16.mxu0 0
        %2008 = vmatpush1.bf16.msra.mxu0 0
        %2009 = vmatprep.subr.bf16.mxu0 0
        %2010 = vmatpush1.bf16.msra.mxu0 %v1993
        %2011 = vmatprep.subr.bf16.mxu0 0
        %2012 = vmatpush2.bf16.msra.mxu0 0
        %2013 = vmatprep.subr.bf16.mxu0 0
        %2014 = vmatpush2.bf16.msra.mxu0 0
        %2015 = vmatprep.subr.bf16.mxu0 0
        %2016 = vmatpush2.bf16.msra.mxu0 0
        %2017 = vmatprep.subr.bf16.mxu0 0
        %2018 = vmatpush2.bf16.msra.mxu0 0
        %2019 = vmatprep.subr.bf16.mxu0 0
        %2020 = vmatpush2.bf16.msra.mxu0 0
        %2021 = vmatprep.subr.bf16.mxu0 0
        %2022 = vmatpush2.bf16.msra.mxu0 0
        %2023 = vmatprep.subr.bf16.mxu0 0
        %2024 = vmatpush2.bf16.msra.mxu0 0
        %2025 = vmatprep.subr.bf16.mxu0 0
        %2026 = vmatpush2.bf16.msra.mxu0 0
        %2027 = vmatprep.mubr.bf16.mxu0 0
        %2028 = vmatmul.mubr.bf16.gmra.mxu0 %v1990
        %v2029 = vpop.f32.mrf.mxu0
        %v2030 = vadd.f32 0.0, %v2029
        %v2031 = vpop.f32.mrf.mxu0
        %v2032 = vpop.f32.mrf.mxu0
        %v2033 = vpop.f32.mrf.mxu0
        %2034 = vdwg.mxu0
        %2035 = vrot.lane.b32.xlu0 %v1740, 64
        %v2036 = vpop.permute.xlu0 %2035
        %v2038 = vsel %vm754, %v1984, 0
        %v2041 = vsel %vm1001, %v2036, 0
        %2043 = vmatprep.subr.bf16.mxu0 0
        %2044 = vmatpush1.bf16.msra.mxu0 0
        %2045 = vmatprep.subr.bf16.mxu0 0
        %2046 = vmatpush1.bf16.msra.mxu0 0
        %2047 = vmatprep.subr.bf16.mxu0 0
        %2048 = vmatpush1.bf16.msra.mxu0 0
        %2049 = vmatprep.subr.bf16.mxu0 0
        %2050 = vmatpush1.bf16.msra.mxu0 0
        %2051 = vmatprep.subr.bf16.mxu0 0
        %2052 = vmatpush1.bf16.msra.mxu0 0
        %2053 = vmatprep.subr.bf16.mxu0 0
        %2054 = vmatpush1.bf16.msra.mxu0 0
        %2055 = vmatprep.subr.bf16.mxu0 0
        %2056 = vmatpush1.bf16.msra.mxu0 0
        %2057 = vmatprep.subr.bf16.mxu0 0
        %2058 = vmatpush1.bf16.msra.mxu0 %v2041
        %2059 = vmatprep.subr.bf16.mxu0 0
        %2060 = vmatpush2.bf16.msra.mxu0 0
        %2061 = vmatprep.subr.bf16.mxu0 0
        %2062 = vmatpush2.bf16.msra.mxu0 0
        %2063 = vmatprep.subr.bf16.mxu0 0
        %2064 = vmatpush2.bf16.msra.mxu0 0
        %2065 = vmatprep.subr.bf16.mxu0 0
        %2066 = vmatpush2.bf16.msra.mxu0 0
        %2067 = vmatprep.subr.bf16.mxu0 0
        %2068 = vmatpush2.bf16.msra.mxu0 0
        %2069 = vmatprep.subr.bf16.mxu0 0
        %2070 = vmatpush2.bf16.msra.mxu0 0
        %2071 = vmatprep.subr.bf16.mxu0 0
        %2072 = vmatpush2.bf16.msra.mxu0 0
        %2073 = vmatprep.subr.bf16.mxu0 0
        %2074 = vmatpush2.bf16.msra.mxu0 0
        %2075 = vmatprep.mubr.bf16.mxu0 0
        %2076 = vmatmul.mubr.bf16.gmra.mxu0 %v2038
        %v2077 = vpop.f32.mrf.mxu0
        %v2078 = vadd.f32 0.0, %v2077
        %v2079 = vpop.f32.mrf.mxu0
        %v2080 = vpop.f32.mrf.mxu0
        %v2081 = vpop.f32.mrf.mxu0
        %2082 = vdwg.mxu0
        %2083 = vrot.lane.b32.xlu0 %v1741, 64
        %v2084 = vpop.permute.xlu0 %2083
        %v2086 = vsel %vm754, %v1985, 0
        %v2089 = vsel %vm1001, %v2084, 0
        %2091 = vmatprep.subr.bf16.mxu0 0
        %2092 = vmatpush1.bf16.msra.mxu0 0
        %2093 = vmatprep.subr.bf16.mxu0 0
        %2094 = vmatpush1.bf16.msra.mxu0 0
        %2095 = vmatprep.subr.bf16.mxu0 0
        %2096 = vmatpush1.bf16.msra.mxu0 0
        %2097 = vmatprep.subr.bf16.mxu0 0
        %2098 = vmatpush1.bf16.msra.mxu0 0
        %2099 = vmatprep.subr.bf16.mxu0 0
        %2100 = vmatpush1.bf16.msra.mxu0 0
        %2101 = vmatprep.subr.bf16.mxu0 0
        %2102 = vmatpush1.bf16.msra.mxu0 0
        %2103 = vmatprep.subr.bf16.mxu0 0
        %2104 = vmatpush1.bf16.msra.mxu0 0
        %2105 = vmatprep.subr.bf16.mxu0 0
        %2106 = vmatpush1.bf16.msra.mxu0 %v2089
        %2107 = vmatprep.subr.bf16.mxu0 0
        %2108 = vmatpush2.bf16.msra.mxu0 0
        %2109 = vmatprep.subr.bf16.mxu0 0
        %2110 = vmatpush2.bf16.msra.mxu0 0
        %2111 = vmatprep.subr.bf16.mxu0 0
        %2112 = vmatpush2.bf16.msra.mxu0 0
        %2113 = vmatprep.subr.bf16.mxu0 0
        %2114 = vmatpush2.bf16.msra.mxu0 0
        %2115 = vmatprep.subr.bf16.mxu0 0
        %2116 = vmatpush2.bf16.msra.mxu0 0
        %2117 = vmatprep.subr.bf16.mxu0 0
        %2118 = vmatpush2.bf16.msra.mxu0 0
        %2119 = vmatprep.subr.bf16.mxu0 0
        %2120 = vmatpush2.bf16.msra.mxu0 0
        %2121 = vmatprep.subr.bf16.mxu0 0
        %2122 = vmatpush2.bf16.msra.mxu0 0
        %2123 = vmatprep.mubr.bf16.mxu0 0
        %2124 = vmatmul.mubr.bf16.gmra.mxu0 %v2086
        %v2125 = vpop.f32.mrf.mxu0
        %v2126 = vadd.f32 0.0, %v2125
        %v2127 = vpop.f32.mrf.mxu0
        %v2128 = vpop.f32.mrf.mxu0
        %v2129 = vpop.f32.mrf.mxu0
        %2130 = vdwg.mxu0
        %2131 = vrot.lane.b32.xlu0 %v1742, 64
        %v2132 = vpop.permute.xlu0 %2131
        %v2134 = vsel %vm754, %v1986, 0
        %v2137 = vsel %vm1001, %v2132, 0
        %2139 = vmatprep.subr.bf16.mxu0 0
        %2140 = vmatpush1.bf16.msra.mxu0 0
        %2141 = vmatprep.subr.bf16.mxu0 0
        %2142 = vmatpush1.bf16.msra.mxu0 0
        %2143 = vmatprep.subr.bf16.mxu0 0
        %2144 = vmatpush1.bf16.msra.mxu0 0
        %2145 = vmatprep.subr.bf16.mxu0 0
        %2146 = vmatpush1.bf16.msra.mxu0 0
        %2147 = vmatprep.subr.bf16.mxu0 0
        %2148 = vmatpush1.bf16.msra.mxu0 0
        %2149 = vmatprep.subr.bf16.mxu0 0
        %2150 = vmatpush1.bf16.msra.mxu0 0
        %2151 = vmatprep.subr.bf16.mxu0 0
        %2152 = vmatpush1.bf16.msra.mxu0 0
        %2153 = vmatprep.subr.bf16.mxu0 0
        %2154 = vmatpush1.bf16.msra.mxu0 %v2137
        %2155 = vmatprep.subr.bf16.mxu0 0
        %2156 = vmatpush2.bf16.msra.mxu0 0
        %2157 = vmatprep.subr.bf16.mxu0 0
        %2158 = vmatpush2.bf16.msra.mxu0 0
        %2159 = vmatprep.subr.bf16.mxu0 0
        %2160 = vmatpush2.bf16.msra.mxu0 0
        %2161 = vmatprep.subr.bf16.mxu0 0
        %2162 = vmatpush2.bf16.msra.mxu0 0
        %2163 = vmatprep.subr.bf16.mxu0 0
        %2164 = vmatpush2.bf16.msra.mxu0 0
        %2165 = vmatprep.subr.bf16.mxu0 0
        %2166 = vmatpush2.bf16.msra.mxu0 0
        %2167 = vmatprep.subr.bf16.mxu0 0
        %2168 = vmatpush2.bf16.msra.mxu0 0
        %2169 = vmatprep.subr.bf16.mxu0 0
        %2170 = vmatpush2.bf16.msra.mxu0 0
        %2171 = vmatprep.mubr.bf16.mxu0 0
        %2172 = vmatmul.mubr.bf16.gmra.mxu0 %v2134
        %v2173 = vpop.f32.mrf.mxu0
        %v2174 = vadd.f32 0.0, %v2173
        %v2175 = vpop.f32.mrf.mxu0
        %v2176 = vpop.f32.mrf.mxu0
        %v2177 = vpop.f32.mrf.mxu0
        %2178 = vdwg.mxu0
        %2180 = vrot.lane.b32.xlu0 %v2078, 8
        %v2181 = vpop.permute.xlu0 %2180
        %2184 = vrot.lane.b32.xlu0 %v2126, 16
        %v2185 = vpop.permute.xlu0 %2184
        %2188 = vrot.lane.b32.xlu0 %v2174, 24
        %v2189 = vpop.permute.xlu0 %2188
        %v2191 = vsel %vm754, %v2030, %v2181
        %v2192 = vsel %vm1202, %v2191, %v2185
        %v2193 = vsel %vm1204, %v2192, %v2189
        %v2194 = vsel %vm1206, %v2193, 0.0
        %v2195 = vpack.c.bf16 %v2194, %v2194
        %s2196 = scalar_lea.vmem [#allocation10], 64
        %v2197 = vld [vmem:[%s2196] sm:$0xf]
        %v2198 = vld [vmem:[%s2196 + $0x4] sm:$0xf]
        %v2199 = vld [vmem:[%s2196 + $0x8] sm:$0xf]
        %v2200 = vld [vmem:[%s2196 + $0xc] sm:$0xf]
        %v2201 = vld [vmem:[%s2196 + $0x10] sm:$0xf]
        %v2202 = vld [vmem:[%s2196 + $0x14] sm:$0xf]
        %v2203 = vld [vmem:[%s2196 + $0x18] sm:$0xf]
        %v2204 = vld [vmem:[%s2196 + $0x1c] sm:$0xf]
        %v2205 = vld [vmem:[%s2196 + $0x20] sm:$0xf]
        %v2206 = vld [vmem:[%s2196 + $0x24] sm:$0xf]
        %v2207 = vld [vmem:[%s2196 + $0x28] sm:$0xf]
        %v2208 = vld [vmem:[%s2196 + $0x2c] sm:$0xf]
        %v2209 = vld [vmem:[%s2196 + $0x30] sm:$0xf]
        %v2210 = vld [vmem:[%s2196 + $0x34] sm:$0xf]
        %v2211 = vld [vmem:[%s2196 + $0x38] sm:$0xf]
        %v2212 = vld [vmem:[%s2196 + $0x3c] sm:$0xf]
        %s2213 = scalar_lea.vmem %s6, 1
        %v2214 = vld [vmem:[%s2213] sm:$0x1]
        %v2216 = vlaneseq
        %v2217 = vshrl.u32 %v2216, 7
        %v2218 = vsub.s32 0, %v2217
        %v2219 = vrot.slane %v2214, %v2218
        %v2237 = vunpack.c.l.b16 %v2197
        %v2238 = vunpack.c.l.b16 %v2198
        %v2239 = vunpack.c.l.b16 %v2199
        %v2240 = vunpack.c.l.b16 %v2200
        %v2241 = vunpack.c.l.b16 %v2201
        %v2242 = vunpack.c.l.b16 %v2202
        %v2243 = vunpack.c.l.b16 %v2203
        %v2244 = vunpack.c.l.b16 %v2204
        %v2245 = vunpack.c.l.b16 %v2205
        %v2246 = vunpack.c.l.b16 %v2206
        %v2247 = vunpack.c.l.b16 %v2207
        %v2248 = vunpack.c.l.b16 %v2208
        %v2249 = vunpack.c.l.b16 %v2209
        %v2250 = vunpack.c.l.b16 %v2210
        %v2251 = vunpack.c.l.b16 %v2211
        %v2252 = vunpack.c.l.b16 %v2212
        %v2253 = vpack.c.b16 %v2238, %v2237
        %v2254 = vpack.c.b16 %v2240, %v2239
        %v2255 = vpack.c.b16 %v2242, %v2241
        %v2256 = vpack.c.b16 %v2244, %v2243
        %v2257 = vpack.c.b16 %v2246, %v2245
        %v2258 = vpack.c.b16 %v2248, %v2247
        %v2259 = vpack.c.b16 %v2250, %v2249
        %v2260 = vpack.c.b16 %v2252, %v2251
        %2269 = vmatprep.subr.bf16.mxu0 0
        %2270 = vmatpush1.bf16.msra.mxu0 %v2260
        %2271 = vmatprep.subr.bf16.mxu0 0
        %2272 = vmatpush1.bf16.msra.mxu0 %v2259
        %2273 = vmatprep.subr.bf16.mxu0 0
        %2274 = vmatpush1.bf16.msra.mxu0 %v2258
        %2275 = vmatprep.subr.bf16.mxu0 0
        %2276 = vmatpush1.bf16.msra.mxu0 %v2257
        %2277 = vmatprep.subr.bf16.mxu0 0
        %2278 = vmatpush1.bf16.msra.mxu0 %v2256
        %2279 = vmatprep.subr.bf16.mxu0 0
        %2280 = vmatpush1.bf16.msra.mxu0 %v2255
        %2281 = vmatprep.subr.bf16.mxu0 0
        %2282 = vmatpush1.bf16.msra.mxu0 %v2254
        %2283 = vmatprep.subr.bf16.mxu0 0
        %2284 = vmatpush1.bf16.msra.mxu0 %v2253
        %2285 = vmatprep.subr.bf16.mxu0 0
        %2286 = vmatpush2.bf16.msra.mxu0 0
        %2287 = vmatprep.subr.bf16.mxu0 0
        %2288 = vmatpush2.bf16.msra.mxu0 0
        %2289 = vmatprep.subr.bf16.mxu0 0
        %2290 = vmatpush2.bf16.msra.mxu0 0
        %2291 = vmatprep.subr.bf16.mxu0 0
        %2292 = vmatpush2.bf16.msra.mxu0 0
        %2293 = vmatprep.subr.bf16.mxu0 0
        %2294 = vmatpush2.bf16.msra.mxu0 0
        %2295 = vmatprep.subr.bf16.mxu0 0
        %2296 = vmatpush2.bf16.msra.mxu0 0
        %2297 = vmatprep.subr.bf16.mxu0 0
        %2298 = vmatpush2.bf16.msra.mxu0 0
        %2299 = vmatprep.subr.bf16.mxu0 0
        %2300 = vmatpush2.bf16.msra.mxu0 0
        %2301 = vmatprep.mubr.bf16.mxu0 0
        %2302 = vmatmul.mubr.bf16.gmra.mxu0 %v2195
        %v2303 = vpop.f32.mrf.mxu0
        %v2304 = vadd.f32 %v2219, %v2303
        %v2305 = vpop.f32.mrf.mxu0
        %v2306 = vpop.f32.mrf.mxu0
        %v2307 = vpop.f32.mrf.mxu0
        %2308 = vdwg.mxu0
        %v2309 = vadd.f32 %v1614, %v2304
        %s2310 = scalar_lea.vmem %s7, 1
        %v2311 = vld [vmem:[%s2310] sm:$0x1]
        %s2312 = scalar_lea.vmem %s8, 1
        %v2313 = vld [vmem:[%s2312] sm:$0x1]
        %2314 = vadd.xlane.f32.xlu0 %v2309
        %v2315 = vpop.xlane.xlu0 %2314
        %v2316 = vmul.f32 %v2309, %v2309
        %2317 = vadd.xlane.f32.xlu0 %v2316
        %v2318 = vpop.xlane.xlu0 %2317
        %v2319 = vmul.f32 %v2315, 0.03125
        %v2320 = vmul.f32 %v2318, 0.03125
        %v2321 = vmul.f32 %v2319, %v2319
        %v2322 = vsub.f32 %v2320, %v2321
        %v2323 = vmax.f32 %v2322, 0.0
        %v2324 = vsub.f32 %v2309, %v2319
        %v2325 = vadd.f32 %v2323, 1e-12
        %v2326 = vrsqrt.pop %v2325
        %v2327 = vmul.f32 %v2324, %v2326
        %v2329 = vlaneseq
        %v2330 = vshrl.u32 %v2329, 7
        %v2331 = vsub.s32 0, %v2330
        %v2332 = vrot.slane %v2311, %v2331
        %v2334 = vmul.f32 %v2327, %v2332
        %v2336 = vlaneseq
        %v2337 = vshrl.u32 %v2336, 7
        %v2338 = vsub.s32 0, %v2337
        %v2339 = vrot.slane %v2313, %v2338
        %v2341 = vadd.f32 %v2334, %v2339
        %v2342 = vpack.c.bf16 %v2341, %v2341
        %s2343 = scalar_lea.vmem [#allocation11], 64
        %v2344 = vld [vmem:[%s2343] sm:$0xf]
        %v2345 = vld [vmem:[%s2343 + $0x4] sm:$0xf]
        %v2346 = vld [vmem:[%s2343 + $0x8] sm:$0xf]
        %v2347 = vld [vmem:[%s2343 + $0xc] sm:$0xf]
        %v2348 = vld [vmem:[%s2343 + $0x10] sm:$0xf]
        %v2349 = vld [vmem:[%s2343 + $0x14] sm:$0xf]
        %v2350 = vld [vmem:[%s2343 + $0x18] sm:$0xf]
        %v2351 = vld [vmem:[%s2343 + $0x1c] sm:$0xf]
        %v2352 = vld [vmem:[%s2343 + $0x20] sm:$0xf]
        %v2353 = vld [vmem:[%s2343 + $0x24] sm:$0xf]
        %v2354 = vld [vmem:[%s2343 + $0x28] sm:$0xf]
        %v2355 = vld [vmem:[%s2343 + $0x2c] sm:$0xf]
        %v2356 = vld [vmem:[%s2343 + $0x30] sm:$0xf]
        %v2357 = vld [vmem:[%s2343 + $0x34] sm:$0xf]
        %v2358 = vld [vmem:[%s2343 + $0x38] sm:$0xf]
        %v2359 = vld [vmem:[%s2343 + $0x3c] sm:$0xf]
        %s2360 = scalar_lea.vmem %s10, 1
        %v2361 = vld [vmem:[%s2360] sm:$0x1]
        %v2363 = vlaneseq
        %v2364 = vshrl.u32 %v2363, 7
        %v2365 = vsub.s32 0, %v2364
        %v2366 = vrot.slane %v2361, %v2365
        %v2384 = vunpack.c.l.b16 %v2344
        %v2385 = vunpack.c.l.b16 %v2345
        %v2386 = vunpack.c.l.b16 %v2346
        %v2387 = vunpack.c.l.b16 %v2347
        %v2388 = vunpack.c.l.b16 %v2348
        %v2389 = vunpack.c.l.b16 %v2349
        %v2390 = vunpack.c.l.b16 %v2350
        %v2391 = vunpack.c.l.b16 %v2351
        %v2392 = vunpack.c.l.b16 %v2352
        %v2393 = vunpack.c.l.b16 %v2353
        %v2394 = vunpack.c.l.b16 %v2354
        %v2395 = vunpack.c.l.b16 %v2355
        %v2396 = vunpack.c.l.b16 %v2356
        %v2397 = vunpack.c.l.b16 %v2357
        %v2398 = vunpack.c.l.b16 %v2358
        %v2399 = vunpack.c.l.b16 %v2359
        %v2400 = vpack.c.b16 %v2385, %v2384
        %v2401 = vpack.c.b16 %v2387, %v2386
        %v2402 = vpack.c.b16 %v2389, %v2388
        %v2403 = vpack.c.b16 %v2391, %v2390
        %v2404 = vpack.c.b16 %v2393, %v2392
        %v2405 = vpack.c.b16 %v2395, %v2394
        %v2406 = vpack.c.b16 %v2397, %v2396
        %v2407 = vpack.c.b16 %v2399, %v2398
        %2416 = vmatprep.subr.bf16.mxu0 0
        %2417 = vmatpush1.bf16.msra.mxu0 %v2407
        %2418 = vmatprep.subr.bf16.mxu0 0
        %2419 = vmatpush1.bf16.msra.mxu0 %v2406
        %2420 = vmatprep.subr.bf16.mxu0 0
        %2421 = vmatpush1.bf16.msra.mxu0 %v2405
        %2422 = vmatprep.subr.bf16.mxu0 0
        %2423 = vmatpush1.bf16.msra.mxu0 %v2404
        %2424 = vmatprep.subr.bf16.mxu0 0
        %2425 = vmatpush1.bf16.msra.mxu0 %v2403
        %2426 = vmatprep.subr.bf16.mxu0 0
        %2427 = vmatpush1.bf16.msra.mxu0 %v2402
        %2428 = vmatprep.subr.bf16.mxu0 0
        %2429 = vmatpush1.bf16.msra.mxu0 %v2401
        %2430 = vmatprep.subr.bf16.mxu0 0
        %2431 = vmatpush1.bf16.msra.mxu0 %v2400
        %2432 = vmatprep.subr.bf16.mxu0 0
        %2433 = vmatpush2.bf16.msra.mxu0 0
        %2434 = vmatprep.subr.bf16.mxu0 0
        %2435 = vmatpush2.bf16.msra.mxu0 0
        %2436 = vmatprep.subr.bf16.mxu0 0
        %2437 = vmatpush2.bf16.msra.mxu0 0
        %2438 = vmatprep.subr.bf16.mxu0 0
        %2439 = vmatpush2.bf16.msra.mxu0 0
        %2440 = vmatprep.subr.bf16.mxu0 0
        %2441 = vmatpush2.bf16.msra.mxu0 0
        %2442 = vmatprep.subr.bf16.mxu0 0
        %2443 = vmatpush2.bf16.msra.mxu0 0
        %2444 = vmatprep.subr.bf16.mxu0 0
        %2445 = vmatpush2.bf16.msra.mxu0 0
        %2446 = vmatprep.subr.bf16.mxu0 0
        %2447 = vmatpush2.bf16.msra.mxu0 0
        %2448 = vmatprep.mubr.bf16.mxu0 0
        %2449 = vmatmul.mubr.bf16.gmra.mxu0 %v2342
        %v2450 = vpop.f32.mrf.mxu0
        %v2451 = vadd.f32 %v2366, %v2450
        %v2452 = vpop.f32.mrf.mxu0
        %v2453 = vpop.f32.mrf.mxu0
        %v2454 = vpop.f32.mrf.mxu0
        %2455 = vdwg.mxu0
        %v2456 = vmul.f32 %v2451, %v2451
        %v2457 = vmul.f32 %v2451, %v2456
        %v2458 = vmul.f32 %v2457, 0.044715
        %v2459 = vadd.f32 %v2451, %v2458
        %v2460 = vmul.f32 %v2459, 0.7978846
        %v2461 = vtanh.pop %v2460
        %v2462 = vadd.f32 %v2461, 1.0
        %v2463 = vmul.f32 %v2462, 0.5
        %v2464 = vmul.f32 %v2451, %v2463
        %v2465 = vpack.c.bf16 %v2464, %v2464
        %s2466 = scalar_lea.vmem [#allocation13], 64
        %v2467 = vld [vmem:[%s2466] sm:$0xf]
        %v2468 = vld [vmem:[%s2466 + $0x4] sm:$0xf]
        %v2469 = vld [vmem:[%s2466 + $0x8] sm:$0xf]
        %v2470 = vld [vmem:[%s2466 + $0xc] sm:$0xf]
        %v2471 = vld [vmem:[%s2466 + $0x10] sm:$0xf]
        %v2472 = vld [vmem:[%s2466 + $0x14] sm:$0xf]
        %v2473 = vld [vmem:[%s2466 + $0x18] sm:$0xf]
        %v2474 = vld [vmem:[%s2466 + $0x1c] sm:$0xf]
        %v2475 = vld [vmem:[%s2466 + $0x20] sm:$0xf]
        %v2476 = vld [vmem:[%s2466 + $0x24] sm:$0xf]
        %v2477 = vld [vmem:[%s2466 + $0x28] sm:$0xf]
        %v2478 = vld [vmem:[%s2466 + $0x2c] sm:$0xf]
        %v2479 = vld [vmem:[%s2466 + $0x30] sm:$0xf]
        %v2480 = vld [vmem:[%s2466 + $0x34] sm:$0xf]
        %v2481 = vld [vmem:[%s2466 + $0x38] sm:$0xf]
        %v2482 = vld [vmem:[%s2466 + $0x3c] sm:$0xf]
        %s2483 = scalar_lea.vmem %s12, 1
        %v2484 = vld [vmem:[%s2483] sm:$0x1]
        %v2486 = vlaneseq
        %v2487 = vshrl.u32 %v2486, 7
        %v2488 = vsub.s32 0, %v2487
        %v2489 = vrot.slane %v2484, %v2488
        %v2507 = vunpack.c.l.b16 %v2467
        %v2508 = vunpack.c.l.b16 %v2468
        %v2509 = vunpack.c.l.b16 %v2469
        %v2510 = vunpack.c.l.b16 %v2470
        %v2511 = vunpack.c.l.b16 %v2471
        %v2512 = vunpack.c.l.b16 %v2472
        %v2513 = vunpack.c.l.b16 %v2473
        %v2514 = vunpack.c.l.b16 %v2474
        %v2515 = vunpack.c.l.b16 %v2475
        %v2516 = vunpack.c.l.b16 %v2476
        %v2517 = vunpack.c.l.b16 %v2477
        %v2518 = vunpack.c.l.b16 %v2478
        %v2519 = vunpack.c.l.b16 %v2479
        %v2520 = vunpack.c.l.b16 %v2480
        %v2521 = vunpack.c.l.b16 %v2481
        %v2522 = vunpack.c.l.b16 %v2482
        %v2523 = vpack.c.b16 %v2508, %v2507
        %v2524 = vpack.c.b16 %v2510, %v2509
        %v2525 = vpack.c.b16 %v2512, %v2511
        %v2526 = vpack.c.b16 %v2514, %v2513
        %v2527 = vpack.c.b16 %v2516, %v2515
        %v2528 = vpack.c.b16 %v2518, %v2517
        %v2529 = vpack.c.b16 %v2520, %v2519
        %v2530 = vpack.c.b16 %v2522, %v2521
        %2539 = vmatprep.subr.bf16.mxu0 0
        %2540 = vmatpush1.bf16.msra.mxu0 %v2530
        %2541 = vmatprep.subr.bf16.mxu0 0
        %2542 = vmatpush1.bf16.msra.mxu0 %v2529
        %2543 = vmatprep.subr.bf16.mxu0 0
        %2544 = vmatpush1.bf16.msra.mxu0 %v2528
        %2545 = vmatprep.subr.bf16.mxu0 0
        %2546 = vmatpush1.bf16.msra.mxu0 %v2527
        %2547 = vmatprep.subr.bf16.mxu0 0
        %2548 = vmatpush1.bf16.msra.mxu0 %v2526
        %2549 = vmatprep.subr.bf16.mxu0 0
        %2550 = vmatpush1.bf16.msra.mxu0 %v2525
        %2551 = vmatprep.subr.bf16.mxu0 0
        %2552 = vmatpush1.bf16.msra.mxu0 %v2524
        %2553 = vmatprep.subr.bf16.mxu0 0
        %2554 = vmatpush1.bf16.msra.mxu0 %v2523
        %2555 = vmatprep.subr.bf16.mxu0 0
        %2556 = vmatpush2.bf16.msra.mxu0 0
        %2557 = vmatprep.subr.bf16.mxu0 0
        %2558 = vmatpush2.bf16.msra.mxu0 0
        %2559 = vmatprep.subr.bf16.mxu0 0
        %2560 = vmatpush2.bf16.msra.mxu0 0
        %2561 = vmatprep.subr.bf16.mxu0 0
        %2562 = vmatpush2.bf16.msra.mxu0 0
        %2563 = vmatprep.subr.bf16.mxu0 0
        %2564 = vmatpush2.bf16.msra.mxu0 0
        %2565 = vmatprep.subr.bf16.mxu0 0
        %2566 = vmatpush2.bf16.msra.mxu0 0
        %2567 = vmatprep.subr.bf16.mxu0 0
        %2568 = vmatpush2.bf16.msra.mxu0 0
        %2569 = vmatprep.subr.bf16.mxu0 0
        %2570 = vmatpush2.bf16.msra.mxu0 0
        %2571 = vmatprep.mubr.bf16.mxu0 0
        %2572 = vmatmul.mubr.bf16.gmra.mxu0 %v2465
        %v2573 = vpop.f32.mrf.mxu0
        %v2574 = vadd.f32 %v2489, %v2573
        %v2575 = vpop.f32.mrf.mxu0
        %v2576 = vpop.f32.mrf.mxu0
        %v2577 = vpop.f32.mrf.mxu0
        %2578 = vdwg.mxu0
        %v2579 = vadd.f32 %v2341, %v2574
        %s2580 = scalar_lea.vmem %s13, 1
        %v2581 = vld [vmem:[%s2580] sm:$0x1]
        %s2582 = scalar_lea.vmem %s14, 1
        %v2583 = vld [vmem:[%s2582] sm:$0x1]
        %2584 = vadd.xlane.f32.xlu0 %v2579
        %v2585 = vpop.xlane.xlu0 %2584
        %v2586 = vmul.f32 %v2579, %v2579
        %2587 = vadd.xlane.f32.xlu0 %v2586
        %v2588 = vpop.xlane.xlu0 %2587
        %v2589 = vmul.f32 %v2585, 0.03125
        %v2590 = vmul.f32 %v2588, 0.03125
        %v2591 = vmul.f32 %v2589, %v2589
        %v2592 = vsub.f32 %v2590, %v2591
        %v2593 = vmax.f32 %v2592, 0.0
        %v2594 = vsub.f32 %v2579, %v2589
        %v2595 = vadd.f32 %v2593, 1e-12
        %v2596 = vrsqrt.pop %v2595
        %v2597 = vmul.f32 %v2594, %v2596
        %v2599 = vlaneseq
        %v2600 = vshrl.u32 %v2599, 7
        %v2601 = vsub.s32 0, %v2600
        %v2602 = vrot.slane %v2581, %v2601
        %v2604 = vmul.f32 %v2597, %v2602
        %v2606 = vlaneseq
        %v2607 = vshrl.u32 %v2606, 7
        %v2608 = vsub.s32 0, %v2607
        %v2609 = vrot.slane %v2583, %v2608
        %v2611 = vadd.f32 %v2604, %v2609
        %2612 = vst [vmem:[%s592] sm:$0xff] %v2611
        %s2613 = sand.u32 %s363, 1
        %s2614 = scalar_lea.sflag [#allocation4], %s2613
        %s2615 = sand.u32 %s363, 1
        %s2616 = smul.addr %s2615, 8
        %s2617 = scalar_lea.vmem [#allocation14], %s2616
        // Predicated region
        $region109: #{tpu_custom_call.1} parent=79 // pred_check
          %p2618 = pneg %p373
        $region110: #{tpu_custom_call.1} parent=79 // pred_check_branch
          %2620 = sbr.rel (%p2618) target = $region112
        $region111: #{tpu_custom_call.1} parent=79 // pred_region
          %s2622 = ssub.s32 128, 128
          %2623 = vsyncadd %s2614, %s2622
          %s2624 = smul.addr %s35, 128
          %s2625 = scalar_lea.hbm %s15, %s2624
          %s2627 = sshll.u32 %s2617, 4
          %s2628 = int_to_ptr.vmem [resolvable:$true] %s2627
          %2630 = dma.vmem_to_hbm [thread:$0]  %s2628, 128, %s2625, %s2614
        $region112: #{tpu_custom_call.1} parent=79 // pred_fallthru
          _
      $region80: #{tpu_custom_call.1} parent=5 // pred_fallthru
        _
      %p2631 = scmp.le.s32.totalorder 2, %s30
      // Predicated region
      $region113: #{tpu_custom_call.1} parent=5 // pred_check
        %p2632 = pneg %p2631
      $region114: #{tpu_custom_call.1} parent=5 // pred_check_branch
        %2634 = sbr.rel (%p2632) target = $region116
      $region115: #{tpu_custom_call.1} parent=5 // pred_region
        %s2635 = ssub.s32 %s30, 2
        // Predicated region
        $region117: #{tpu_custom_call.1} parent=115 // pred_check
          %p2636 = pneg %p379
        $region118: #{tpu_custom_call.1} parent=115 // pred_check_branch
          %2638 = sbr.rel (%p2636) target = $region120
        $region119: #{tpu_custom_call.1} parent=115 // pred_region
          %s2639 = sand.u32 %s364, 1
          %s2640 = scalar_lea.sflag [#allocation4], %s2639
          %s2641 = sand.u32 %s364, 1
          %s2642 = smul.addr %s2641, 8
          %s2643 = scalar_lea.vmem [#allocation14], %s2642
          %2644 = dma.done %s2640, 128
        $region120: #{tpu_custom_call.1} parent=115 // pred_fallthru
          _
      $region116: #{tpu_custom_call.1} parent=5 // pred_fallthru
        _
    $region6: #{tpu_custom_call.1} parent=1 // loop_footer
      %s34 = sadd.s32 1, %s30
    $region7: #{tpu_custom_call.1} parent=1 // loop_footer_branch
      %29 = sbr.rel target = $region3
    $region8: #{tpu_custom_call.1} parent=1 // loop_exit
      _
    %2645 = vsyncpa [#allocation3], 1
    %s2646 = scalar_lea.sflag [#allocation3], 1
    %2647 = vsyncpa %s2646, 1
    %2648 = vsyncpa [#allocation6], 1
    %2649 = vsyncpa [#allocation9], 1
    %2650 = vsyncpa [#allocation12], 1
    %2651 = vsyncpa [#allocation4], 1
    %s2652 = scalar_lea.sflag [#allocation4], 1
    %2653 = vsyncpa %s2652, 1

</llo_original>
